<compile_context>
chip_gen: v7x
topology: tpu7x:2x2x1
jax: 0.10.0
libtpu: 0.0.40
codegen_flags: <defaults>
</compile_context>

<pallas_src>
import functools

import jax
import jax.numpy as jnp
from jax.experimental import pallas as pl
from jax.experimental.pallas import tpu as pltpu


LN_EPS = 1e-5  # PyTorch nn.LayerNorm default


# ------------------------------ fused kernel ------------------------------

def _fused_kernel(pts_ref, info_ref,
                  w1_ref, b1_ref, w2_ref, b2_ref, w3_ref, b3_ref,
                  wi_ref, bi_ref,
                  wh1_ref, bh1_ref, g_ref, bt_ref,
                  wout_ref, bout_ref,
                  feat_ref, head_ref):
    B = feat_ref.shape[0]
    M = pts_ref.shape[0]
    N = M // B

    # ---------------- encoder (PointNet-style surrogate) ----------------
    pts = pts_ref[...]                                    # (B*N, C) f32, C > 3
    # torch: f0 = points[:, 3:, :].max(dim=1, keepdim=True)[0]
    fmax = jnp.max(pts[:, 3:], axis=1, keepdims=True)     # (B*N, 1)
    # f0 = concat([xyz, fmax], channel) folded into the first matmul
    h = (jnp.dot(pts[:, :3], w1_ref[:3, :], preferred_element_type=jnp.float32)
         + fmax * w1_ref[3:4, :]
         + b1_ref[...])
    h = jnp.maximum(h, 0.0)
    h = jnp.maximum(
        jnp.dot(h, w2_ref[...], preferred_element_type=jnp.float32) + b2_ref[...],
        0.0)
    h = jnp.dot(h, w3_ref[...], preferred_element_type=jnp.float32) + b3_ref[...]
    # per-cloud global max-pool over N points -> (B, 512); B is tiny & static.
    feat = jnp.concatenate(
        [jnp.max(h[b * N:(b + 1) * N, :], axis=0, keepdims=True)
         for b in range(B)],
        axis=0)                                           # (B, 512)
    feat_ref[...] = feat

    # -------------------------------- head --------------------------------
    info_f = (jnp.dot(info_ref[...], wi_ref[...],
                      preferred_element_type=jnp.float32)
              + bi_ref[...])                              # (B, 32)
    x = jnp.concatenate([feat, info_f], axis=1)           # (B, 544)
    # merged anchor|offset first layer: one (B,544) @ (544,512) dot
    hh = (jnp.dot(x, wh1_ref[...], preferred_element_type=jnp.float32)
          + bh1_ref[...])                                 # (B, 512)

    half = hh.shape[1] // 2                               # 256 per branch

    def _ln(v):  # LayerNorm normalization (two-pass, torch-parity)
        mu = jnp.mean(v, axis=-1, keepdims=True)
        var = jnp.mean((v - mu) * (v - mu), axis=-1, keepdims=True)
        return (v - mu) * jax.lax.rsqrt(var + LN_EPS)

    hn = jnp.concatenate([_ln(hh[:, :half]), _ln(hh[:, half:])], axis=1)
    hn = jnp.maximum(hn * g_ref[...] + bt_ref[...], 0.0)  # affine + ReLU
    # block-diagonal final layer -> lane-dense packed (B, 128) output
    head_ref[...] = (jnp.dot(hn, wout_ref[...],
                             preferred_element_type=jnp.float32)
                     + bout_ref[...])


# ------------------------------ wrapper / jit ------------------------------

@functools.partial(jax.jit, static_argnames=("k_cls",))
def point_multi_grasp_net_forward(points, info, params, k_cls):
    B, N, C = points.shape
    assert C > 3, "points must carry xyz + at least one feature channel"
    pts_flat = points.reshape(B * N, C)

    (w1, b1, w2, b2, w3, b3,
     wi, bi, wh1, bh1, gamma, beta, wout, bout) = params
    D = w3.shape[1]
    out_pad = wout.shape[1]

    vmem = pl.BlockSpec(memory_space=pltpu.MemorySpace.VMEM)
    args = (pts_flat, info, w1, b1, w2, b2, w3, b3,
            wi, bi, wh1, bh1, gamma, beta, wout, bout)

    feat, head = pl.pallas_call(
        _fused_kernel,
        out_shape=(jax.ShapeDtypeStruct((B, D), jnp.float32),
                   jax.ShapeDtypeStruct((B, out_pad), jnp.float32)),
        in_specs=[vmem] * len(args),
        out_specs=(vmem, vmem),
    )(*args)

    pred = head[:, :k_cls]
    offset = head[:, k_cls:4 * k_cls].reshape(B, k_cls, 3)  # torch .view(-1,k,3)
    return feat, pred, offset


# --------------------------------- params ---------------------------------

def init_params(key, info_size, k_cls):
    ks = jax.random.split(key, 8)

    def kaiming(k, fan_in, fan_out):
        # nn.init.kaiming_normal_ (fan_in, relu gain): std = sqrt(2 / fan_in)
        return (jnp.sqrt(2.0 / fan_in)
                * jax.random.normal(k, (fan_in, fan_out), jnp.float32))

    zeros = lambda n: jnp.zeros((1, n), jnp.float32)
    ones = lambda n: jnp.ones((1, n), jnp.float32)

    # surrogate PointNext encoder weights (shared per-point MLP 4->64->128->512)
    w1, b1 = kaiming(ks[0], 4, 64), zeros(64)
    w2, b2 = kaiming(ks[1], 64, 128), zeros(128)
    w3, b3 = kaiming(ks[2], 128, 512), zeros(512)

    # info layer
    wi, bi = kaiming(ks[3], info_size, 32), zeros(32)

    # anchor / offset first layers + LayerNorm, merged along the output dim
    wa1, wo1 = kaiming(ks[4], 512 + 32, 256), kaiming(ks[6], 512 + 32, 256)
    wh1 = jnp.concatenate([wa1, wo1], axis=1)              # (544, 512)
    bh1 = zeros(512)
    gamma = ones(512)                                      # [gamma_a | gamma_o]
    beta = zeros(512)                                      # [beta_a  | beta_o ]

    # anchor / offset final layers, packed block-diagonally into a lane-dense
    # (512, out_pad) weight: cols [:k_cls] = pred, [k_cls:4k] = offset, rest 0.
    wa2 = kaiming(ks[5], 256, k_cls)
    wo2 = kaiming(ks[7], 256, 3 * k_cls)
    out_pad = ((4 * k_cls + 127) // 128) * 128
    wout = jnp.zeros((512, out_pad), jnp.float32)
    wout = wout.at[:256, :k_cls].set(wa2)
    wout = wout.at[256:, k_cls:4 * k_cls].set(wo2)
    bout = zeros(out_pad)                                  # linear biases init 0

    return (w1, b1, w2, b2, w3, b3, wi, bi,
            wh1, bh1, gamma, beta, wout, bout)


if __name__ == "__main__":
    B, N, C = 2, 128, 6          # points: xyz + 3 extra feature channels
    info_size, k_cls = 3, 7

    key = jax.random.PRNGKey(0)
    kp, ki, kw = jax.random.split(key, 3)
    points = jax.random.normal(kp, (B, N, C), jnp.float32)
    info = jax.random.normal(ki, (B, info_size), jnp.float32)

    params = init_params(kw, info_size, k_cls)

    features, pred, offset = point_multi_grasp_net_forward(
        points, info, params, k_cls)
    jax.block_until_ready((features, pred, offset))

    assert features.shape == (B, 512)
    assert pred.shape == (B, k_cls)
    assert offset.shape == (B, k_cls, 3)
    assert jnp.all(jnp.isfinite(features))
    assert jnp.all(jnp.isfinite(pred))
    assert jnp.all(jnp.isfinite(offset))
    print("KERNEL_OK")
</pallas_src>

<mosaic_0001>
module attributes {stable_mosaic.version = 11 : i64} {
  func.func @_fused_kernel(%arg0: memref<256x6xf32, #tpu.memory_space<vmem>>, %arg1: memref<2x3xf32, #tpu.memory_space<vmem>>, %arg2: memref<4x64xf32, #tpu.memory_space<vmem>>, %arg3: memref<1x64xf32, #tpu.memory_space<vmem>>, %arg4: memref<64x128xf32, #tpu.memory_space<vmem>>, %arg5: memref<1x128xf32, #tpu.memory_space<vmem>>, %arg6: memref<128x512xf32, #tpu.memory_space<vmem>>, %arg7: memref<1x512xf32, #tpu.memory_space<vmem>>, %arg8: memref<3x32xf32, #tpu.memory_space<vmem>>, %arg9: memref<1x32xf32, #tpu.memory_space<vmem>>, %arg10: memref<544x512xf32, #tpu.memory_space<vmem>>, %arg11: memref<1x512xf32, #tpu.memory_space<vmem>>, %arg12: memref<1x512xf32, #tpu.memory_space<vmem>>, %arg13: memref<1x512xf32, #tpu.memory_space<vmem>>, %arg14: memref<512x128xf32, #tpu.memory_space<vmem>>, %arg15: memref<1x128xf32, #tpu.memory_space<vmem>>, %arg16: memref<2x512xf32, #tpu.memory_space<vmem>>, %arg17: memref<2x128xf32, #tpu.memory_space<vmem>>) attributes {dimension_semantics = [], scalar_prefetch = 0 : i64, scratch_operands = 0 : i64, tpu.core_type = #tpu.core_type<tc>} {
    %c0 = arith.constant 0 : index
    %c0_0 = arith.constant 0 : index
    %0 = vector.load %arg0[%c0, %c0_0] : memref<256x6xf32, #tpu.memory_space<vmem>>, vector<256x6xf32>
    %1 = vector.extract_strided_slice %0 {offsets = [0, 3], sizes = [256, 3], strides = [1, 1]} : vector<256x6xf32> to vector<256x3xf32>
    %cst = arith.constant dense<0xFF800000> : vector<256xf32>
    %2 = vector.multi_reduction <maximumf>, %1, %cst [1] : vector<256x3xf32> to vector<256xf32>
    %3 = vector.shape_cast %2 : vector<256xf32> to vector<256x1xf32>
    %4 = vector.extract_strided_slice %0 {offsets = [0, 0], sizes = [256, 3], strides = [1, 1]} : vector<256x6xf32> to vector<256x3xf32>
    %c0_1 = arith.constant 0 : index
    %c0_2 = arith.constant 0 : index
    %5 = vector.load %arg2[%c0_1, %c0_2] : memref<4x64xf32, #tpu.memory_space<vmem>>, vector<3x64xf32>
    %cst_3 = arith.constant dense<0.000000e+00> : vector<256x64xf32>
    %6 = tpu.matmul %4, %5, %cst_3 {dimension_numbers = #tpu.dot_dimension_numbers<[1], [0], [0], [1], [0, 0, 1, 1], [], []>} : vector<256x3xf32>, vector<3x64xf32>, vector<256x64xf32> -> vector<256x64xf32>
    %c3 = arith.constant 3 : index
    %c0_4 = arith.constant 0 : index
    %7 = vector.load %arg2[%c3, %c0_4] : memref<4x64xf32, #tpu.memory_space<vmem>>, vector<1x64xf32>
    %8 = vector.broadcast %3 : vector<256x1xf32> to vector<256x64xf32>
    %9 = vector.broadcast %7 : vector<1x64xf32> to vector<256x64xf32>
    %10 = arith.mulf %8, %9 : vector<256x64xf32>
    %11 = arith.addf %6, %10 : vector<256x64xf32>
    %c0_5 = arith.constant 0 : index
    %c0_6 = arith.constant 0 : index
    %12 = vector.load %arg3[%c0_5, %c0_6] : memref<1x64xf32, #tpu.memory_space<vmem>>, vector<1x64xf32>
    %13 = vector.broadcast %12 : vector<1x64xf32> to vector<256x64xf32>
    %14 = arith.addf %11, %13 : vector<256x64xf32>
    %cst_7 = arith.constant 0.000000e+00 : f32
    %15 = vector.broadcast %cst_7 : f32 to vector<256x64xf32>
    %16 = arith.maximumf %14, %15 : vector<256x64xf32>
    %c0_8 = arith.constant 0 : index
    %c0_9 = arith.constant 0 : index
    %17 = vector.load %arg4[%c0_8, %c0_9] : memref<64x128xf32, #tpu.memory_space<vmem>>, vector<64x128xf32>
    %cst_10 = arith.constant dense<0.000000e+00> : vector<256x128xf32>
    %18 = tpu.matmul %16, %17, %cst_10 {dimension_numbers = #tpu.dot_dimension_numbers<[1], [0], [0], [1], [0, 0, 1, 1], [], []>} : vector<256x64xf32>, vector<64x128xf32>, vector<256x128xf32> -> vector<256x128xf32>
    %c0_11 = arith.constant 0 : index
    %c0_12 = arith.constant 0 : index
    %19 = vector.load %arg5[%c0_11, %c0_12] : memref<1x128xf32, #tpu.memory_space<vmem>>, vector<1x128xf32>
    %20 = vector.broadcast %19 : vector<1x128xf32> to vector<256x128xf32>
    %21 = arith.addf %18, %20 : vector<256x128xf32>
    %cst_13 = arith.constant 0.000000e+00 : f32
    %22 = vector.broadcast %cst_13 : f32 to vector<256x128xf32>
    %23 = arith.maximumf %21, %22 : vector<256x128xf32>
    %c0_14 = arith.constant 0 : index
    %c0_15 = arith.constant 0 : index
    %24 = vector.load %arg6[%c0_14, %c0_15] : memref<128x512xf32, #tpu.memory_space<vmem>>, vector<128x512xf32>
    %cst_16 = arith.constant dense<0.000000e+00> : vector<256x512xf32>
    %25 = tpu.matmul %23, %24, %cst_16 {dimension_numbers = #tpu.dot_dimension_numbers<[1], [0], [0], [1], [0, 0, 1, 1], [], []>} : vector<256x128xf32>, vector<128x512xf32>, vector<256x512xf32> -> vector<256x512xf32>
    %c0_17 = arith.constant 0 : index
    %c0_18 = arith.constant 0 : index
    %26 = vector.load %arg7[%c0_17, %c0_18] : memref<1x512xf32, #tpu.memory_space<vmem>>, vector<1x512xf32>
    %27 = vector.broadcast %26 : vector<1x512xf32> to vector<256x512xf32>
    %28 = arith.addf %25, %27 : vector<256x512xf32>
    %29 = vector.extract_strided_slice %28 {offsets = [0, 0], sizes = [128, 512], strides = [1, 1]} : vector<256x512xf32> to vector<128x512xf32>
    %cst_19 = arith.constant dense<0xFF800000> : vector<512xf32>
    %30 = vector.multi_reduction <maximumf>, %29, %cst_19 [0] : vector<128x512xf32> to vector<512xf32>
    %31 = vector.shape_cast %30 : vector<512xf32> to vector<1x512xf32>
    %32 = vector.extract_strided_slice %28 {offsets = [128, 0], sizes = [128, 512], strides = [1, 1]} : vector<256x512xf32> to vector<128x512xf32>
    %cst_20 = arith.constant dense<0xFF800000> : vector<512xf32>
    %33 = vector.multi_reduction <maximumf>, %32, %cst_20 [0] : vector<128x512xf32> to vector<512xf32>
    %34 = vector.shape_cast %33 : vector<512xf32> to vector<1x512xf32>
    %35 = tpu.concatenate %31, %34 in 0 : vector<1x512xf32>, vector<1x512xf32> -> vector<2x512xf32>
    %c0_21 = arith.constant 0 : index
    %c0_22 = arith.constant 0 : index
    %36 = vector.load %arg16[%c0_21, %c0_22] : memref<2x512xf32, #tpu.memory_space<vmem>>, vector<2x512xf32>
    tpu.vector_store %arg16[%c0_21, %c0_22], %35 {strides = array<i32>} : memref<2x512xf32, #tpu.memory_space<vmem>>, vector<2x512xf32>,
    %c0_23 = arith.constant 0 : index
    %c0_24 = arith.constant 0 : index
    %37 = vector.load %arg1[%c0_23, %c0_24] : memref<2x3xf32, #tpu.memory_space<vmem>>, vector<2x3xf32>
    %c0_25 = arith.constant 0 : index
    %c0_26 = arith.constant 0 : index
    %38 = vector.load %arg8[%c0_25, %c0_26] : memref<3x32xf32, #tpu.memory_space<vmem>>, vector<3x32xf32>
    %cst_27 = arith.constant dense<0.000000e+00> : vector<2x32xf32>
    %39 = tpu.matmul %37, %38, %cst_27 {dimension_numbers = #tpu.dot_dimension_numbers<[1], [0], [0], [1], [0, 0, 1, 1], [], []>} : vector<2x3xf32>, vector<3x32xf32>, vector<2x32xf32> -> vector<2x32xf32>
    %c0_28 = arith.constant 0 : index
    %c0_29 = arith.constant 0 : index
    %40 = vector.load %arg9[%c0_28, %c0_29] : memref<1x32xf32, #tpu.memory_space<vmem>>, vector<1x32xf32>
    %41 = vector.broadcast %40 : vector<1x32xf32> to vector<2x32xf32>
    %42 = arith.addf %39, %41 : vector<2x32xf32>
    %43 = tpu.concatenate %35, %42 in 1 : vector<2x512xf32>, vector<2x32xf32> -> vector<2x544xf32>
    %c0_30 = arith.constant 0 : index
    %c0_31 = arith.constant 0 : index
    %44 = vector.load %arg10[%c0_30, %c0_31] : memref<544x512xf32, #tpu.memory_space<vmem>>, vector<544x512xf32>
    %cst_32 = arith.constant dense<0.000000e+00> : vector<2x512xf32>
    %45 = tpu.matmul %43, %44, %cst_32 {dimension_numbers = #tpu.dot_dimension_numbers<[1], [0], [0], [1], [0, 0, 1, 1], [], []>} : vector<2x544xf32>, vector<544x512xf32>, vector<2x512xf32> -> vector<2x512xf32>
    %c0_33 = arith.constant 0 : index
    %c0_34 = arith.constant 0 : index
    %46 = vector.load %arg11[%c0_33, %c0_34] : memref<1x512xf32, #tpu.memory_space<vmem>>, vector<1x512xf32>
    %47 = vector.broadcast %46 : vector<1x512xf32> to vector<2x512xf32>
    %48 = arith.addf %45, %47 : vector<2x512xf32>
    %49 = vector.extract_strided_slice %48 {offsets = [0, 0], sizes = [2, 256], strides = [1, 1]} : vector<2x512xf32> to vector<2x256xf32>
    %cst_35 = arith.constant dense<0.000000e+00> : vector<2xf32>
    %50 = vector.multi_reduction <add>, %49, %cst_35 [1] : vector<2x256xf32> to vector<2xf32>
    %51 = vector.shape_cast %50 : vector<2xf32> to vector<2x1xf32>
    %cst_36 = arith.constant 2.560000e+02 : f32
    %52 = vector.broadcast %cst_36 : f32 to vector<2x1xf32>
    %53 = arith.divf %51, %52 : vector<2x1xf32>
    %54 = vector.broadcast %53 : vector<2x1xf32> to vector<2x256xf32>
    %55 = arith.subf %49, %54 : vector<2x256xf32>
    %56 = vector.broadcast %53 : vector<2x1xf32> to vector<2x256xf32>
    %57 = arith.subf %49, %56 : vector<2x256xf32>
    %58 = arith.mulf %55, %57 : vector<2x256xf32>
    %cst_37 = arith.constant dense<0.000000e+00> : vector<2xf32>
    %59 = vector.multi_reduction <add>, %58, %cst_37 [1] : vector<2x256xf32> to vector<2xf32>
    %60 = vector.shape_cast %59 : vector<2xf32> to vector<2x1xf32>
    %cst_38 = arith.constant 2.560000e+02 : f32
    %61 = vector.broadcast %cst_38 : f32 to vector<2x1xf32>
    %62 = arith.divf %60, %61 : vector<2x1xf32>
    %63 = vector.broadcast %53 : vector<2x1xf32> to vector<2x256xf32>
    %64 = arith.subf %49, %63 : vector<2x256xf32>
    %cst_39 = arith.constant 9.99999974E-6 : f32
    %65 = vector.broadcast %cst_39 : f32 to vector<2x1xf32>
    %66 = arith.addf %62, %65 : vector<2x1xf32>
    %67 = math.rsqrt %66 : vector<2x1xf32>
    %68 = vector.broadcast %67 : vector<2x1xf32> to vector<2x256xf32>
    %69 = arith.mulf %64, %68 : vector<2x256xf32>
    %70 = vector.extract_strided_slice %48 {offsets = [0, 256], sizes = [2, 256], strides = [1, 1]} : vector<2x512xf32> to vector<2x256xf32>
    %cst_40 = arith.constant dense<0.000000e+00> : vector<2xf32>
    %71 = vector.multi_reduction <add>, %70, %cst_40 [1] : vector<2x256xf32> to vector<2xf32>
    %72 = vector.shape_cast %71 : vector<2xf32> to vector<2x1xf32>
    %cst_41 = arith.constant 2.560000e+02 : f32
    %73 = vector.broadcast %cst_41 : f32 to vector<2x1xf32>
    %74 = arith.divf %72, %73 : vector<2x1xf32>
    %75 = vector.broadcast %74 : vector<2x1xf32> to vector<2x256xf32>
    %76 = arith.subf %70, %75 : vector<2x256xf32>
    %77 = vector.broadcast %74 : vector<2x1xf32> to vector<2x256xf32>
    %78 = arith.subf %70, %77 : vector<2x256xf32>
    %79 = arith.mulf %76, %78 : vector<2x256xf32>
    %cst_42 = arith.constant dense<0.000000e+00> : vector<2xf32>
    %80 = vector.multi_reduction <add>, %79, %cst_42 [1] : vector<2x256xf32> to vector<2xf32>
    %81 = vector.shape_cast %80 : vector<2xf32> to vector<2x1xf32>
    %cst_43 = arith.constant 2.560000e+02 : f32
    %82 = vector.broadcast %cst_43 : f32 to vector<2x1xf32>
    %83 = arith.divf %81, %82 : vector<2x1xf32>
    %84 = vector.broadcast %74 : vector<2x1xf32> to vector<2x256xf32>
    %85 = arith.subf %70, %84 : vector<2x256xf32>
    %cst_44 = arith.constant 9.99999974E-6 : f32
    %86 = vector.broadcast %cst_44 : f32 to vector<2x1xf32>
    %87 = arith.addf %83, %86 : vector<2x1xf32>
    %88 = math.rsqrt %87 : vector<2x1xf32>
    %89 = vector.broadcast %88 : vector<2x1xf32> to vector<2x256xf32>
    %90 = arith.mulf %85, %89 : vector<2x256xf32>
    %91 = tpu.concatenate %69, %90 in 1 : vector<2x256xf32>, vector<2x256xf32> -> vector<2x512xf32>
    %c0_45 = arith.constant 0 : index
    %c0_46 = arith.constant 0 : index
    %92 = vector.load %arg12[%c0_45, %c0_46] : memref<1x512xf32, #tpu.memory_space<vmem>>, vector<1x512xf32>
    %93 = vector.broadcast %92 : vector<1x512xf32> to vector<2x512xf32>
    %94 = arith.mulf %91, %93 : vector<2x512xf32>
    %c0_47 = arith.constant 0 : index
    %c0_48 = arith.constant 0 : index
    %95 = vector.load %arg13[%c0_47, %c0_48] : memref<1x512xf32, #tpu.memory_space<vmem>>, vector<1x512xf32>
    %96 = vector.broadcast %95 : vector<1x512xf32> to vector<2x512xf32>
    %97 = arith.addf %94, %96 : vector<2x512xf32>
    %cst_49 = arith.constant 0.000000e+00 : f32
    %98 = vector.broadcast %cst_49 : f32 to vector<2x512xf32>
    %99 = arith.maximumf %97, %98 : vector<2x512xf32>
    %c0_50 = arith.constant 0 : index
    %c0_51 = arith.constant 0 : index
    %100 = vector.load %arg14[%c0_50, %c0_51] : memref<512x128xf32, #tpu.memory_space<vmem>>, vector<512x128xf32>
    %cst_52 = arith.constant dense<0.000000e+00> : vector<2x128xf32>
    %101 = tpu.matmul %99, %100, %cst_52 {dimension_numbers = #tpu.dot_dimension_numbers<[1], [0], [0], [1], [0, 0, 1, 1], [], []>} : vector<2x512xf32>, vector<512x128xf32>, vector<2x128xf32> -> vector<2x128xf32>
    %c0_53 = arith.constant 0 : index
    %c0_54 = arith.constant 0 : index
    %102 = vector.load %arg15[%c0_53, %c0_54] : memref<1x128xf32, #tpu.memory_space<vmem>>, vector<1x128xf32>
    %103 = vector.broadcast %102 : vector<1x128xf32> to vector<2x128xf32>
    %104 = arith.addf %101, %103 : vector<2x128xf32>
    %c0_55 = arith.constant 0 : index
    %c0_56 = arith.constant 0 : index
    %105 = vector.load %arg17[%c0_55, %c0_56] : memref<2x128xf32, #tpu.memory_space<vmem>>, vector<2x128xf32>
    tpu.vector_store %arg17[%c0_55, %c0_56], %104 {strides = array<i32>} : memref<2x128xf32, #tpu.memory_space<vmem>>, vector<2x128xf32>,
    return
  }
}

</mosaic_0001>

<llo_original>
// kernel: point_multi_grasp_net_forward.1
$region0: #{point_multi_grasp_net_forward.1}
  #allocation0 [shape = 'u32[]', space=smem, size = 0x4, offset = 0x4, fixed_abs, tag = 'smem constant byte address 0x4 - core index']
  #allocation1 [shape = 'u32[144,128]{1,0:T(1,128)}', space=vmem, size = 0x12000, scoped, tag = 'internal scratch']
  %s0 = inlined_call_operand.vmem [shape: f32[256,6], index: 0, kind: input, shape index: {}]
  %s1 = inlined_call_operand.hbm [shape: f32[2,3], index: 1, kind: input, shape index: {}]
  %s2 = inlined_call_operand.hbm [shape: f32[4,64], index: 2, kind: input, shape index: {}]
  %s3 = inlined_call_operand.hbm [shape: f32[1,64], index: 3, kind: input, shape index: {}]
  %s4 = inlined_call_operand.hbm [shape: f32[64,128], index: 4, kind: input, shape index: {}]
  %s5 = inlined_call_operand.hbm [shape: f32[1,128], index: 5, kind: input, shape index: {}]
  %s6 = inlined_call_operand.hbm [shape: f32[128,512], index: 6, kind: input, shape index: {}]
  %s7 = inlined_call_operand.hbm [shape: f32[1,512], index: 7, kind: input, shape index: {}]
  %s8 = inlined_call_operand.hbm [shape: f32[3,32], index: 8, kind: input, shape index: {}]
  %s9 = inlined_call_operand.hbm [shape: f32[1,32], index: 9, kind: input, shape index: {}]
  %s10 = inlined_call_operand.hbm [shape: f32[544,512], index: 10, kind: input, shape index: {}]
  %s11 = inlined_call_operand.hbm [shape: f32[1,512], index: 11, kind: input, shape index: {}]
  %s12 = inlined_call_operand.hbm [shape: f32[1,512], index: 12, kind: input, shape index: {}]
  %s13 = inlined_call_operand.hbm [shape: f32[1,512], index: 13, kind: input, shape index: {}]
  %s14 = inlined_call_operand.hbm [shape: f32[512,128], index: 14, kind: input, shape index: {}]
  %s15 = inlined_call_operand.hbm [shape: f32[1,128], index: 15, kind: input, shape index: {}]
  %s16 = inlined_call_operand.hbm [shape: f32[2,512], index: 16, kind: output, shape index: {0}]
  %s17 = inlined_call_operand.vmem [shape: f32[2,128], index: 17, kind: output, shape index: {1}]
  %18 = xla_tuple %s16, %s17
  %s19 = sld [smem:[#allocation0]]
  $region142: #{point_multi_grasp_net_forward.1} parent=0
    _
  %s21 = ssub.s32 1, %s19
  %s22 = scalar_select 0, %s21, %s19
  $region1: #{point_multi_grasp_net_forward.1} parent=0
    #allocation2 [shape = 'u8[1024]{0}', space=vmem, size = 0x400, scoped, tag = 'input window, operand 1, single buffered']
    #allocation3 [shape = 's32[1]{0}', space=sflag, size = 0x4, scoped, tag = 'scoped memory for point_multi_grasp_net_forward.1']
    #allocation4 [shape = 's32[1]{0}', space=sflag, size = 0x4, scoped, tag = 'scoped memory for point_multi_grasp_net_forward.1']
    #allocation5 [shape = 'u8[2048]{0}', space=vmem, size = 0x800, scoped, tag = 'input window, operand 2, single buffered']
    #allocation6 [shape = 's32[1]{0}', space=sflag, size = 0x4, scoped, tag = 'scoped memory for point_multi_grasp_net_forward.1']
    #allocation7 [shape = 'u8[512]{0}', space=vmem, size = 0x400, scoped, tag = 'input window, operand 3, single buffered']
    #allocation8 [shape = 'u8[32768]{0}', space=vmem, size = 0x8000, scoped, tag = 'input window, operand 4, single buffered']
    #allocation9 [shape = 's32[1]{0}', space=sflag, size = 0x4, scoped, tag = 'scoped memory for point_multi_grasp_net_forward.1']
    #allocation10 [shape = 'u8[512]{0}', space=vmem, size = 0x400, scoped, tag = 'input window, operand 5, single buffered']
    #allocation11 [shape = 'u8[262144]{0}', space=vmem, size = 0x40000, scoped, tag = 'input window, operand 6, single buffered']
    #allocation12 [shape = 's32[1]{0}', space=sflag, size = 0x4, scoped, tag = 'scoped memory for point_multi_grasp_net_forward.1']
    #allocation13 [shape = 'u8[2048]{0}', space=vmem, size = 0x800, scoped, tag = 'input window, operand 7, single buffered']
    #allocation14 [shape = 'u8[2048]{0}', space=vmem, size = 0x800, scoped, tag = 'input window, operand 8, single buffered']
    #allocation15 [shape = 's32[1]{0}', space=sflag, size = 0x4, scoped, tag = 'scoped memory for point_multi_grasp_net_forward.1']
    #allocation16 [shape = 'u8[512]{0}', space=vmem, size = 0x400, scoped, tag = 'input window, operand 9, single buffered']
    #allocation17 [shape = 'u8[1114112]{0}', space=vmem, size = 0x110000, scoped, tag = 'input window, operand 10, single buffered']
    #allocation18 [shape = 's32[1]{0}', space=sflag, size = 0x4, scoped, tag = 'scoped memory for point_multi_grasp_net_forward.1']
    #allocation19 [shape = 'u8[2048]{0}', space=vmem, size = 0x800, scoped, tag = 'input window, operand 11, single buffered']
    #allocation20 [shape = 'u8[2048]{0}', space=vmem, size = 0x800, scoped, tag = 'input window, operand 12, single buffered']
    #allocation21 [shape = 's32[1]{0}', space=sflag, size = 0x4, scoped, tag = 'scoped memory for point_multi_grasp_net_forward.1']
    #allocation22 [shape = 'u8[2048]{0}', space=vmem, size = 0x800, scoped, tag = 'input window, operand 13, single buffered']
    #allocation23 [shape = 'u8[262144]{0}', space=vmem, size = 0x40000, scoped, tag = 'input window, operand 14, single buffered']
    #allocation24 [shape = 's32[1]{0}', space=sflag, size = 0x4, scoped, tag = 'scoped memory for point_multi_grasp_net_forward.1']
    #allocation25 [shape = 'u8[512]{0}', space=vmem, size = 0x400, scoped, tag = 'input window, operand 15, single buffered']
    #allocation26 [shape = 'u8[4096]{0}', space=vmem, size = 0x1000, scoped, tag = 'output window, operand 0, single buffered']
    %23 = vsyncpa [#allocation3], 0
    %24 = vsyncpa [#allocation6], 0
    %25 = vsyncpa [#allocation9], 0
    %26 = vsyncpa [#allocation12], 0
    %27 = vsyncpa [#allocation15], 0
    %28 = vsyncpa [#allocation18], 0
    %29 = vsyncpa [#allocation21], 0
    %30 = vsyncpa [#allocation24], 0
    %31 = vsyncpa [#allocation4], 0
    // Predicated region
    $region2: #{point_multi_grasp_net_forward.1} parent=1 // pred_check
      _
    $region3: #{point_multi_grasp_net_forward.1} parent=1 // pred_check_branch
      %33 = sbr.rel (0) target = $region5
    $region4: #{point_multi_grasp_net_forward.1} parent=1 // pred_region
      _
    $region5: #{point_multi_grasp_net_forward.1} parent=1 // pred_fallthru
      _
    // Predicated region
    $region6: #{point_multi_grasp_net_forward.1} parent=1 // pred_check
      _
    $region7: #{point_multi_grasp_net_forward.1} parent=1 // pred_check_branch
      %35 = sbr.rel (0) target = $region9
    $region8: #{point_multi_grasp_net_forward.1} parent=1 // pred_region
      %s37 = ssub.s32 32, 32
      %38 = vsyncadd [#allocation3], %s37
      %s40 = sshll.u32 [#allocation2], 4
      %s41 = int_to_ptr.vmem [resolvable:$true] %s40
      %43 = dma.hbm_to_vmem [thread:$0]  %s1, 32, %s41, [#allocation3]
    $region9: #{point_multi_grasp_net_forward.1} parent=1 // pred_fallthru
      _
    // Predicated region
    $region10: #{point_multi_grasp_net_forward.1} parent=1 // pred_check
      _
    $region11: #{point_multi_grasp_net_forward.1} parent=1 // pred_check_branch
      %45 = sbr.rel (0) target = $region13
    $region12: #{point_multi_grasp_net_forward.1} parent=1 // pred_region
      %s47 = ssub.s32 64, 64
      %48 = vsyncadd [#allocation6], %s47
      %s50 = sshll.u32 [#allocation5], 4
      %s51 = int_to_ptr.vmem [resolvable:$true] %s50
      %53 = dma.hbm_to_vmem [thread:$0]  %s2, 64, %s51, [#allocation6]
    $region13: #{point_multi_grasp_net_forward.1} parent=1 // pred_fallthru
      _
    // Predicated region
    $region14: #{point_multi_grasp_net_forward.1} parent=1 // pred_check
      _
    $region15: #{point_multi_grasp_net_forward.1} parent=1 // pred_check_branch
      %55 = sbr.rel (0) target = $region17
    $region16: #{point_multi_grasp_net_forward.1} parent=1 // pred_region
      %s57 = ssub.s32 16, 16
      %58 = vsyncadd [#allocation6], %s57
      %s60 = sshll.u32 [#allocation7], 4
      %s61 = int_to_ptr.vmem [resolvable:$true] %s60
      %63 = dma.hbm_to_vmem [thread:$0]  %s3, 16, %s61, [#allocation6]
    $region17: #{point_multi_grasp_net_forward.1} parent=1 // pred_fallthru
      _
    // Predicated region
    $region18: #{point_multi_grasp_net_forward.1} parent=1 // pred_check
      _
    $region19: #{point_multi_grasp_net_forward.1} parent=1 // pred_check_branch
      %65 = sbr.rel (0) target = $region21
    $region20: #{point_multi_grasp_net_forward.1} parent=1 // pred_region
      %s67 = ssub.s32 1024, 1024
      %68 = vsyncadd [#allocation9], %s67
      %s69 = sshll.u32 [#allocation8], 4
      %s70 = int_to_ptr.vmem [resolvable:$true] %s69
      %75 = dma.hbm_to_vmem [thread:$0]  %s4, 1024, %s70, [#allocation9], 128, 128, 8
    $region21: #{point_multi_grasp_net_forward.1} parent=1 // pred_fallthru
      _
    // Predicated region
    $region22: #{point_multi_grasp_net_forward.1} parent=1 // pred_check
      _
    $region23: #{point_multi_grasp_net_forward.1} parent=1 // pred_check_branch
      %77 = sbr.rel (0) target = $region25
    $region24: #{point_multi_grasp_net_forward.1} parent=1 // pred_region
      %s79 = ssub.s32 16, 16
      %80 = vsyncadd [#allocation9], %s79
      %s82 = sshll.u32 [#allocation10], 4
      %s83 = int_to_ptr.vmem [resolvable:$true] %s82
      %85 = dma.hbm_to_vmem [thread:$0]  %s5, 16, %s83, [#allocation9]
    $region25: #{point_multi_grasp_net_forward.1} parent=1 // pred_fallthru
      _
    // Predicated region
    $region26: #{point_multi_grasp_net_forward.1} parent=1 // pred_check
      _
    $region27: #{point_multi_grasp_net_forward.1} parent=1 // pred_check_branch
      %87 = sbr.rel (0) target = $region29
    $region28: #{point_multi_grasp_net_forward.1} parent=1 // pred_region
      %s89 = ssub.s32 8192, 8192
      %90 = vsyncadd [#allocation12], %s89
      %s91 = sshll.u32 [#allocation11], 4
      %s92 = int_to_ptr.vmem [resolvable:$true] %s91
      %97 = dma.hbm_to_vmem [thread:$0]  %s6, 8192, %s92, [#allocation12], 512, 512, 32
    $region29: #{point_multi_grasp_net_forward.1} parent=1 // pred_fallthru
      _
    // Predicated region
    $region30: #{point_multi_grasp_net_forward.1} parent=1 // pred_check
      _
    $region31: #{point_multi_grasp_net_forward.1} parent=1 // pred_check_branch
      %99 = sbr.rel (0) target = $region33
    $region32: #{point_multi_grasp_net_forward.1} parent=1 // pred_region
      %s101 = ssub.s32 64, 64
      %102 = vsyncadd [#allocation12], %s101
      %s104 = sshll.u32 [#allocation13], 4
      %s105 = int_to_ptr.vmem [resolvable:$true] %s104
      %107 = dma.hbm_to_vmem [thread:$0]  %s7, 64, %s105, [#allocation12]
    $region33: #{point_multi_grasp_net_forward.1} parent=1 // pred_fallthru
      _
    // Predicated region
    $region34: #{point_multi_grasp_net_forward.1} parent=1 // pred_check
      _
    $region35: #{point_multi_grasp_net_forward.1} parent=1 // pred_check_branch
      %109 = sbr.rel (0) target = $region37
    $region36: #{point_multi_grasp_net_forward.1} parent=1 // pred_region
      %s111 = ssub.s32 64, 64
      %112 = vsyncadd [#allocation15], %s111
      %s114 = sshll.u32 [#allocation14], 4
      %s115 = int_to_ptr.vmem [resolvable:$true] %s114
      %117 = dma.hbm_to_vmem [thread:$0]  %s8, 64, %s115, [#allocation15]
    $region37: #{point_multi_grasp_net_forward.1} parent=1 // pred_fallthru
      _
    // Predicated region
    $region38: #{point_multi_grasp_net_forward.1} parent=1 // pred_check
      _
    $region39: #{point_multi_grasp_net_forward.1} parent=1 // pred_check_branch
      %119 = sbr.rel (0) target = $region41
    $region40: #{point_multi_grasp_net_forward.1} parent=1 // pred_region
      %s121 = ssub.s32 16, 16
      %122 = vsyncadd [#allocation15], %s121
      %s124 = sshll.u32 [#allocation16], 4
      %s125 = int_to_ptr.vmem [resolvable:$true] %s124
      %127 = dma.hbm_to_vmem [thread:$0]  %s9, 16, %s125, [#allocation15]
    $region41: #{point_multi_grasp_net_forward.1} parent=1 // pred_fallthru
      _
    // Predicated region
    $region42: #{point_multi_grasp_net_forward.1} parent=1 // pred_check
      _
    $region43: #{point_multi_grasp_net_forward.1} parent=1 // pred_check_branch
      %129 = sbr.rel (0) target = $region45
    $region44: #{point_multi_grasp_net_forward.1} parent=1 // pred_region
      %s131 = ssub.s32 34816, 34816
      %132 = vsyncadd [#allocation18], %s131
      %s133 = sshll.u32 [#allocation17], 4
      %s134 = int_to_ptr.vmem [resolvable:$true] %s133
      %139 = dma.hbm_to_vmem [thread:$0]  %s10, 34816, %s134, [#allocation18], 512, 512, 32
    $region45: #{point_multi_grasp_net_forward.1} parent=1 // pred_fallthru
      _
    // Predicated region
    $region46: #{point_multi_grasp_net_forward.1} parent=1 // pred_check
      _
    $region47: #{point_multi_grasp_net_forward.1} parent=1 // pred_check_branch
      %141 = sbr.rel (0) target = $region49
    $region48: #{point_multi_grasp_net_forward.1} parent=1 // pred_region
      %s143 = ssub.s32 64, 64
      %144 = vsyncadd [#allocation18], %s143
      %s146 = sshll.u32 [#allocation19], 4
      %s147 = int_to_ptr.vmem [resolvable:$true] %s146
      %149 = dma.hbm_to_vmem [thread:$0]  %s11, 64, %s147, [#allocation18]
    $region49: #{point_multi_grasp_net_forward.1} parent=1 // pred_fallthru
      _
    // Predicated region
    $region50: #{point_multi_grasp_net_forward.1} parent=1 // pred_check
      _
    $region51: #{point_multi_grasp_net_forward.1} parent=1 // pred_check_branch
      %151 = sbr.rel (0) target = $region53
    $region52: #{point_multi_grasp_net_forward.1} parent=1 // pred_region
      %s153 = ssub.s32 64, 64
      %154 = vsyncadd [#allocation21], %s153
      %s156 = sshll.u32 [#allocation20], 4
      %s157 = int_to_ptr.vmem [resolvable:$true] %s156
      %159 = dma.hbm_to_vmem [thread:$0]  %s12, 64, %s157, [#allocation21]
    $region53: #{point_multi_grasp_net_forward.1} parent=1 // pred_fallthru
      _
    // Predicated region
    $region54: #{point_multi_grasp_net_forward.1} parent=1 // pred_check
      _
    $region55: #{point_multi_grasp_net_forward.1} parent=1 // pred_check_branch
      %161 = sbr.rel (0) target = $region57
    $region56: #{point_multi_grasp_net_forward.1} parent=1 // pred_region
      %s163 = ssub.s32 64, 64
      %164 = vsyncadd [#allocation21], %s163
      %s166 = sshll.u32 [#allocation22], 4
      %s167 = int_to_ptr.vmem [resolvable:$true] %s166
      %169 = dma.hbm_to_vmem [thread:$0]  %s13, 64, %s167, [#allocation21]
    $region57: #{point_multi_grasp_net_forward.1} parent=1 // pred_fallthru
      _
    // Predicated region
    $region58: #{point_multi_grasp_net_forward.1} parent=1 // pred_check
      _
    $region59: #{point_multi_grasp_net_forward.1} parent=1 // pred_check_branch
      %171 = sbr.rel (0) target = $region61
    $region60: #{point_multi_grasp_net_forward.1} parent=1 // pred_region
      %s173 = ssub.s32 8192, 8192
      %174 = vsyncadd [#allocation24], %s173
      %s175 = sshll.u32 [#allocation23], 4
      %s176 = int_to_ptr.vmem [resolvable:$true] %s175
      %181 = dma.hbm_to_vmem [thread:$0]  %s14, 8192, %s176, [#allocation24], 128, 128, 8
    $region61: #{point_multi_grasp_net_forward.1} parent=1 // pred_fallthru
      _
    // Predicated region
    $region62: #{point_multi_grasp_net_forward.1} parent=1 // pred_check
      _
    $region63: #{point_multi_grasp_net_forward.1} parent=1 // pred_check_branch
      %183 = sbr.rel (0) target = $region65
    $region64: #{point_multi_grasp_net_forward.1} parent=1 // pred_region
      %s185 = ssub.s32 16, 16
      %186 = vsyncadd [#allocation24], %s185
      %s188 = sshll.u32 [#allocation25], 4
      %s189 = int_to_ptr.vmem [resolvable:$true] %s188
      %191 = dma.hbm_to_vmem [thread:$0]  %s15, 16, %s189, [#allocation24]
    $region65: #{point_multi_grasp_net_forward.1} parent=1 // pred_fallthru
      _
    // Predicated region
    $region66: #{point_multi_grasp_net_forward.1} parent=1 // pred_check
      _
    $region67: #{point_multi_grasp_net_forward.1} parent=1 // pred_check_branch
      %193 = sbr.rel (0) target = $region69
    $region68: #{point_multi_grasp_net_forward.1} parent=1 // pred_region
      %194 = dma.done [#allocation3], 32
    $region69: #{point_multi_grasp_net_forward.1} parent=1 // pred_fallthru
      _
    // Predicated region
    $region70: #{point_multi_grasp_net_forward.1} parent=1 // pred_check
      _
    $region71: #{point_multi_grasp_net_forward.1} parent=1 // pred_check_branch
      %196 = sbr.rel (0) target = $region73
    $region72: #{point_multi_grasp_net_forward.1} parent=1 // pred_region
      %197 = dma.done [#allocation6], 64
    $region73: #{point_multi_grasp_net_forward.1} parent=1 // pred_fallthru
      _
    // Predicated region
    $region74: #{point_multi_grasp_net_forward.1} parent=1 // pred_check
      _
    $region75: #{point_multi_grasp_net_forward.1} parent=1 // pred_check_branch
      %199 = sbr.rel (0) target = $region77
    $region76: #{point_multi_grasp_net_forward.1} parent=1 // pred_region
      %200 = dma.done [#allocation6], 16
    $region77: #{point_multi_grasp_net_forward.1} parent=1 // pred_fallthru
      _
    // Predicated region
    $region78: #{point_multi_grasp_net_forward.1} parent=1 // pred_check
      _
    $region79: #{point_multi_grasp_net_forward.1} parent=1 // pred_check_branch
      %202 = sbr.rel (0) target = $region81
    $region80: #{point_multi_grasp_net_forward.1} parent=1 // pred_region
      %203 = dma.done [#allocation9], 1024
    $region81: #{point_multi_grasp_net_forward.1} parent=1 // pred_fallthru
      _
    // Predicated region
    $region82: #{point_multi_grasp_net_forward.1} parent=1 // pred_check
      _
    $region83: #{point_multi_grasp_net_forward.1} parent=1 // pred_check_branch
      %205 = sbr.rel (0) target = $region85
    $region84: #{point_multi_grasp_net_forward.1} parent=1 // pred_region
      %206 = dma.done [#allocation9], 16
    $region85: #{point_multi_grasp_net_forward.1} parent=1 // pred_fallthru
      _
    // Predicated region
    $region86: #{point_multi_grasp_net_forward.1} parent=1 // pred_check
      _
    $region87: #{point_multi_grasp_net_forward.1} parent=1 // pred_check_branch
      %208 = sbr.rel (0) target = $region89
    $region88: #{point_multi_grasp_net_forward.1} parent=1 // pred_region
      %209 = dma.done [#allocation12], 8192
    $region89: #{point_multi_grasp_net_forward.1} parent=1 // pred_fallthru
      _
    // Predicated region
    $region90: #{point_multi_grasp_net_forward.1} parent=1 // pred_check
      _
    $region91: #{point_multi_grasp_net_forward.1} parent=1 // pred_check_branch
      %211 = sbr.rel (0) target = $region93
    $region92: #{point_multi_grasp_net_forward.1} parent=1 // pred_region
      %212 = dma.done [#allocation12], 64
    $region93: #{point_multi_grasp_net_forward.1} parent=1 // pred_fallthru
      _
    // Predicated region
    $region94: #{point_multi_grasp_net_forward.1} parent=1 // pred_check
      _
    $region95: #{point_multi_grasp_net_forward.1} parent=1 // pred_check_branch
      %214 = sbr.rel (0) target = $region97
    $region96: #{point_multi_grasp_net_forward.1} parent=1 // pred_region
      %215 = dma.done [#allocation15], 64
    $region97: #{point_multi_grasp_net_forward.1} parent=1 // pred_fallthru
      _
    // Predicated region
    $region98: #{point_multi_grasp_net_forward.1} parent=1 // pred_check
      _
    $region99: #{point_multi_grasp_net_forward.1} parent=1 // pred_check_branch
      %217 = sbr.rel (0) target = $region101
    $region100: #{point_multi_grasp_net_forward.1} parent=1 // pred_region
      %218 = dma.done [#allocation15], 16
    $region101: #{point_multi_grasp_net_forward.1} parent=1 // pred_fallthru
      _
    // Predicated region
    $region102: #{point_multi_grasp_net_forward.1} parent=1 // pred_check
      _
    $region103: #{point_multi_grasp_net_forward.1} parent=1 // pred_check_branch
      %220 = sbr.rel (0) target = $region105
    $region104: #{point_multi_grasp_net_forward.1} parent=1 // pred_region
      %221 = dma.done [#allocation18], 34816
    $region105: #{point_multi_grasp_net_forward.1} parent=1 // pred_fallthru
      _
    // Predicated region
    $region106: #{point_multi_grasp_net_forward.1} parent=1 // pred_check
      _
    $region107: #{point_multi_grasp_net_forward.1} parent=1 // pred_check_branch
      %223 = sbr.rel (0) target = $region109
    $region108: #{point_multi_grasp_net_forward.1} parent=1 // pred_region
      %224 = dma.done [#allocation18], 64
    $region109: #{point_multi_grasp_net_forward.1} parent=1 // pred_fallthru
      _
    // Predicated region
    $region110: #{point_multi_grasp_net_forward.1} parent=1 // pred_check
      _
    $region111: #{point_multi_grasp_net_forward.1} parent=1 // pred_check_branch
      %226 = sbr.rel (0) target = $region113
    $region112: #{point_multi_grasp_net_forward.1} parent=1 // pred_region
      %227 = dma.done [#allocation21], 64
    $region113: #{point_multi_grasp_net_forward.1} parent=1 // pred_fallthru
      _
    // Predicated region
    $region114: #{point_multi_grasp_net_forward.1} parent=1 // pred_check
      _
    $region115: #{point_multi_grasp_net_forward.1} parent=1 // pred_check_branch
      %229 = sbr.rel (0) target = $region117
    $region116: #{point_multi_grasp_net_forward.1} parent=1 // pred_region
      %230 = dma.done [#allocation21], 64
    $region117: #{point_multi_grasp_net_forward.1} parent=1 // pred_fallthru
      _
    // Predicated region
    $region118: #{point_multi_grasp_net_forward.1} parent=1 // pred_check
      _
    $region119: #{point_multi_grasp_net_forward.1} parent=1 // pred_check_branch
      %232 = sbr.rel (0) target = $region121
    $region120: #{point_multi_grasp_net_forward.1} parent=1 // pred_region
      %233 = dma.done [#allocation24], 8192
    $region121: #{point_multi_grasp_net_forward.1} parent=1 // pred_fallthru
      _
    // Predicated region
    $region122: #{point_multi_grasp_net_forward.1} parent=1 // pred_check
      _
    $region123: #{point_multi_grasp_net_forward.1} parent=1 // pred_check_branch
      %235 = sbr.rel (0) target = $region125
    $region124: #{point_multi_grasp_net_forward.1} parent=1 // pred_region
      %236 = dma.done [#allocation24], 16
    $region125: #{point_multi_grasp_net_forward.1} parent=1 // pred_fallthru
      _
    %v237 = vld [vmem:[%s0] sm:$0xff]
    %v238 = vld [vmem:[%s0 + $0x8] sm:$0xff]
    %v239 = vld [vmem:[%s0 + $0x10] sm:$0xff]
    %v240 = vld [vmem:[%s0 + $0x18] sm:$0xff]
    %v241 = vld [vmem:[%s0 + $0x20] sm:$0xff]
    %v242 = vld [vmem:[%s0 + $0x28] sm:$0xff]
    %v243 = vld [vmem:[%s0 + $0x30] sm:$0xff]
    %v244 = vld [vmem:[%s0 + $0x38] sm:$0xff]
    %v245 = vld [vmem:[%s0 + $0x40] sm:$0xff]
    %v246 = vld [vmem:[%s0 + $0x48] sm:$0xff]
    %v247 = vld [vmem:[%s0 + $0x50] sm:$0xff]
    %v248 = vld [vmem:[%s0 + $0x58] sm:$0xff]
    %v249 = vld [vmem:[%s0 + $0x60] sm:$0xff]
    %v250 = vld [vmem:[%s0 + $0x68] sm:$0xff]
    %v251 = vld [vmem:[%s0 + $0x70] sm:$0xff]
    %v252 = vld [vmem:[%s0 + $0x78] sm:$0xff]
    %v253 = vld [vmem:[%s0 + $0x80] sm:$0xff]
    %v254 = vld [vmem:[%s0 + $0x88] sm:$0xff]
    %v255 = vld [vmem:[%s0 + $0x90] sm:$0xff]
    %v256 = vld [vmem:[%s0 + $0x98] sm:$0xff]
    %v257 = vld [vmem:[%s0 + $0xa0] sm:$0xff]
    %v258 = vld [vmem:[%s0 + $0xa8] sm:$0xff]
    %v259 = vld [vmem:[%s0 + $0xb0] sm:$0xff]
    %v260 = vld [vmem:[%s0 + $0xb8] sm:$0xff]
    %v261 = vld [vmem:[%s0 + $0xc0] sm:$0xff]
    %v262 = vld [vmem:[%s0 + $0xc8] sm:$0xff]
    %v263 = vld [vmem:[%s0 + $0xd0] sm:$0xff]
    %v264 = vld [vmem:[%s0 + $0xd8] sm:$0xff]
    %v265 = vld [vmem:[%s0 + $0xe0] sm:$0xff]
    %v266 = vld [vmem:[%s0 + $0xe8] sm:$0xff]
    %v267 = vld [vmem:[%s0 + $0xf0] sm:$0xff]
    %v268 = vld [vmem:[%s0 + $0xf8] sm:$0xff]
    %vm269 = vcmask 48152
    %v270 = vsel %vm269, %v237, -inf
    %271 = vmax.xlane.f32.xlu0 %v270
    %v272 = vpop.xlane.xlu0 %271
    %v273 = vsel %vm269, %v238, -inf
    %274 = vmax.xlane.f32.xlu0 %v273
    %v275 = vpop.xlane.xlu0 %274
    %v276 = vsel %vm269, %v239, -inf
    %277 = vmax.xlane.f32.xlu0 %v276
    %v278 = vpop.xlane.xlu0 %277
    %v279 = vsel %vm269, %v240, -inf
    %280 = vmax.xlane.f32.xlu0 %v279
    %v281 = vpop.xlane.xlu0 %280
    %v282 = vsel %vm269, %v241, -inf
    %283 = vmax.xlane.f32.xlu0 %v282
    %v284 = vpop.xlane.xlu0 %283
    %v285 = vsel %vm269, %v242, -inf
    %286 = vmax.xlane.f32.xlu0 %v285
    %v287 = vpop.xlane.xlu0 %286
    %v288 = vsel %vm269, %v243, -inf
    %289 = vmax.xlane.f32.xlu0 %v288
    %v290 = vpop.xlane.xlu0 %289
    %v291 = vsel %vm269, %v244, -inf
    %292 = vmax.xlane.f32.xlu0 %v291
    %v293 = vpop.xlane.xlu0 %292
    %v294 = vsel %vm269, %v245, -inf
    %295 = vmax.xlane.f32.xlu0 %v294
    %v296 = vpop.xlane.xlu0 %295
    %v297 = vsel %vm269, %v246, -inf
    %298 = vmax.xlane.f32.xlu0 %v297
    %v299 = vpop.xlane.xlu0 %298
    %v300 = vsel %vm269, %v247, -inf
    %301 = vmax.xlane.f32.xlu0 %v300
    %v302 = vpop.xlane.xlu0 %301
    %v303 = vsel %vm269, %v248, -inf
    %304 = vmax.xlane.f32.xlu0 %v303
    %v305 = vpop.xlane.xlu0 %304
    %v306 = vsel %vm269, %v249, -inf
    %307 = vmax.xlane.f32.xlu0 %v306
    %v308 = vpop.xlane.xlu0 %307
    %v309 = vsel %vm269, %v250, -inf
    %310 = vmax.xlane.f32.xlu0 %v309
    %v311 = vpop.xlane.xlu0 %310
    %v312 = vsel %vm269, %v251, -inf
    %313 = vmax.xlane.f32.xlu0 %v312
    %v314 = vpop.xlane.xlu0 %313
    %v315 = vsel %vm269, %v252, -inf
    %316 = vmax.xlane.f32.xlu0 %v315
    %v317 = vpop.xlane.xlu0 %316
    %v318 = vsel %vm269, %v253, -inf
    %319 = vmax.xlane.f32.xlu0 %v318
    %v320 = vpop.xlane.xlu0 %319
    %v321 = vsel %vm269, %v254, -inf
    %322 = vmax.xlane.f32.xlu0 %v321
    %v323 = vpop.xlane.xlu0 %322
    %v324 = vsel %vm269, %v255, -inf
    %325 = vmax.xlane.f32.xlu0 %v324
    %v326 = vpop.xlane.xlu0 %325
    %v327 = vsel %vm269, %v256, -inf
    %328 = vmax.xlane.f32.xlu0 %v327
    %v329 = vpop.xlane.xlu0 %328
    %v330 = vsel %vm269, %v257, -inf
    %331 = vmax.xlane.f32.xlu0 %v330
    %v332 = vpop.xlane.xlu0 %331
    %v333 = vsel %vm269, %v258, -inf
    %334 = vmax.xlane.f32.xlu0 %v333
    %v335 = vpop.xlane.xlu0 %334
    %v336 = vsel %vm269, %v259, -inf
    %337 = vmax.xlane.f32.xlu0 %v336
    %v338 = vpop.xlane.xlu0 %337
    %v339 = vsel %vm269, %v260, -inf
    %340 = vmax.xlane.f32.xlu0 %v339
    %v341 = vpop.xlane.xlu0 %340
    %v342 = vsel %vm269, %v261, -inf
    %343 = vmax.xlane.f32.xlu0 %v342
    %v344 = vpop.xlane.xlu0 %343
    %v345 = vsel %vm269, %v262, -inf
    %346 = vmax.xlane.f32.xlu0 %v345
    %v347 = vpop.xlane.xlu0 %346
    %v348 = vsel %vm269, %v263, -inf
    %349 = vmax.xlane.f32.xlu0 %v348
    %v350 = vpop.xlane.xlu0 %349
    %v351 = vsel %vm269, %v264, -inf
    %352 = vmax.xlane.f32.xlu0 %v351
    %v353 = vpop.xlane.xlu0 %352
    %v354 = vsel %vm269, %v265, -inf
    %355 = vmax.xlane.f32.xlu0 %v354
    %v356 = vpop.xlane.xlu0 %355
    %v357 = vsel %vm269, %v266, -inf
    %358 = vmax.xlane.f32.xlu0 %v357
    %v359 = vpop.xlane.xlu0 %358
    %v360 = vsel %vm269, %v267, -inf
    %361 = vmax.xlane.f32.xlu0 %v360
    %v362 = vpop.xlane.xlu0 %361
    %v363 = vsel %vm269, %v268, -inf
    %364 = vmax.xlane.f32.xlu0 %v363
    %v365 = vpop.xlane.xlu0 %364
    %v366 = vld [vmem:[#allocation5] sm:$0x7]
    %v367 = vld [vmem:[#allocation5 + $0x3] sm:$0x1]
    %v368 = vlaneseq
    %v369 = vshrl.u32 %v368, 7
    %v370 = vsub.s32 0, %v369
    %v371 = vrot.slane %v367, %v370
    %v372 = vmul.f32 %v272, %v371
    %v373 = vmul.f32 %v275, %v371
    %v374 = vmul.f32 %v278, %v371
    %v375 = vmul.f32 %v281, %v371
    %v376 = vmul.f32 %v284, %v371
    %v377 = vmul.f32 %v287, %v371
    %v378 = vmul.f32 %v290, %v371
    %v379 = vmul.f32 %v293, %v371
    %v380 = vmul.f32 %v296, %v371
    %v381 = vmul.f32 %v299, %v371
    %v382 = vmul.f32 %v302, %v371
    %v383 = vmul.f32 %v305, %v371
    %v384 = vmul.f32 %v308, %v371
    %v385 = vmul.f32 %v311, %v371
    %v386 = vmul.f32 %v314, %v371
    %v387 = vmul.f32 %v317, %v371
    %v388 = vmul.f32 %v320, %v371
    %v389 = vmul.f32 %v323, %v371
    %v390 = vmul.f32 %v326, %v371
    %v391 = vmul.f32 %v329, %v371
    %v392 = vmul.f32 %v332, %v371
    %v393 = vmul.f32 %v335, %v371
    %v394 = vmul.f32 %v338, %v371
    %v395 = vmul.f32 %v341, %v371
    %v396 = vmul.f32 %v344, %v371
    %v397 = vmul.f32 %v347, %v371
    %v398 = vmul.f32 %v350, %v371
    %v399 = vmul.f32 %v353, %v371
    %v400 = vmul.f32 %v356, %v371
    %v401 = vmul.f32 %v359, %v371
    %v402 = vmul.f32 %v362, %v371
    %v403 = vmul.f32 %v365, %v371
    %vm404 = vcmask 23552
    %v406 = vsel %vm404, %v237, 0
    %v409 = vsel %vm404, %v238, 0
    %v412 = vsel %vm404, %v239, 0
    %v415 = vsel %vm404, %v240, 0
    %v418 = vsel %vm404, %v241, 0
    %v421 = vsel %vm404, %v242, 0
    %v424 = vsel %vm404, %v243, 0
    %v427 = vsel %vm404, %v244, 0
    %v430 = vsel %vm404, %v245, 0
    %v433 = vsel %vm404, %v246, 0
    %v436 = vsel %vm404, %v247, 0
    %v439 = vsel %vm404, %v248, 0
    %v442 = vsel %vm404, %v249, 0
    %v445 = vsel %vm404, %v250, 0
    %v448 = vsel %vm404, %v251, 0
    %v451 = vsel %vm404, %v252, 0
    %v454 = vsel %vm404, %v253, 0
    %v457 = vsel %vm404, %v254, 0
    %v460 = vsel %vm404, %v255, 0
    %v463 = vsel %vm404, %v256, 0
    %v466 = vsel %vm404, %v257, 0
    %v469 = vsel %vm404, %v258, 0
    %v472 = vsel %vm404, %v259, 0
    %v475 = vsel %vm404, %v260, 0
    %v478 = vsel %vm404, %v261, 0
    %v481 = vsel %vm404, %v262, 0
    %v484 = vsel %vm404, %v263, 0
    %v487 = vsel %vm404, %v264, 0
    %v490 = vsel %vm404, %v265, 0
    %v493 = vsel %vm404, %v266, 0
    %v496 = vsel %vm404, %v267, 0
    %v499 = vsel %vm404, %v268, 0
    %vm501 = vcmask 1042432
    %v503 = vsel %vm501, %v366, 0
    %505 = vmatprep.subr.mxu0 0.0
    %506 = vmatpush1.msra.mxu0 %v503
    %507 = vmatprep.subr.mxu0 0.0
    %508 = vmatpush1.msra.mxu0 0.0
    %509 = vmatprep.subr.mxu0 0.0
    %510 = vmatpush1.msra.mxu0 0.0
    %511 = vmatprep.subr.mxu0 0.0
    %512 = vmatpush1.msra.mxu0 0.0
    %513 = vmatprep.subr.mxu0 0.0
    %514 = vmatpush1.msra.mxu0 0.0
    %515 = vmatprep.subr.mxu0 0.0
    %516 = vmatpush1.msra.mxu0 0.0
    %517 = vmatprep.subr.mxu0 0.0
    %518 = vmatpush1.msra.mxu0 0.0
    %519 = vmatprep.subr.mxu0 0.0
    %520 = vmatpush1.msra.mxu0 0.0
    %521 = vmatprep.subr.mxu0 0.0
    %522 = vmatpush1.msra.mxu0 0.0
    %523 = vmatprep.subr.mxu0 0.0
    %524 = vmatpush1.msra.mxu0 0.0
    %525 = vmatprep.subr.mxu0 0.0
    %526 = vmatpush1.msra.mxu0 0.0
    %527 = vmatprep.subr.mxu0 0.0
    %528 = vmatpush1.msra.mxu0 0.0
    %529 = vmatprep.subr.mxu0 0.0
    %530 = vmatpush1.msra.mxu0 0.0
    %531 = vmatprep.subr.mxu0 0.0
    %532 = vmatpush1.msra.mxu0 0.0
    %533 = vmatprep.subr.mxu0 0.0
    %534 = vmatpush1.msra.mxu0 0.0
    %535 = vmatprep.subr.mxu0 0.0
    %536 = vmatpush1.msra.mxu0 0.0
    %537 = vmatprep.subr.mxu0 0.0
    %538 = vmatpush1.msra.mxu0 0.0
    %539 = vmatprep.subr.mxu0 0.0
    %540 = vmatpush1.msra.mxu0 0.0
    %541 = vmatprep.subr.mxu0 0.0
    %542 = vmatpush1.msra.mxu0 0.0
    %543 = vmatprep.subr.mxu0 0.0
    %544 = vmatpush1.msra.mxu0 0.0
    %545 = vmatprep.subr.mxu0 0.0
    %546 = vmatpush1.msra.mxu0 0.0
    %547 = vmatprep.subr.mxu0 0.0
    %548 = vmatpush1.msra.mxu0 0.0
    %549 = vmatprep.subr.mxu0 0.0
    %550 = vmatpush1.msra.mxu0 0.0
    %551 = vmatprep.subr.mxu0 0.0
    %552 = vmatpush1.msra.mxu0 0.0
    %553 = vmatprep.subr.mxu0 0.0
    %554 = vmatpush1.msra.mxu0 0.0
    %555 = vmatprep.subr.mxu0 0.0
    %556 = vmatpush1.msra.mxu0 0.0
    %557 = vmatprep.subr.mxu0 0.0
    %558 = vmatpush1.msra.mxu0 0.0
    %559 = vmatprep.subr.mxu0 0.0
    %560 = vmatpush1.msra.mxu0 0.0
    %561 = vmatprep.subr.mxu0 0.0
    %562 = vmatpush1.msra.mxu0 0.0
    %563 = vmatprep.subr.mxu0 0.0
    %564 = vmatpush1.msra.mxu0 0.0
    %565 = vmatprep.subr.mxu0 0.0
    %566 = vmatpush1.msra.mxu0 0.0
    %567 = vmatprep.subr.mxu0 0.0
    %568 = vmatpush1.msra.mxu0 0.0
    %569 = vmatprep.mubr.f32.mxu0 0.0
    %570 = vmatmul.mubr.f32.gmra.mrb[0].mxu0 %v406
    %v571 = vpop.f32.mrb[0].mxu0
    %v572 = vadd.f32 %v372, %v571
    %v573 = vpop.f32.mrb[0].mxu0
    %574 = vmatprep.mubr.f32.mxu0 0.0
    %575 = vmatmul.mubr.f32.gmra.mrb[0].mxu0 %v409
    %v576 = vpop.f32.mrb[0].mxu0
    %v577 = vadd.f32 %v373, %v576
    %v578 = vpop.f32.mrb[0].mxu0
    %579 = vmatprep.mubr.f32.mxu0 0.0
    %580 = vmatmul.mubr.f32.gmra.mrb[0].mxu0 %v412
    %v581 = vpop.f32.mrb[0].mxu0
    %v582 = vadd.f32 %v374, %v581
    %v583 = vpop.f32.mrb[0].mxu0
    %584 = vmatprep.mubr.f32.mxu0 0.0
    %585 = vmatmul.mubr.f32.gmra.mrb[0].mxu0 %v415
    %v586 = vpop.f32.mrb[0].mxu0
    %v587 = vadd.f32 %v375, %v586
    %v588 = vpop.f32.mrb[0].mxu0
    %589 = vmatprep.mubr.f32.mxu0 0.0
    %590 = vmatmul.mubr.f32.gmra.mrb[0].mxu0 %v418
    %v591 = vpop.f32.mrb[0].mxu0
    %v592 = vadd.f32 %v376, %v591
    %v593 = vpop.f32.mrb[0].mxu0
    %594 = vmatprep.mubr.f32.mxu0 0.0
    %595 = vmatmul.mubr.f32.gmra.mrb[0].mxu0 %v421
    %v596 = vpop.f32.mrb[0].mxu0
    %v597 = vadd.f32 %v377, %v596
    %v598 = vpop.f32.mrb[0].mxu0
    %599 = vmatprep.mubr.f32.mxu0 0.0
    %600 = vmatmul.mubr.f32.gmra.mrb[0].mxu0 %v424
    %v601 = vpop.f32.mrb[0].mxu0
    %v602 = vadd.f32 %v378, %v601
    %v603 = vpop.f32.mrb[0].mxu0
    %604 = vmatprep.mubr.f32.mxu0 0.0
    %605 = vmatmul.mubr.f32.gmra.mrb[0].mxu0 %v427
    %v606 = vpop.f32.mrb[0].mxu0
    %v607 = vadd.f32 %v379, %v606
    %v608 = vpop.f32.mrb[0].mxu0
    %609 = vmatprep.mubr.f32.mxu0 0.0
    %610 = vmatmul.mubr.f32.gmra.mrb[0].mxu0 %v430
    %v611 = vpop.f32.mrb[0].mxu0
    %v612 = vadd.f32 %v380, %v611
    %v613 = vpop.f32.mrb[0].mxu0
    %614 = vmatprep.mubr.f32.mxu0 0.0
    %615 = vmatmul.mubr.f32.gmra.mrb[0].mxu0 %v433
    %v616 = vpop.f32.mrb[0].mxu0
    %v617 = vadd.f32 %v381, %v616
    %v618 = vpop.f32.mrb[0].mxu0
    %619 = vmatprep.mubr.f32.mxu0 0.0
    %620 = vmatmul.mubr.f32.gmra.mrb[0].mxu0 %v436
    %v621 = vpop.f32.mrb[0].mxu0
    %v622 = vadd.f32 %v382, %v621
    %v623 = vpop.f32.mrb[0].mxu0
    %624 = vmatprep.mubr.f32.mxu0 0.0
    %625 = vmatmul.mubr.f32.gmra.mrb[0].mxu0 %v439
    %v626 = vpop.f32.mrb[0].mxu0
    %v627 = vadd.f32 %v383, %v626
    %v628 = vpop.f32.mrb[0].mxu0
    %629 = vmatprep.mubr.f32.mxu0 0.0
    %630 = vmatmul.mubr.f32.gmra.mrb[0].mxu0 %v442
    %v631 = vpop.f32.mrb[0].mxu0
    %v632 = vadd.f32 %v384, %v631
    %v633 = vpop.f32.mrb[0].mxu0
    %634 = vmatprep.mubr.f32.mxu0 0.0
    %635 = vmatmul.mubr.f32.gmra.mrb[0].mxu0 %v445
    %v636 = vpop.f32.mrb[0].mxu0
    %v637 = vadd.f32 %v385, %v636
    %v638 = vpop.f32.mrb[0].mxu0
    %639 = vmatprep.mubr.f32.mxu0 0.0
    %640 = vmatmul.mubr.f32.gmra.mrb[0].mxu0 %v448
    %v641 = vpop.f32.mrb[0].mxu0
    %v642 = vadd.f32 %v386, %v641
    %v643 = vpop.f32.mrb[0].mxu0
    %644 = vmatprep.mubr.f32.mxu0 0.0
    %645 = vmatmul.mubr.f32.gmra.mrb[0].mxu0 %v451
    %v646 = vpop.f32.mrb[0].mxu0
    %v647 = vadd.f32 %v387, %v646
    %v648 = vpop.f32.mrb[0].mxu0
    %649 = vmatprep.mubr.f32.mxu0 0.0
    %650 = vmatmul.mubr.f32.gmra.mrb[0].mxu0 %v454
    %v651 = vpop.f32.mrb[0].mxu0
    %v652 = vadd.f32 %v388, %v651
    %v653 = vpop.f32.mrb[0].mxu0
    %654 = vmatprep.mubr.f32.mxu0 0.0
    %655 = vmatmul.mubr.f32.gmra.mrb[0].mxu0 %v457
    %v656 = vpop.f32.mrb[0].mxu0
    %v657 = vadd.f32 %v389, %v656
    %v658 = vpop.f32.mrb[0].mxu0
    %659 = vmatprep.mubr.f32.mxu0 0.0
    %660 = vmatmul.mubr.f32.gmra.mrb[0].mxu0 %v460
    %v661 = vpop.f32.mrb[0].mxu0
    %v662 = vadd.f32 %v390, %v661
    %v663 = vpop.f32.mrb[0].mxu0
    %664 = vmatprep.mubr.f32.mxu0 0.0
    %665 = vmatmul.mubr.f32.gmra.mrb[0].mxu0 %v463
    %v666 = vpop.f32.mrb[0].mxu0
    %v667 = vadd.f32 %v391, %v666
    %v668 = vpop.f32.mrb[0].mxu0
    %669 = vmatprep.mubr.f32.mxu0 0.0
    %670 = vmatmul.mubr.f32.gmra.mrb[0].mxu0 %v466
    %v671 = vpop.f32.mrb[0].mxu0
    %v672 = vadd.f32 %v392, %v671
    %v673 = vpop.f32.mrb[0].mxu0
    %674 = vmatprep.mubr.f32.mxu0 0.0
    %675 = vmatmul.mubr.f32.gmra.mrb[0].mxu0 %v469
    %v676 = vpop.f32.mrb[0].mxu0
    %v677 = vadd.f32 %v393, %v676
    %v678 = vpop.f32.mrb[0].mxu0
    %679 = vmatprep.mubr.f32.mxu0 0.0
    %680 = vmatmul.mubr.f32.gmra.mrb[0].mxu0 %v472
    %v681 = vpop.f32.mrb[0].mxu0
    %v682 = vadd.f32 %v394, %v681
    %v683 = vpop.f32.mrb[0].mxu0
    %684 = vmatprep.mubr.f32.mxu0 0.0
    %685 = vmatmul.mubr.f32.gmra.mrb[0].mxu0 %v475
    %v686 = vpop.f32.mrb[0].mxu0
    %v687 = vadd.f32 %v395, %v686
    %v688 = vpop.f32.mrb[0].mxu0
    %689 = vmatprep.mubr.f32.mxu0 0.0
    %690 = vmatmul.mubr.f32.gmra.mrb[0].mxu0 %v478
    %v691 = vpop.f32.mrb[0].mxu0
    %v692 = vadd.f32 %v396, %v691
    %v693 = vpop.f32.mrb[0].mxu0
    %694 = vmatprep.mubr.f32.mxu0 0.0
    %695 = vmatmul.mubr.f32.gmra.mrb[0].mxu0 %v481
    %v696 = vpop.f32.mrb[0].mxu0
    %v697 = vadd.f32 %v397, %v696
    %v698 = vpop.f32.mrb[0].mxu0
    %699 = vmatprep.mubr.f32.mxu0 0.0
    %700 = vmatmul.mubr.f32.gmra.mrb[0].mxu0 %v484
    %v701 = vpop.f32.mrb[0].mxu0
    %v702 = vadd.f32 %v398, %v701
    %v703 = vpop.f32.mrb[0].mxu0
    %704 = vmatprep.mubr.f32.mxu0 0.0
    %705 = vmatmul.mubr.f32.gmra.mrb[0].mxu0 %v487
    %v706 = vpop.f32.mrb[0].mxu0
    %v707 = vadd.f32 %v399, %v706
    %v708 = vpop.f32.mrb[0].mxu0
    %709 = vmatprep.mubr.f32.mxu0 0.0
    %710 = vmatmul.mubr.f32.gmra.mrb[0].mxu0 %v490
    %v711 = vpop.f32.mrb[0].mxu0
    %v712 = vadd.f32 %v400, %v711
    %v713 = vpop.f32.mrb[0].mxu0
    %714 = vmatprep.mubr.f32.mxu0 0.0
    %715 = vmatmul.mubr.f32.gmra.mrb[0].mxu0 %v493
    %v716 = vpop.f32.mrb[0].mxu0
    %v717 = vadd.f32 %v401, %v716
    %v718 = vpop.f32.mrb[0].mxu0
    %719 = vmatprep.mubr.f32.mxu0 0.0
    %720 = vmatmul.mubr.f32.gmra.mrb[0].mxu0 %v496
    %v721 = vpop.f32.mrb[0].mxu0
    %v722 = vadd.f32 %v402, %v721
    %v723 = vpop.f32.mrb[0].mxu0
    %724 = vmatprep.mubr.f32.mxu0 0.0
    %725 = vmatmul.mubr.f32.gmra.mrb[0].mxu0 %v499
    %v726 = vpop.f32.mrb[0].mxu0
    %v727 = vadd.f32 %v403, %v726
    %v728 = vpop.f32.mrb[0].mxu0
    %729 = vdwg.mxu0
    %v730 = vld [vmem:[#allocation7] sm:$0x1]
    %v732 = vlaneseq
    %v733 = vshrl.u32 %v732, 7
    %v734 = vsub.s32 0, %v733
    %v735 = vrot.slane %v730, %v734
    %v737 = vadd.f32 %v572, %v735
    %v738 = vadd.f32 %v577, %v735
    %v739 = vadd.f32 %v582, %v735
    %v740 = vadd.f32 %v587, %v735
    %v741 = vadd.f32 %v592, %v735
    %v742 = vadd.f32 %v597, %v735
    %v743 = vadd.f32 %v602, %v735
    %v744 = vadd.f32 %v607, %v735
    %v745 = vadd.f32 %v612, %v735
    %v746 = vadd.f32 %v617, %v735
    %v747 = vadd.f32 %v622, %v735
    %v748 = vadd.f32 %v627, %v735
    %v749 = vadd.f32 %v632, %v735
    %v750 = vadd.f32 %v637, %v735
    %v751 = vadd.f32 %v642, %v735
    %v752 = vadd.f32 %v647, %v735
    %v753 = vadd.f32 %v652, %v735
    %v754 = vadd.f32 %v657, %v735
    %v755 = vadd.f32 %v662, %v735
    %v756 = vadd.f32 %v667, %v735
    %v757 = vadd.f32 %v672, %v735
    %v758 = vadd.f32 %v677, %v735
    %v759 = vadd.f32 %v682, %v735
    %v760 = vadd.f32 %v687, %v735
    %v761 = vadd.f32 %v692, %v735
    %v762 = vadd.f32 %v697, %v735
    %v763 = vadd.f32 %v702, %v735
    %v764 = vadd.f32 %v707, %v735
    %v765 = vadd.f32 %v712, %v735
    %v766 = vadd.f32 %v717, %v735
    %v767 = vadd.f32 %v722, %v735
    %v768 = vadd.f32 %v727, %v735
    %v769 = vmax.f32 %v737, 0.0
    %v770 = vmax.f32 %v738, 0.0
    %v771 = vmax.f32 %v739, 0.0
    %v772 = vmax.f32 %v740, 0.0
    %v773 = vmax.f32 %v741, 0.0
    %v774 = vmax.f32 %v742, 0.0
    %v775 = vmax.f32 %v743, 0.0
    %v776 = vmax.f32 %v744, 0.0
    %v777 = vmax.f32 %v745, 0.0
    %v778 = vmax.f32 %v746, 0.0
    %v779 = vmax.f32 %v747, 0.0
    %v780 = vmax.f32 %v748, 0.0
    %v781 = vmax.f32 %v749, 0.0
    %v782 = vmax.f32 %v750, 0.0
    %v783 = vmax.f32 %v751, 0.0
    %v784 = vmax.f32 %v752, 0.0
    %v785 = vmax.f32 %v753, 0.0
    %v786 = vmax.f32 %v754, 0.0
    %v787 = vmax.f32 %v755, 0.0
    %v788 = vmax.f32 %v756, 0.0
    %v789 = vmax.f32 %v757, 0.0
    %v790 = vmax.f32 %v758, 0.0
    %v791 = vmax.f32 %v759, 0.0
    %v792 = vmax.f32 %v760, 0.0
    %v793 = vmax.f32 %v761, 0.0
    %v794 = vmax.f32 %v762, 0.0
    %v795 = vmax.f32 %v763, 0.0
    %v796 = vmax.f32 %v764, 0.0
    %v797 = vmax.f32 %v765, 0.0
    %v798 = vmax.f32 %v766, 0.0
    %v799 = vmax.f32 %v767, 0.0
    %v800 = vmax.f32 %v768, 0.0
    %v801 = vld [vmem:[#allocation8] sm:$0xff]
    %v802 = vld [vmem:[#allocation8 + $0x8] sm:$0xff]
    %v803 = vld [vmem:[#allocation8 + $0x10] sm:$0xff]
    %v804 = vld [vmem:[#allocation8 + $0x18] sm:$0xff]
    %v805 = vld [vmem:[#allocation8 + $0x20] sm:$0xff]
    %v806 = vld [vmem:[#allocation8 + $0x28] sm:$0xff]
    %v807 = vld [vmem:[#allocation8 + $0x30] sm:$0xff]
    %v808 = vld [vmem:[#allocation8 + $0x38] sm:$0xff]
    %v809 = vld [vmem:[#allocation10] sm:$0x1]
    %v811 = vlaneseq
    %v812 = vshrl.u32 %v811, 7
    %v813 = vsub.s32 0, %v812
    %v814 = vrot.slane %v809, %v813
    %vm816 = vcmask 523264
    %v818 = vsel %vm816, %v769, 0
    %v821 = vsel %vm816, %v770, 0
    %v824 = vsel %vm816, %v771, 0
    %v827 = vsel %vm816, %v772, 0
    %v830 = vsel %vm816, %v773, 0
    %v833 = vsel %vm816, %v774, 0
    %v836 = vsel %vm816, %v775, 0
    %v839 = vsel %vm816, %v776, 0
    %v842 = vsel %vm816, %v777, 0
    %v845 = vsel %vm816, %v778, 0
    %v848 = vsel %vm816, %v779, 0
    %v851 = vsel %vm816, %v780, 0
    %v854 = vsel %vm816, %v781, 0
    %v857 = vsel %vm816, %v782, 0
    %v860 = vsel %vm816, %v783, 0
    %v863 = vsel %vm816, %v784, 0
    %v866 = vsel %vm816, %v785, 0
    %v869 = vsel %vm816, %v786, 0
    %v872 = vsel %vm816, %v787, 0
    %v875 = vsel %vm816, %v788, 0
    %v878 = vsel %vm816, %v789, 0
    %v881 = vsel %vm816, %v790, 0
    %v884 = vsel %vm816, %v791, 0
    %v887 = vsel %vm816, %v792, 0
    %v890 = vsel %vm816, %v793, 0
    %v893 = vsel %vm816, %v794, 0
    %v896 = vsel %vm816, %v795, 0
    %v899 = vsel %vm816, %v796, 0
    %v902 = vsel %vm816, %v797, 0
    %v905 = vsel %vm816, %v798, 0
    %v908 = vsel %vm816, %v799, 0
    %v911 = vsel %vm816, %v800, 0
    %913 = vmatprep.subr.mxu0 0.0
    %914 = vmatpush1.msra.mxu0 %v801
    %915 = vmatprep.subr.mxu0 0.0
    %916 = vmatpush1.msra.mxu0 %v802
    %917 = vmatprep.subr.mxu0 0.0
    %918 = vmatpush1.msra.mxu0 %v803
    %919 = vmatprep.subr.mxu0 0.0
    %920 = vmatpush1.msra.mxu0 %v804
    %921 = vmatprep.subr.mxu0 0.0
    %922 = vmatpush1.msra.mxu0 %v805
    %923 = vmatprep.subr.mxu0 0.0
    %924 = vmatpush1.msra.mxu0 %v806
    %925 = vmatprep.subr.mxu0 0.0
    %926 = vmatpush1.msra.mxu0 %v807
    %927 = vmatprep.subr.mxu0 0.0
    %928 = vmatpush1.msra.mxu0 %v808
    %929 = vmatprep.subr.mxu0 0.0
    %930 = vmatpush1.msra.mxu0 0.0
    %931 = vmatprep.subr.mxu0 0.0
    %932 = vmatpush1.msra.mxu0 0.0
    %933 = vmatprep.subr.mxu0 0.0
    %934 = vmatpush1.msra.mxu0 0.0
    %935 = vmatprep.subr.mxu0 0.0
    %936 = vmatpush1.msra.mxu0 0.0
    %937 = vmatprep.subr.mxu0 0.0
    %938 = vmatpush1.msra.mxu0 0.0
    %939 = vmatprep.subr.mxu0 0.0
    %940 = vmatpush1.msra.mxu0 0.0
    %941 = vmatprep.subr.mxu0 0.0
    %942 = vmatpush1.msra.mxu0 0.0
    %943 = vmatprep.subr.mxu0 0.0
    %944 = vmatpush1.msra.mxu0 0.0
    %945 = vmatprep.subr.mxu0 0.0
    %946 = vmatpush1.msra.mxu0 0.0
    %947 = vmatprep.subr.mxu0 0.0
    %948 = vmatpush1.msra.mxu0 0.0
    %949 = vmatprep.subr.mxu0 0.0
    %950 = vmatpush1.msra.mxu0 0.0
    %951 = vmatprep.subr.mxu0 0.0
    %952 = vmatpush1.msra.mxu0 0.0
    %953 = vmatprep.subr.mxu0 0.0
    %954 = vmatpush1.msra.mxu0 0.0
    %955 = vmatprep.subr.mxu0 0.0
    %956 = vmatpush1.msra.mxu0 0.0
    %957 = vmatprep.subr.mxu0 0.0
    %958 = vmatpush1.msra.mxu0 0.0
    %959 = vmatprep.subr.mxu0 0.0
    %960 = vmatpush1.msra.mxu0 0.0
    %961 = vmatprep.subr.mxu0 0.0
    %962 = vmatpush1.msra.mxu0 0.0
    %963 = vmatprep.subr.mxu0 0.0
    %964 = vmatpush1.msra.mxu0 0.0
    %965 = vmatprep.subr.mxu0 0.0
    %966 = vmatpush1.msra.mxu0 0.0
    %967 = vmatprep.subr.mxu0 0.0
    %968 = vmatpush1.msra.mxu0 0.0
    %969 = vmatprep.subr.mxu0 0.0
    %970 = vmatpush1.msra.mxu0 0.0
    %971 = vmatprep.subr.mxu0 0.0
    %972 = vmatpush1.msra.mxu0 0.0
    %973 = vmatprep.subr.mxu0 0.0
    %974 = vmatpush1.msra.mxu0 0.0
    %975 = vmatprep.subr.mxu0 0.0
    %976 = vmatpush1.msra.mxu0 0.0
    %977 = vmatprep.mubr.f32.mxu0 0.0
    %978 = vmatmul.mubr.f32.gmra.mrb[0].mxu0 %v818
    %v979 = vpop.f32.mrb[0].mxu0
    %v980 = vadd.f32 %v814, %v979
    %v981 = vpop.f32.mrb[0].mxu0
    %982 = vmatprep.mubr.f32.mxu0 0.0
    %983 = vmatmul.mubr.f32.gmra.mrb[0].mxu0 %v821
    %v984 = vpop.f32.mrb[0].mxu0
    %v985 = vadd.f32 %v814, %v984
    %v986 = vpop.f32.mrb[0].mxu0
    %987 = vmatprep.mubr.f32.mxu0 0.0
    %988 = vmatmul.mubr.f32.gmra.mrb[0].mxu0 %v824
    %v989 = vpop.f32.mrb[0].mxu0
    %v990 = vadd.f32 %v814, %v989
    %v991 = vpop.f32.mrb[0].mxu0
    %992 = vmatprep.mubr.f32.mxu0 0.0
    %993 = vmatmul.mubr.f32.gmra.mrb[0].mxu0 %v827
    %v994 = vpop.f32.mrb[0].mxu0
    %v995 = vadd.f32 %v814, %v994
    %v996 = vpop.f32.mrb[0].mxu0
    %997 = vmatprep.mubr.f32.mxu0 0.0
    %998 = vmatmul.mubr.f32.gmra.mrb[0].mxu0 %v830
    %v999 = vpop.f32.mrb[0].mxu0
    %v1000 = vadd.f32 %v814, %v999
    %v1001 = vpop.f32.mrb[0].mxu0
    %1002 = vmatprep.mubr.f32.mxu0 0.0
    %1003 = vmatmul.mubr.f32.gmra.mrb[0].mxu0 %v833
    %v1004 = vpop.f32.mrb[0].mxu0
    %v1005 = vadd.f32 %v814, %v1004
    %v1006 = vpop.f32.mrb[0].mxu0
    %1007 = vmatprep.mubr.f32.mxu0 0.0
    %1008 = vmatmul.mubr.f32.gmra.mrb[0].mxu0 %v836
    %v1009 = vpop.f32.mrb[0].mxu0
    %v1010 = vadd.f32 %v814, %v1009
    %v1011 = vpop.f32.mrb[0].mxu0
    %1012 = vmatprep.mubr.f32.mxu0 0.0
    %1013 = vmatmul.mubr.f32.gmra.mrb[0].mxu0 %v839
    %v1014 = vpop.f32.mrb[0].mxu0
    %v1015 = vadd.f32 %v814, %v1014
    %v1016 = vpop.f32.mrb[0].mxu0
    %1017 = vmatprep.mubr.f32.mxu0 0.0
    %1018 = vmatmul.mubr.f32.gmra.mrb[0].mxu0 %v842
    %v1019 = vpop.f32.mrb[0].mxu0
    %v1020 = vadd.f32 %v814, %v1019
    %v1021 = vpop.f32.mrb[0].mxu0
    %1022 = vmatprep.mubr.f32.mxu0 0.0
    %1023 = vmatmul.mubr.f32.gmra.mrb[0].mxu0 %v845
    %v1024 = vpop.f32.mrb[0].mxu0
    %v1025 = vadd.f32 %v814, %v1024
    %v1026 = vpop.f32.mrb[0].mxu0
    %1027 = vmatprep.mubr.f32.mxu0 0.0
    %1028 = vmatmul.mubr.f32.gmra.mrb[0].mxu0 %v848
    %v1029 = vpop.f32.mrb[0].mxu0
    %v1030 = vadd.f32 %v814, %v1029
    %v1031 = vpop.f32.mrb[0].mxu0
    %1032 = vmatprep.mubr.f32.mxu0 0.0
    %1033 = vmatmul.mubr.f32.gmra.mrb[0].mxu0 %v851
    %v1034 = vpop.f32.mrb[0].mxu0
    %v1035 = vadd.f32 %v814, %v1034
    %v1036 = vpop.f32.mrb[0].mxu0
    %1037 = vmatprep.mubr.f32.mxu0 0.0
    %1038 = vmatmul.mubr.f32.gmra.mrb[0].mxu0 %v854
    %v1039 = vpop.f32.mrb[0].mxu0
    %v1040 = vadd.f32 %v814, %v1039
    %v1041 = vpop.f32.mrb[0].mxu0
    %1042 = vmatprep.mubr.f32.mxu0 0.0
    %1043 = vmatmul.mubr.f32.gmra.mrb[0].mxu0 %v857
    %v1044 = vpop.f32.mrb[0].mxu0
    %v1045 = vadd.f32 %v814, %v1044
    %v1046 = vpop.f32.mrb[0].mxu0
    %1047 = vmatprep.mubr.f32.mxu0 0.0
    %1048 = vmatmul.mubr.f32.gmra.mrb[0].mxu0 %v860
    %v1049 = vpop.f32.mrb[0].mxu0
    %v1050 = vadd.f32 %v814, %v1049
    %v1051 = vpop.f32.mrb[0].mxu0
    %1052 = vmatprep.mubr.f32.mxu0 0.0
    %1053 = vmatmul.mubr.f32.gmra.mrb[0].mxu0 %v863
    %v1054 = vpop.f32.mrb[0].mxu0
    %v1055 = vadd.f32 %v814, %v1054
    %v1056 = vpop.f32.mrb[0].mxu0
    %1057 = vmatprep.mubr.f32.mxu0 0.0
    %1058 = vmatmul.mubr.f32.gmra.mrb[0].mxu0 %v866
    %v1059 = vpop.f32.mrb[0].mxu0
    %v1060 = vadd.f32 %v814, %v1059
    %v1061 = vpop.f32.mrb[0].mxu0
    %1062 = vmatprep.mubr.f32.mxu0 0.0
    %1063 = vmatmul.mubr.f32.gmra.mrb[0].mxu0 %v869
    %v1064 = vpop.f32.mrb[0].mxu0
    %v1065 = vadd.f32 %v814, %v1064
    %v1066 = vpop.f32.mrb[0].mxu0
    %1067 = vmatprep.mubr.f32.mxu0 0.0
    %1068 = vmatmul.mubr.f32.gmra.mrb[0].mxu0 %v872
    %v1069 = vpop.f32.mrb[0].mxu0
    %v1070 = vadd.f32 %v814, %v1069
    %v1071 = vpop.f32.mrb[0].mxu0
    %1072 = vmatprep.mubr.f32.mxu0 0.0
    %1073 = vmatmul.mubr.f32.gmra.mrb[0].mxu0 %v875
    %v1074 = vpop.f32.mrb[0].mxu0
    %v1075 = vadd.f32 %v814, %v1074
    %v1076 = vpop.f32.mrb[0].mxu0
    %1077 = vmatprep.mubr.f32.mxu0 0.0
    %1078 = vmatmul.mubr.f32.gmra.mrb[0].mxu0 %v878
    %v1079 = vpop.f32.mrb[0].mxu0
    %v1080 = vadd.f32 %v814, %v1079
    %v1081 = vpop.f32.mrb[0].mxu0
    %1082 = vmatprep.mubr.f32.mxu0 0.0
    %1083 = vmatmul.mubr.f32.gmra.mrb[0].mxu0 %v881
    %v1084 = vpop.f32.mrb[0].mxu0
    %v1085 = vadd.f32 %v814, %v1084
    %v1086 = vpop.f32.mrb[0].mxu0
    %1087 = vmatprep.mubr.f32.mxu0 0.0
    %1088 = vmatmul.mubr.f32.gmra.mrb[0].mxu0 %v884
    %v1089 = vpop.f32.mrb[0].mxu0
    %v1090 = vadd.f32 %v814, %v1089
    %v1091 = vpop.f32.mrb[0].mxu0
    %1092 = vmatprep.mubr.f32.mxu0 0.0
    %1093 = vmatmul.mubr.f32.gmra.mrb[0].mxu0 %v887
    %v1094 = vpop.f32.mrb[0].mxu0
    %v1095 = vadd.f32 %v814, %v1094
    %v1096 = vpop.f32.mrb[0].mxu0
    %1097 = vmatprep.mubr.f32.mxu0 0.0
    %1098 = vmatmul.mubr.f32.gmra.mrb[0].mxu0 %v890
    %v1099 = vpop.f32.mrb[0].mxu0
    %v1100 = vadd.f32 %v814, %v1099
    %v1101 = vpop.f32.mrb[0].mxu0
    %1102 = vmatprep.mubr.f32.mxu0 0.0
    %1103 = vmatmul.mubr.f32.gmra.mrb[0].mxu0 %v893
    %v1104 = vpop.f32.mrb[0].mxu0
    %v1105 = vadd.f32 %v814, %v1104
    %v1106 = vpop.f32.mrb[0].mxu0
    %1107 = vmatprep.mubr.f32.mxu0 0.0
    %1108 = vmatmul.mubr.f32.gmra.mrb[0].mxu0 %v896
    %v1109 = vpop.f32.mrb[0].mxu0
    %v1110 = vadd.f32 %v814, %v1109
    %v1111 = vpop.f32.mrb[0].mxu0
    %1112 = vmatprep.mubr.f32.mxu0 0.0
    %1113 = vmatmul.mubr.f32.gmra.mrb[0].mxu0 %v899
    %v1114 = vpop.f32.mrb[0].mxu0
    %v1115 = vadd.f32 %v814, %v1114
    %v1116 = vpop.f32.mrb[0].mxu0
    %1117 = vmatprep.mubr.f32.mxu0 0.0
    %1118 = vmatmul.mubr.f32.gmra.mrb[0].mxu0 %v902
    %v1119 = vpop.f32.mrb[0].mxu0
    %v1120 = vadd.f32 %v814, %v1119
    %v1121 = vpop.f32.mrb[0].mxu0
    %1122 = vmatprep.mubr.f32.mxu0 0.0
    %1123 = vmatmul.mubr.f32.gmra.mrb[0].mxu0 %v905
    %v1124 = vpop.f32.mrb[0].mxu0
    %v1125 = vadd.f32 %v814, %v1124
    %v1126 = vpop.f32.mrb[0].mxu0
    %1127 = vmatprep.mubr.f32.mxu0 0.0
    %1128 = vmatmul.mubr.f32.gmra.mrb[0].mxu0 %v908
    %v1129 = vpop.f32.mrb[0].mxu0
    %v1130 = vadd.f32 %v814, %v1129
    %v1131 = vpop.f32.mrb[0].mxu0
    %1132 = vmatprep.mubr.f32.mxu0 0.0
    %1133 = vmatmul.mubr.f32.gmra.mrb[0].mxu0 %v911
    %v1134 = vpop.f32.mrb[0].mxu0
    %v1135 = vadd.f32 %v814, %v1134
    %v1136 = vpop.f32.mrb[0].mxu0
    %1137 = vdwg.mxu0
    %v1138 = vmax.f32 %v980, 0.0
    %v1139 = vmax.f32 %v985, 0.0
    %v1140 = vmax.f32 %v990, 0.0
    %v1141 = vmax.f32 %v995, 0.0
    %v1142 = vmax.f32 %v1000, 0.0
    %v1143 = vmax.f32 %v1005, 0.0
    %v1144 = vmax.f32 %v1010, 0.0
    %v1145 = vmax.f32 %v1015, 0.0
    %v1146 = vmax.f32 %v1020, 0.0
    %v1147 = vmax.f32 %v1025, 0.0
    %v1148 = vmax.f32 %v1030, 0.0
    %v1149 = vmax.f32 %v1035, 0.0
    %v1150 = vmax.f32 %v1040, 0.0
    %v1151 = vmax.f32 %v1045, 0.0
    %v1152 = vmax.f32 %v1050, 0.0
    %v1153 = vmax.f32 %v1055, 0.0
    %v1154 = vmax.f32 %v1060, 0.0
    %v1155 = vmax.f32 %v1065, 0.0
    %v1156 = vmax.f32 %v1070, 0.0
    %v1157 = vmax.f32 %v1075, 0.0
    %v1158 = vmax.f32 %v1080, 0.0
    %v1159 = vmax.f32 %v1085, 0.0
    %v1160 = vmax.f32 %v1090, 0.0
    %v1161 = vmax.f32 %v1095, 0.0
    %v1162 = vmax.f32 %v1100, 0.0
    %v1163 = vmax.f32 %v1105, 0.0
    %v1164 = vmax.f32 %v1110, 0.0
    %v1165 = vmax.f32 %v1115, 0.0
    %v1166 = vmax.f32 %v1120, 0.0
    %v1167 = vmax.f32 %v1125, 0.0
    %v1168 = vmax.f32 %v1130, 0.0
    %v1169 = vmax.f32 %v1135, 0.0
    %v1170 = vld [vmem:[#allocation11] sm:$0xff]
    %v1171 = vld [vmem:[#allocation11 + $0x8] sm:$0xff]
    %v1172 = vld [vmem:[#allocation11 + $0x10] sm:$0xff]
    %v1173 = vld [vmem:[#allocation11 + $0x18] sm:$0xff]
    %v1174 = vld [vmem:[#allocation11 + $0x20] sm:$0xff]
    %v1175 = vld [vmem:[#allocation11 + $0x28] sm:$0xff]
    %v1176 = vld [vmem:[#allocation11 + $0x30] sm:$0xff]
    %v1177 = vld [vmem:[#allocation11 + $0x38] sm:$0xff]
    %v1178 = vld [vmem:[#allocation11 + $0x40] sm:$0xff]
    %v1179 = vld [vmem:[#allocation11 + $0x48] sm:$0xff]
    %v1180 = vld [vmem:[#allocation11 + $0x50] sm:$0xff]
    %v1181 = vld [vmem:[#allocation11 + $0x58] sm:$0xff]
    %v1182 = vld [vmem:[#allocation11 + $0x60] sm:$0xff]
    %v1183 = vld [vmem:[#allocation11 + $0x68] sm:$0xff]
    %v1184 = vld [vmem:[#allocation11 + $0x70] sm:$0xff]
    %v1185 = vld [vmem:[#allocation11 + $0x78] sm:$0xff]
    %v1186 = vld [vmem:[#allocation11 + $0x80] sm:$0xff]
    %v1187 = vld [vmem:[#allocation11 + $0x88] sm:$0xff]
    %v1188 = vld [vmem:[#allocation11 + $0x90] sm:$0xff]
    %v1189 = vld [vmem:[#allocation11 + $0x98] sm:$0xff]
    %v1190 = vld [vmem:[#allocation11 + $0xa0] sm:$0xff]
    %v1191 = vld [vmem:[#allocation11 + $0xa8] sm:$0xff]
    %v1192 = vld [vmem:[#allocation11 + $0xb0] sm:$0xff]
    %v1193 = vld [vmem:[#allocation11 + $0xb8] sm:$0xff]
    %v1194 = vld [vmem:[#allocation11 + $0xc0] sm:$0xff]
    %v1195 = vld [vmem:[#allocation11 + $0xc8] sm:$0xff]
    %v1196 = vld [vmem:[#allocation11 + $0xd0] sm:$0xff]
    %v1197 = vld [vmem:[#allocation11 + $0xd8] sm:$0xff]
    %v1198 = vld [vmem:[#allocation11 + $0xe0] sm:$0xff]
    %v1199 = vld [vmem:[#allocation11 + $0xe8] sm:$0xff]
    %v1200 = vld [vmem:[#allocation11 + $0xf0] sm:$0xff]
    %v1201 = vld [vmem:[#allocation11 + $0xf8] sm:$0xff]
    %v1202 = vld [vmem:[#allocation11 + $0x100] sm:$0xff]
    %v1203 = vld [vmem:[#allocation11 + $0x108] sm:$0xff]
    %v1204 = vld [vmem:[#allocation11 + $0x110] sm:$0xff]
    %v1205 = vld [vmem:[#allocation11 + $0x118] sm:$0xff]
    %v1206 = vld [vmem:[#allocation11 + $0x120] sm:$0xff]
    %v1207 = vld [vmem:[#allocation11 + $0x128] sm:$0xff]
    %v1208 = vld [vmem:[#allocation11 + $0x130] sm:$0xff]
    %v1209 = vld [vmem:[#allocation11 + $0x138] sm:$0xff]
    %v1210 = vld [vmem:[#allocation11 + $0x140] sm:$0xff]
    %v1211 = vld [vmem:[#allocation11 + $0x148] sm:$0xff]
    %v1212 = vld [vmem:[#allocation11 + $0x150] sm:$0xff]
    %v1213 = vld [vmem:[#allocation11 + $0x158] sm:$0xff]
    %v1214 = vld [vmem:[#allocation11 + $0x160] sm:$0xff]
    %v1215 = vld [vmem:[#allocation11 + $0x168] sm:$0xff]
    %v1216 = vld [vmem:[#allocation11 + $0x170] sm:$0xff]
    %v1217 = vld [vmem:[#allocation11 + $0x178] sm:$0xff]
    %v1218 = vld [vmem:[#allocation11 + $0x180] sm:$0xff]
    %v1219 = vld [vmem:[#allocation11 + $0x188] sm:$0xff]
    %v1220 = vld [vmem:[#allocation11 + $0x190] sm:$0xff]
    %v1221 = vld [vmem:[#allocation11 + $0x198] sm:$0xff]
    %v1222 = vld [vmem:[#allocation11 + $0x1a0] sm:$0xff]
    %v1223 = vld [vmem:[#allocation11 + $0x1a8] sm:$0xff]
    %v1224 = vld [vmem:[#allocation11 + $0x1b0] sm:$0xff]
    %v1225 = vld [vmem:[#allocation11 + $0x1b8] sm:$0xff]
    %v1226 = vld [vmem:[#allocation11 + $0x1c0] sm:$0xff]
    %v1227 = vld [vmem:[#allocation11 + $0x1c8] sm:$0xff]
    %v1228 = vld [vmem:[#allocation11 + $0x1d0] sm:$0xff]
    %v1229 = vld [vmem:[#allocation11 + $0x1d8] sm:$0xff]
    %v1230 = vld [vmem:[#allocation11 + $0x1e0] sm:$0xff]
    %v1231 = vld [vmem:[#allocation11 + $0x1e8] sm:$0xff]
    %v1232 = vld [vmem:[#allocation11 + $0x1f0] sm:$0xff]
    %v1233 = vld [vmem:[#allocation11 + $0x1f8] sm:$0xff]
    %v1234 = vld [vmem:[#allocation13] sm:$0xf]
    %v1236 = vlaneseq
    %v1237 = vshrl.u32 %v1236, 7
    %v1238 = vsub.s32 0, %v1237
    %v1239 = vrot.slane %v1234, %v1238
    %v1240 = vlaneseq
    %v1241 = vshrl.u32 %v1240, 7
    %v1242 = vsub.s32 1, %v1241
    %v1243 = vrot.slane %v1234, %v1242
    %v1244 = vlaneseq
    %v1245 = vshrl.u32 %v1244, 7
    %v1246 = vsub.s32 2, %v1245
    %v1247 = vrot.slane %v1234, %v1246
    %v1248 = vlaneseq
    %v1249 = vshrl.u32 %v1248, 7
    %v1250 = vsub.s32 3, %v1249
    %v1251 = vrot.slane %v1234, %v1250
    %1256 = vmatprep.subr.mxu0 %v1171
    %1257 = vmatpush1.msra.mxu0 %v1170
    %1258 = vmatprep.subr.mxu0 %v1175
    %1259 = vmatpush1.msra.mxu0 %v1174
    %1260 = vmatprep.subr.mxu0 %v1179
    %1261 = vmatpush1.msra.mxu0 %v1178
    %1262 = vmatprep.subr.mxu0 %v1183
    %1263 = vmatpush1.msra.mxu0 %v1182
    %1264 = vmatprep.subr.mxu0 %v1187
    %1265 = vmatpush1.msra.mxu0 %v1186
    %1266 = vmatprep.subr.mxu0 %v1191
    %1267 = vmatpush1.msra.mxu0 %v1190
    %1268 = vmatprep.subr.mxu0 %v1195
    %1269 = vmatpush1.msra.mxu0 %v1194
    %1270 = vmatprep.subr.mxu0 %v1199
    %1271 = vmatpush1.msra.mxu0 %v1198
    %1272 = vmatprep.subr.mxu0 %v1203
    %1273 = vmatpush1.msra.mxu0 %v1202
    %1274 = vmatprep.subr.mxu0 %v1207
    %1275 = vmatpush1.msra.mxu0 %v1206
    %1276 = vmatprep.subr.mxu0 %v1211
    %1277 = vmatpush1.msra.mxu0 %v1210
    %1278 = vmatprep.subr.mxu0 %v1215
    %1279 = vmatpush1.msra.mxu0 %v1214
    %1280 = vmatprep.subr.mxu0 %v1219
    %1281 = vmatpush1.msra.mxu0 %v1218
    %1282 = vmatprep.subr.mxu0 %v1223
    %1283 = vmatpush1.msra.mxu0 %v1222
    %1284 = vmatprep.subr.mxu0 %v1227
    %1285 = vmatpush1.msra.mxu0 %v1226
    %1286 = vmatprep.subr.mxu0 %v1231
    %1287 = vmatpush1.msra.mxu0 %v1230
    %1288 = vmatprep.subr.mxu0 0.0
    %1289 = vmatpush1.msra.mxu0 0.0
    %1290 = vmatprep.subr.mxu0 0.0
    %1291 = vmatpush1.msra.mxu0 0.0
    %1292 = vmatprep.subr.mxu0 0.0
    %1293 = vmatpush1.msra.mxu0 0.0
    %1294 = vmatprep.subr.mxu0 0.0
    %1295 = vmatpush1.msra.mxu0 0.0
    %1296 = vmatprep.subr.mxu0 0.0
    %1297 = vmatpush1.msra.mxu0 0.0
    %1298 = vmatprep.subr.mxu0 0.0
    %1299 = vmatpush1.msra.mxu0 0.0
    %1300 = vmatprep.subr.mxu0 0.0
    %1301 = vmatpush1.msra.mxu0 0.0
    %1302 = vmatprep.subr.mxu0 0.0
    %1303 = vmatpush1.msra.mxu0 0.0
    %1304 = vmatprep.subr.mxu0 0.0
    %1305 = vmatpush1.msra.mxu0 0.0
    %1306 = vmatprep.subr.mxu0 0.0
    %1307 = vmatpush1.msra.mxu0 0.0
    %1308 = vmatprep.subr.mxu0 0.0
    %1309 = vmatpush1.msra.mxu0 0.0
    %1310 = vmatprep.subr.mxu0 0.0
    %1311 = vmatpush1.msra.mxu0 0.0
    %1312 = vmatprep.subr.mxu0 0.0
    %1313 = vmatpush1.msra.mxu0 0.0
    %1314 = vmatprep.subr.mxu0 0.0
    %1315 = vmatpush1.msra.mxu0 0.0
    %1316 = vmatprep.subr.mxu0 0.0
    %1317 = vmatpush1.msra.mxu0 0.0
    %1318 = vmatprep.subr.mxu0 0.0
    %1319 = vmatpush1.msra.mxu0 0.0
    %1320 = vmatprep.mubr.f32.mxu0 0.0
    %1321 = vmatmul.mubr.f32.gmra.mrb[0].mxu0 %v1138
    %v1322 = vpop.f32.mrb[0].mxu0
    %v1323 = vadd.f32 %v1239, %v1322
    %v1324 = vpop.f32.mrb[0].mxu0
    %v1325 = vadd.f32 %v1243, %v1324
    %1326 = vmatprep.mubr.f32.mxu0 0.0
    %1327 = vmatmul.mubr.f32.gmra.mrb[0].mxu0 %v1139
    %v1328 = vpop.f32.mrb[0].mxu0
    %v1329 = vadd.f32 %v1239, %v1328
    %v1330 = vpop.f32.mrb[0].mxu0
    %v1331 = vadd.f32 %v1243, %v1330
    %1332 = vmatprep.mubr.f32.mxu0 0.0
    %1333 = vmatmul.mubr.f32.gmra.mrb[0].mxu0 %v1140
    %v1334 = vpop.f32.mrb[0].mxu0
    %v1335 = vadd.f32 %v1239, %v1334
    %v1336 = vpop.f32.mrb[0].mxu0
    %v1337 = vadd.f32 %v1243, %v1336
    %1338 = vmatprep.mubr.f32.mxu0 0.0
    %1339 = vmatmul.mubr.f32.gmra.mrb[0].mxu0 %v1141
    %v1340 = vpop.f32.mrb[0].mxu0
    %v1341 = vadd.f32 %v1239, %v1340
    %v1342 = vpop.f32.mrb[0].mxu0
    %v1343 = vadd.f32 %v1243, %v1342
    %1344 = vmatprep.mubr.f32.mxu0 0.0
    %1345 = vmatmul.mubr.f32.gmra.mrb[0].mxu0 %v1142
    %v1346 = vpop.f32.mrb[0].mxu0
    %v1347 = vadd.f32 %v1239, %v1346
    %v1348 = vpop.f32.mrb[0].mxu0
    %v1349 = vadd.f32 %v1243, %v1348
    %1350 = vmatprep.mubr.f32.mxu0 0.0
    %1351 = vmatmul.mubr.f32.gmra.mrb[0].mxu0 %v1143
    %v1352 = vpop.f32.mrb[0].mxu0
    %v1353 = vadd.f32 %v1239, %v1352
    %v1354 = vpop.f32.mrb[0].mxu0
    %v1355 = vadd.f32 %v1243, %v1354
    %1356 = vmatprep.mubr.f32.mxu0 0.0
    %1357 = vmatmul.mubr.f32.gmra.mrb[0].mxu0 %v1144
    %v1358 = vpop.f32.mrb[0].mxu0
    %v1359 = vadd.f32 %v1239, %v1358
    %v1360 = vpop.f32.mrb[0].mxu0
    %v1361 = vadd.f32 %v1243, %v1360
    %1362 = vmatprep.mubr.f32.mxu0 0.0
    %1363 = vmatmul.mubr.f32.gmra.mrb[0].mxu0 %v1145
    %v1364 = vpop.f32.mrb[0].mxu0
    %v1365 = vadd.f32 %v1239, %v1364
    %v1366 = vpop.f32.mrb[0].mxu0
    %v1367 = vadd.f32 %v1243, %v1366
    %1368 = vmatprep.mubr.f32.mxu0 0.0
    %1369 = vmatmul.mubr.f32.gmra.mrb[0].mxu0 %v1146
    %v1370 = vpop.f32.mrb[0].mxu0
    %v1371 = vadd.f32 %v1239, %v1370
    %v1372 = vpop.f32.mrb[0].mxu0
    %v1373 = vadd.f32 %v1243, %v1372
    %1374 = vmatprep.mubr.f32.mxu0 0.0
    %1375 = vmatmul.mubr.f32.gmra.mrb[0].mxu0 %v1147
    %v1376 = vpop.f32.mrb[0].mxu0
    %v1377 = vadd.f32 %v1239, %v1376
    %v1378 = vpop.f32.mrb[0].mxu0
    %v1379 = vadd.f32 %v1243, %v1378
    %1380 = vmatprep.mubr.f32.mxu0 0.0
    %1381 = vmatmul.mubr.f32.gmra.mrb[0].mxu0 %v1148
    %v1382 = vpop.f32.mrb[0].mxu0
    %v1383 = vadd.f32 %v1239, %v1382
    %v1384 = vpop.f32.mrb[0].mxu0
    %v1385 = vadd.f32 %v1243, %v1384
    %1386 = vmatprep.mubr.f32.mxu0 0.0
    %1387 = vmatmul.mubr.f32.gmra.mrb[0].mxu0 %v1149
    %v1388 = vpop.f32.mrb[0].mxu0
    %v1389 = vadd.f32 %v1239, %v1388
    %v1390 = vpop.f32.mrb[0].mxu0
    %v1391 = vadd.f32 %v1243, %v1390
    %1392 = vmatprep.mubr.f32.mxu0 0.0
    %1393 = vmatmul.mubr.f32.gmra.mrb[0].mxu0 %v1150
    %v1394 = vpop.f32.mrb[0].mxu0
    %v1395 = vadd.f32 %v1239, %v1394
    %v1396 = vpop.f32.mrb[0].mxu0
    %v1397 = vadd.f32 %v1243, %v1396
    %1398 = vmatprep.mubr.f32.mxu0 0.0
    %1399 = vmatmul.mubr.f32.gmra.mrb[0].mxu0 %v1151
    %v1400 = vpop.f32.mrb[0].mxu0
    %v1401 = vadd.f32 %v1239, %v1400
    %v1402 = vpop.f32.mrb[0].mxu0
    %v1403 = vadd.f32 %v1243, %v1402
    %1404 = vmatprep.mubr.f32.mxu0 0.0
    %1405 = vmatmul.mubr.f32.gmra.mrb[0].mxu0 %v1152
    %v1406 = vpop.f32.mrb[0].mxu0
    %v1407 = vadd.f32 %v1239, %v1406
    %v1408 = vpop.f32.mrb[0].mxu0
    %v1409 = vadd.f32 %v1243, %v1408
    %1410 = vmatprep.mubr.f32.mxu0 0.0
    %1411 = vmatmul.mubr.f32.gmra.mrb[0].mxu0 %v1153
    %v1412 = vpop.f32.mrb[0].mxu0
    %v1413 = vadd.f32 %v1239, %v1412
    %v1414 = vpop.f32.mrb[0].mxu0
    %v1415 = vadd.f32 %v1243, %v1414
    %1416 = vmatprep.mubr.f32.mxu0 0.0
    %1417 = vmatmul.mubr.f32.gmra.mrb[0].mxu0 %v1154
    %v1418 = vpop.f32.mrb[0].mxu0
    %v1419 = vadd.f32 %v1239, %v1418
    %v1420 = vpop.f32.mrb[0].mxu0
    %v1421 = vadd.f32 %v1243, %v1420
    %1422 = vmatprep.mubr.f32.mxu0 0.0
    %1423 = vmatmul.mubr.f32.gmra.mrb[0].mxu0 %v1155
    %v1424 = vpop.f32.mrb[0].mxu0
    %v1425 = vadd.f32 %v1239, %v1424
    %v1426 = vpop.f32.mrb[0].mxu0
    %v1427 = vadd.f32 %v1243, %v1426
    %1428 = vmatprep.mubr.f32.mxu0 0.0
    %1429 = vmatmul.mubr.f32.gmra.mrb[0].mxu0 %v1156
    %v1430 = vpop.f32.mrb[0].mxu0
    %v1431 = vadd.f32 %v1239, %v1430
    %v1432 = vpop.f32.mrb[0].mxu0
    %v1433 = vadd.f32 %v1243, %v1432
    %1434 = vmatprep.mubr.f32.mxu0 0.0
    %1435 = vmatmul.mubr.f32.gmra.mrb[0].mxu0 %v1157
    %v1436 = vpop.f32.mrb[0].mxu0
    %v1437 = vadd.f32 %v1239, %v1436
    %v1438 = vpop.f32.mrb[0].mxu0
    %v1439 = vadd.f32 %v1243, %v1438
    %1440 = vmatprep.mubr.f32.mxu0 0.0
    %1441 = vmatmul.mubr.f32.gmra.mrb[0].mxu0 %v1158
    %v1442 = vpop.f32.mrb[0].mxu0
    %v1443 = vadd.f32 %v1239, %v1442
    %v1444 = vpop.f32.mrb[0].mxu0
    %v1445 = vadd.f32 %v1243, %v1444
    %1446 = vmatprep.mubr.f32.mxu0 0.0
    %1447 = vmatmul.mubr.f32.gmra.mrb[0].mxu0 %v1159
    %v1448 = vpop.f32.mrb[0].mxu0
    %v1449 = vadd.f32 %v1239, %v1448
    %v1450 = vpop.f32.mrb[0].mxu0
    %v1451 = vadd.f32 %v1243, %v1450
    %1452 = vmatprep.mubr.f32.mxu0 0.0
    %1453 = vmatmul.mubr.f32.gmra.mrb[0].mxu0 %v1160
    %v1454 = vpop.f32.mrb[0].mxu0
    %v1455 = vadd.f32 %v1239, %v1454
    %v1456 = vpop.f32.mrb[0].mxu0
    %v1457 = vadd.f32 %v1243, %v1456
    %1458 = vmatprep.mubr.f32.mxu0 0.0
    %1459 = vmatmul.mubr.f32.gmra.mrb[0].mxu0 %v1161
    %v1460 = vpop.f32.mrb[0].mxu0
    %v1461 = vadd.f32 %v1239, %v1460
    %v1462 = vpop.f32.mrb[0].mxu0
    %v1463 = vadd.f32 %v1243, %v1462
    %1464 = vmatprep.mubr.f32.mxu0 0.0
    %1465 = vmatmul.mubr.f32.gmra.mrb[0].mxu0 %v1162
    %v1466 = vpop.f32.mrb[0].mxu0
    %v1467 = vadd.f32 %v1239, %v1466
    %v1468 = vpop.f32.mrb[0].mxu0
    %v1469 = vadd.f32 %v1243, %v1468
    %1470 = vmatprep.mubr.f32.mxu0 0.0
    %1471 = vmatmul.mubr.f32.gmra.mrb[0].mxu0 %v1163
    %v1472 = vpop.f32.mrb[0].mxu0
    %v1473 = vadd.f32 %v1239, %v1472
    %v1474 = vpop.f32.mrb[0].mxu0
    %v1475 = vadd.f32 %v1243, %v1474
    %1476 = vmatprep.mubr.f32.mxu0 0.0
    %1477 = vmatmul.mubr.f32.gmra.mrb[0].mxu0 %v1164
    %v1478 = vpop.f32.mrb[0].mxu0
    %v1479 = vadd.f32 %v1239, %v1478
    %v1480 = vpop.f32.mrb[0].mxu0
    %v1481 = vadd.f32 %v1243, %v1480
    %1482 = vmatprep.mubr.f32.mxu0 0.0
    %1483 = vmatmul.mubr.f32.gmra.mrb[0].mxu0 %v1165
    %v1484 = vpop.f32.mrb[0].mxu0
    %v1485 = vadd.f32 %v1239, %v1484
    %v1486 = vpop.f32.mrb[0].mxu0
    %v1487 = vadd.f32 %v1243, %v1486
    %1488 = vmatprep.mubr.f32.mxu0 0.0
    %1489 = vmatmul.mubr.f32.gmra.mrb[0].mxu0 %v1166
    %v1490 = vpop.f32.mrb[0].mxu0
    %v1491 = vadd.f32 %v1239, %v1490
    %v1492 = vpop.f32.mrb[0].mxu0
    %v1493 = vadd.f32 %v1243, %v1492
    %1494 = vmatprep.mubr.f32.mxu0 0.0
    %1495 = vmatmul.mubr.f32.gmra.mrb[0].mxu0 %v1167
    %v1496 = vpop.f32.mrb[0].mxu0
    %v1497 = vadd.f32 %v1239, %v1496
    %v1498 = vpop.f32.mrb[0].mxu0
    %v1499 = vadd.f32 %v1243, %v1498
    %1500 = vmatprep.mubr.f32.mxu0 0.0
    %1501 = vmatmul.mubr.f32.gmra.mrb[0].mxu0 %v1168
    %v1502 = vpop.f32.mrb[0].mxu0
    %v1503 = vadd.f32 %v1239, %v1502
    %v1504 = vpop.f32.mrb[0].mxu0
    %v1505 = vadd.f32 %v1243, %v1504
    %1506 = vmatprep.mubr.f32.mxu0 0.0
    %1507 = vmatmul.mubr.f32.gmra.mrb[0].mxu0 %v1169
    %v1508 = vpop.f32.mrb[0].mxu0
    %v1509 = vadd.f32 %v1239, %v1508
    %v1510 = vpop.f32.mrb[0].mxu0
    %v1511 = vadd.f32 %v1243, %v1510
    %1512 = vdwg.mxu0
    %1513 = vmatprep.subr.mxu0 %v1173
    %1514 = vmatpush1.msra.mxu0 %v1172
    %1515 = vmatprep.subr.mxu0 %v1177
    %1516 = vmatpush1.msra.mxu0 %v1176
    %1517 = vmatprep.subr.mxu0 %v1181
    %1518 = vmatpush1.msra.mxu0 %v1180
    %1519 = vmatprep.subr.mxu0 %v1185
    %1520 = vmatpush1.msra.mxu0 %v1184
    %1521 = vmatprep.subr.mxu0 %v1189
    %1522 = vmatpush1.msra.mxu0 %v1188
    %1523 = vmatprep.subr.mxu0 %v1193
    %1524 = vmatpush1.msra.mxu0 %v1192
    %1525 = vmatprep.subr.mxu0 %v1197
    %1526 = vmatpush1.msra.mxu0 %v1196
    %1527 = vmatprep.subr.mxu0 %v1201
    %1528 = vmatpush1.msra.mxu0 %v1200
    %1529 = vmatprep.subr.mxu0 %v1205
    %1530 = vmatpush1.msra.mxu0 %v1204
    %1531 = vmatprep.subr.mxu0 %v1209
    %1532 = vmatpush1.msra.mxu0 %v1208
    %1533 = vmatprep.subr.mxu0 %v1213
    %1534 = vmatpush1.msra.mxu0 %v1212
    %1535 = vmatprep.subr.mxu0 %v1217
    %1536 = vmatpush1.msra.mxu0 %v1216
    %1537 = vmatprep.subr.mxu0 %v1221
    %1538 = vmatpush1.msra.mxu0 %v1220
    %1539 = vmatprep.subr.mxu0 %v1225
    %1540 = vmatpush1.msra.mxu0 %v1224
    %1541 = vmatprep.subr.mxu0 %v1229
    %1542 = vmatpush1.msra.mxu0 %v1228
    %1543 = vmatprep.subr.mxu0 %v1233
    %1544 = vmatpush1.msra.mxu0 %v1232
    %1545 = vmatprep.subr.mxu0 0.0
    %1546 = vmatpush1.msra.mxu0 0.0
    %1547 = vmatprep.subr.mxu0 0.0
    %1548 = vmatpush1.msra.mxu0 0.0
    %1549 = vmatprep.subr.mxu0 0.0
    %1550 = vmatpush1.msra.mxu0 0.0
    %1551 = vmatprep.subr.mxu0 0.0
    %1552 = vmatpush1.msra.mxu0 0.0
    %1553 = vmatprep.subr.mxu0 0.0
    %1554 = vmatpush1.msra.mxu0 0.0
    %1555 = vmatprep.subr.mxu0 0.0
    %1556 = vmatpush1.msra.mxu0 0.0
    %1557 = vmatprep.subr.mxu0 0.0
    %1558 = vmatpush1.msra.mxu0 0.0
    %1559 = vmatprep.subr.mxu0 0.0
    %1560 = vmatpush1.msra.mxu0 0.0
    %1561 = vmatprep.subr.mxu0 0.0
    %1562 = vmatpush1.msra.mxu0 0.0
    %1563 = vmatprep.subr.mxu0 0.0
    %1564 = vmatpush1.msra.mxu0 0.0
    %1565 = vmatprep.subr.mxu0 0.0
    %1566 = vmatpush1.msra.mxu0 0.0
    %1567 = vmatprep.subr.mxu0 0.0
    %1568 = vmatpush1.msra.mxu0 0.0
    %1569 = vmatprep.subr.mxu0 0.0
    %1570 = vmatpush1.msra.mxu0 0.0
    %1571 = vmatprep.subr.mxu0 0.0
    %1572 = vmatpush1.msra.mxu0 0.0
    %1573 = vmatprep.subr.mxu0 0.0
    %1574 = vmatpush1.msra.mxu0 0.0
    %1575 = vmatprep.subr.mxu0 0.0
    %1576 = vmatpush1.msra.mxu0 0.0
    %1577 = vmatprep.mubr.f32.mxu0 0.0
    %1578 = vmatmul.mubr.f32.gmra.mrb[0].mxu0 %v1138
    %v1579 = vpop.f32.mrb[0].mxu0
    %v1580 = vadd.f32 %v1247, %v1579
    %v1581 = vpop.f32.mrb[0].mxu0
    %v1582 = vadd.f32 %v1251, %v1581
    %1583 = vmatprep.mubr.f32.mxu0 0.0
    %1584 = vmatmul.mubr.f32.gmra.mrb[0].mxu0 %v1139
    %v1585 = vpop.f32.mrb[0].mxu0
    %v1586 = vadd.f32 %v1247, %v1585
    %v1587 = vpop.f32.mrb[0].mxu0
    %v1588 = vadd.f32 %v1251, %v1587
    %1589 = vmatprep.mubr.f32.mxu0 0.0
    %1590 = vmatmul.mubr.f32.gmra.mrb[0].mxu0 %v1140
    %v1591 = vpop.f32.mrb[0].mxu0
    %v1592 = vadd.f32 %v1247, %v1591
    %v1593 = vpop.f32.mrb[0].mxu0
    %v1594 = vadd.f32 %v1251, %v1593
    %1595 = vmatprep.mubr.f32.mxu0 0.0
    %1596 = vmatmul.mubr.f32.gmra.mrb[0].mxu0 %v1141
    %v1597 = vpop.f32.mrb[0].mxu0
    %v1598 = vadd.f32 %v1247, %v1597
    %v1599 = vpop.f32.mrb[0].mxu0
    %v1600 = vadd.f32 %v1251, %v1599
    %1601 = vmatprep.mubr.f32.mxu0 0.0
    %1602 = vmatmul.mubr.f32.gmra.mrb[0].mxu0 %v1142
    %v1603 = vpop.f32.mrb[0].mxu0
    %v1604 = vadd.f32 %v1247, %v1603
    %v1605 = vpop.f32.mrb[0].mxu0
    %v1606 = vadd.f32 %v1251, %v1605
    %1607 = vmatprep.mubr.f32.mxu0 0.0
    %1608 = vmatmul.mubr.f32.gmra.mrb[0].mxu0 %v1143
    %v1609 = vpop.f32.mrb[0].mxu0
    %v1610 = vadd.f32 %v1247, %v1609
    %v1611 = vpop.f32.mrb[0].mxu0
    %v1612 = vadd.f32 %v1251, %v1611
    %1613 = vmatprep.mubr.f32.mxu0 0.0
    %1614 = vmatmul.mubr.f32.gmra.mrb[0].mxu0 %v1144
    %v1615 = vpop.f32.mrb[0].mxu0
    %v1616 = vadd.f32 %v1247, %v1615
    %v1617 = vpop.f32.mrb[0].mxu0
    %v1618 = vadd.f32 %v1251, %v1617
    %1619 = vmatprep.mubr.f32.mxu0 0.0
    %1620 = vmatmul.mubr.f32.gmra.mrb[0].mxu0 %v1145
    %v1621 = vpop.f32.mrb[0].mxu0
    %v1622 = vadd.f32 %v1247, %v1621
    %v1623 = vpop.f32.mrb[0].mxu0
    %v1624 = vadd.f32 %v1251, %v1623
    %1625 = vmatprep.mubr.f32.mxu0 0.0
    %1626 = vmatmul.mubr.f32.gmra.mrb[0].mxu0 %v1146
    %v1627 = vpop.f32.mrb[0].mxu0
    %v1628 = vadd.f32 %v1247, %v1627
    %v1629 = vpop.f32.mrb[0].mxu0
    %v1630 = vadd.f32 %v1251, %v1629
    %1631 = vmatprep.mubr.f32.mxu0 0.0
    %1632 = vmatmul.mubr.f32.gmra.mrb[0].mxu0 %v1147
    %v1633 = vpop.f32.mrb[0].mxu0
    %v1634 = vadd.f32 %v1247, %v1633
    %v1635 = vpop.f32.mrb[0].mxu0
    %v1636 = vadd.f32 %v1251, %v1635
    %1637 = vmatprep.mubr.f32.mxu0 0.0
    %1638 = vmatmul.mubr.f32.gmra.mrb[0].mxu0 %v1148
    %v1639 = vpop.f32.mrb[0].mxu0
    %v1640 = vadd.f32 %v1247, %v1639
    %v1641 = vpop.f32.mrb[0].mxu0
    %v1642 = vadd.f32 %v1251, %v1641
    %1643 = vmatprep.mubr.f32.mxu0 0.0
    %1644 = vmatmul.mubr.f32.gmra.mrb[0].mxu0 %v1149
    %v1645 = vpop.f32.mrb[0].mxu0
    %v1646 = vadd.f32 %v1247, %v1645
    %v1647 = vpop.f32.mrb[0].mxu0
    %v1648 = vadd.f32 %v1251, %v1647
    %1649 = vmatprep.mubr.f32.mxu0 0.0
    %1650 = vmatmul.mubr.f32.gmra.mrb[0].mxu0 %v1150
    %v1651 = vpop.f32.mrb[0].mxu0
    %v1652 = vadd.f32 %v1247, %v1651
    %v1653 = vpop.f32.mrb[0].mxu0
    %v1654 = vadd.f32 %v1251, %v1653
    %1655 = vmatprep.mubr.f32.mxu0 0.0
    %1656 = vmatmul.mubr.f32.gmra.mrb[0].mxu0 %v1151
    %v1657 = vpop.f32.mrb[0].mxu0
    %v1658 = vadd.f32 %v1247, %v1657
    %v1659 = vpop.f32.mrb[0].mxu0
    %v1660 = vadd.f32 %v1251, %v1659
    %1661 = vmatprep.mubr.f32.mxu0 0.0
    %1662 = vmatmul.mubr.f32.gmra.mrb[0].mxu0 %v1152
    %v1663 = vpop.f32.mrb[0].mxu0
    %v1664 = vadd.f32 %v1247, %v1663
    %v1665 = vpop.f32.mrb[0].mxu0
    %v1666 = vadd.f32 %v1251, %v1665
    %1667 = vmatprep.mubr.f32.mxu0 0.0
    %1668 = vmatmul.mubr.f32.gmra.mrb[0].mxu0 %v1153
    %v1669 = vpop.f32.mrb[0].mxu0
    %v1670 = vadd.f32 %v1247, %v1669
    %v1671 = vpop.f32.mrb[0].mxu0
    %v1672 = vadd.f32 %v1251, %v1671
    %1673 = vmatprep.mubr.f32.mxu0 0.0
    %1674 = vmatmul.mubr.f32.gmra.mrb[0].mxu0 %v1154
    %v1675 = vpop.f32.mrb[0].mxu0
    %v1676 = vadd.f32 %v1247, %v1675
    %v1677 = vpop.f32.mrb[0].mxu0
    %v1678 = vadd.f32 %v1251, %v1677
    %1679 = vmatprep.mubr.f32.mxu0 0.0
    %1680 = vmatmul.mubr.f32.gmra.mrb[0].mxu0 %v1155
    %v1681 = vpop.f32.mrb[0].mxu0
    %v1682 = vadd.f32 %v1247, %v1681
    %v1683 = vpop.f32.mrb[0].mxu0
    %v1684 = vadd.f32 %v1251, %v1683
    %1685 = vmatprep.mubr.f32.mxu0 0.0
    %1686 = vmatmul.mubr.f32.gmra.mrb[0].mxu0 %v1156
    %v1687 = vpop.f32.mrb[0].mxu0
    %v1688 = vadd.f32 %v1247, %v1687
    %v1689 = vpop.f32.mrb[0].mxu0
    %v1690 = vadd.f32 %v1251, %v1689
    %1691 = vmatprep.mubr.f32.mxu0 0.0
    %1692 = vmatmul.mubr.f32.gmra.mrb[0].mxu0 %v1157
    %v1693 = vpop.f32.mrb[0].mxu0
    %v1694 = vadd.f32 %v1247, %v1693
    %v1695 = vpop.f32.mrb[0].mxu0
    %v1696 = vadd.f32 %v1251, %v1695
    %1697 = vmatprep.mubr.f32.mxu0 0.0
    %1698 = vmatmul.mubr.f32.gmra.mrb[0].mxu0 %v1158
    %v1699 = vpop.f32.mrb[0].mxu0
    %v1700 = vadd.f32 %v1247, %v1699
    %v1701 = vpop.f32.mrb[0].mxu0
    %v1702 = vadd.f32 %v1251, %v1701
    %1703 = vmatprep.mubr.f32.mxu0 0.0
    %1704 = vmatmul.mubr.f32.gmra.mrb[0].mxu0 %v1159
    %v1705 = vpop.f32.mrb[0].mxu0
    %v1706 = vadd.f32 %v1247, %v1705
    %v1707 = vpop.f32.mrb[0].mxu0
    %v1708 = vadd.f32 %v1251, %v1707
    %1709 = vmatprep.mubr.f32.mxu0 0.0
    %1710 = vmatmul.mubr.f32.gmra.mrb[0].mxu0 %v1160
    %v1711 = vpop.f32.mrb[0].mxu0
    %v1712 = vadd.f32 %v1247, %v1711
    %v1713 = vpop.f32.mrb[0].mxu0
    %v1714 = vadd.f32 %v1251, %v1713
    %1715 = vmatprep.mubr.f32.mxu0 0.0
    %1716 = vmatmul.mubr.f32.gmra.mrb[0].mxu0 %v1161
    %v1717 = vpop.f32.mrb[0].mxu0
    %v1718 = vadd.f32 %v1247, %v1717
    %v1719 = vpop.f32.mrb[0].mxu0
    %v1720 = vadd.f32 %v1251, %v1719
    %1721 = vmatprep.mubr.f32.mxu0 0.0
    %1722 = vmatmul.mubr.f32.gmra.mrb[0].mxu0 %v1162
    %v1723 = vpop.f32.mrb[0].mxu0
    %v1724 = vadd.f32 %v1247, %v1723
    %v1725 = vpop.f32.mrb[0].mxu0
    %v1726 = vadd.f32 %v1251, %v1725
    %1727 = vmatprep.mubr.f32.mxu0 0.0
    %1728 = vmatmul.mubr.f32.gmra.mrb[0].mxu0 %v1163
    %v1729 = vpop.f32.mrb[0].mxu0
    %v1730 = vadd.f32 %v1247, %v1729
    %v1731 = vpop.f32.mrb[0].mxu0
    %v1732 = vadd.f32 %v1251, %v1731
    %1733 = vmatprep.mubr.f32.mxu0 0.0
    %1734 = vmatmul.mubr.f32.gmra.mrb[0].mxu0 %v1164
    %v1735 = vpop.f32.mrb[0].mxu0
    %v1736 = vadd.f32 %v1247, %v1735
    %v1737 = vpop.f32.mrb[0].mxu0
    %v1738 = vadd.f32 %v1251, %v1737
    %1739 = vmatprep.mubr.f32.mxu0 0.0
    %1740 = vmatmul.mubr.f32.gmra.mrb[0].mxu0 %v1165
    %v1741 = vpop.f32.mrb[0].mxu0
    %v1742 = vadd.f32 %v1247, %v1741
    %v1743 = vpop.f32.mrb[0].mxu0
    %v1744 = vadd.f32 %v1251, %v1743
    %1745 = vmatprep.mubr.f32.mxu0 0.0
    %1746 = vmatmul.mubr.f32.gmra.mrb[0].mxu0 %v1166
    %v1747 = vpop.f32.mrb[0].mxu0
    %v1748 = vadd.f32 %v1247, %v1747
    %v1749 = vpop.f32.mrb[0].mxu0
    %v1750 = vadd.f32 %v1251, %v1749
    %1751 = vmatprep.mubr.f32.mxu0 0.0
    %1752 = vmatmul.mubr.f32.gmra.mrb[0].mxu0 %v1167
    %v1753 = vpop.f32.mrb[0].mxu0
    %v1754 = vadd.f32 %v1247, %v1753
    %v1755 = vpop.f32.mrb[0].mxu0
    %v1756 = vadd.f32 %v1251, %v1755
    %1757 = vmatprep.mubr.f32.mxu0 0.0
    %1758 = vmatmul.mubr.f32.gmra.mrb[0].mxu0 %v1168
    %v1759 = vpop.f32.mrb[0].mxu0
    %v1760 = vadd.f32 %v1247, %v1759
    %v1761 = vpop.f32.mrb[0].mxu0
    %v1762 = vadd.f32 %v1251, %v1761
    %1763 = vmatprep.mubr.f32.mxu0 0.0
    %1764 = vmatmul.mubr.f32.gmra.mrb[0].mxu0 %v1169
    %v1765 = vpop.f32.mrb[0].mxu0
    %v1766 = vadd.f32 %v1247, %v1765
    %v1767 = vpop.f32.mrb[0].mxu0
    %v1768 = vadd.f32 %v1251, %v1767
    %1769 = vdwg.mxu0
    %v1770 = vmax.f32 %v1323, %v1329
    %v1771 = vmax.f32 %v1770, %v1335
    %v1772 = vmax.f32 %v1771, %v1341
    %v1773 = vmax.f32 %v1772, %v1347
    %v1774 = vmax.f32 %v1773, %v1353
    %v1775 = vmax.f32 %v1774, %v1359
    %v1776 = vmax.f32 %v1775, %v1365
    %v1777 = vmax.f32 %v1776, %v1371
    %v1778 = vmax.f32 %v1777, %v1377
    %v1779 = vmax.f32 %v1778, %v1383
    %v1780 = vmax.f32 %v1779, %v1389
    %v1781 = vmax.f32 %v1780, %v1395
    %v1782 = vmax.f32 %v1781, %v1401
    %v1783 = vmax.f32 %v1782, %v1407
    %v1784 = vmax.f32 %v1783, %v1413
    %v1785 = vrot.slane %v1784, 4
    %v1786 = vmax.f32 %v1784, %v1785
    %v1787 = vrot.slane %v1786, 2
    %v1788 = vmax.f32 %v1786, %v1787
    %v1789 = vrot.slane %v1788, 1
    %v1790 = vmax.f32 %v1788, %v1789
    %v1791 = vmax.f32 %v1325, %v1331
    %v1792 = vmax.f32 %v1791, %v1337
    %v1793 = vmax.f32 %v1792, %v1343
    %v1794 = vmax.f32 %v1793, %v1349
    %v1795 = vmax.f32 %v1794, %v1355
    %v1796 = vmax.f32 %v1795, %v1361
    %v1797 = vmax.f32 %v1796, %v1367
    %v1798 = vmax.f32 %v1797, %v1373
    %v1799 = vmax.f32 %v1798, %v1379
    %v1800 = vmax.f32 %v1799, %v1385
    %v1801 = vmax.f32 %v1800, %v1391
    %v1802 = vmax.f32 %v1801, %v1397
    %v1803 = vmax.f32 %v1802, %v1403
    %v1804 = vmax.f32 %v1803, %v1409
    %v1805 = vmax.f32 %v1804, %v1415
    %v1806 = vrot.slane %v1805, 4
    %v1807 = vmax.f32 %v1805, %v1806
    %v1808 = vrot.slane %v1807, 2
    %v1809 = vmax.f32 %v1807, %v1808
    %v1810 = vrot.slane %v1809, 1
    %v1811 = vmax.f32 %v1809, %v1810
    %v1812 = vmax.f32 %v1580, %v1586
    %v1813 = vmax.f32 %v1812, %v1592
    %v1814 = vmax.f32 %v1813, %v1598
    %v1815 = vmax.f32 %v1814, %v1604
    %v1816 = vmax.f32 %v1815, %v1610
    %v1817 = vmax.f32 %v1816, %v1616
    %v1818 = vmax.f32 %v1817, %v1622
    %v1819 = vmax.f32 %v1818, %v1628
    %v1820 = vmax.f32 %v1819, %v1634
    %v1821 = vmax.f32 %v1820, %v1640
    %v1822 = vmax.f32 %v1821, %v1646
    %v1823 = vmax.f32 %v1822, %v1652
    %v1824 = vmax.f32 %v1823, %v1658
    %v1825 = vmax.f32 %v1824, %v1664
    %v1826 = vmax.f32 %v1825, %v1670
    %v1827 = vrot.slane %v1826, 4
    %v1828 = vmax.f32 %v1826, %v1827
    %v1829 = vrot.slane %v1828, 2
    %v1830 = vmax.f32 %v1828, %v1829
    %v1831 = vrot.slane %v1830, 1
    %v1832 = vmax.f32 %v1830, %v1831
    %v1833 = vmax.f32 %v1582, %v1588
    %v1834 = vmax.f32 %v1833, %v1594
    %v1835 = vmax.f32 %v1834, %v1600
    %v1836 = vmax.f32 %v1835, %v1606
    %v1837 = vmax.f32 %v1836, %v1612
    %v1838 = vmax.f32 %v1837, %v1618
    %v1839 = vmax.f32 %v1838, %v1624
    %v1840 = vmax.f32 %v1839, %v1630
    %v1841 = vmax.f32 %v1840, %v1636
    %v1842 = vmax.f32 %v1841, %v1642
    %v1843 = vmax.f32 %v1842, %v1648
    %v1844 = vmax.f32 %v1843, %v1654
    %v1845 = vmax.f32 %v1844, %v1660
    %v1846 = vmax.f32 %v1845, %v1666
    %v1847 = vmax.f32 %v1846, %v1672
    %v1848 = vrot.slane %v1847, 4
    %v1849 = vmax.f32 %v1847, %v1848
    %v1850 = vrot.slane %v1849, 2
    %v1851 = vmax.f32 %v1849, %v1850
    %v1852 = vrot.slane %v1851, 1
    %v1853 = vmax.f32 %v1851, %v1852
    %v1854 = vmax.f32 %v1419, %v1425
    %v1855 = vmax.f32 %v1854, %v1431
    %v1856 = vmax.f32 %v1855, %v1437
    %v1857 = vmax.f32 %v1856, %v1443
    %v1858 = vmax.f32 %v1857, %v1449
    %v1859 = vmax.f32 %v1858, %v1455
    %v1860 = vmax.f32 %v1859, %v1461
    %v1861 = vmax.f32 %v1860, %v1467
    %v1862 = vmax.f32 %v1861, %v1473
    %v1863 = vmax.f32 %v1862, %v1479
    %v1864 = vmax.f32 %v1863, %v1485
    %v1865 = vmax.f32 %v1864, %v1491
    %v1866 = vmax.f32 %v1865, %v1497
    %v1867 = vmax.f32 %v1866, %v1503
    %v1868 = vmax.f32 %v1867, %v1509
    %v1869 = vrot.slane %v1868, 4
    %v1870 = vmax.f32 %v1868, %v1869
    %v1871 = vrot.slane %v1870, 2
    %v1872 = vmax.f32 %v1870, %v1871
    %v1873 = vrot.slane %v1872, 1
    %v1874 = vmax.f32 %v1872, %v1873
    %v1875 = vmax.f32 %v1421, %v1427
    %v1876 = vmax.f32 %v1875, %v1433
    %v1877 = vmax.f32 %v1876, %v1439
    %v1878 = vmax.f32 %v1877, %v1445
    %v1879 = vmax.f32 %v1878, %v1451
    %v1880 = vmax.f32 %v1879, %v1457
    %v1881 = vmax.f32 %v1880, %v1463
    %v1882 = vmax.f32 %v1881, %v1469
    %v1883 = vmax.f32 %v1882, %v1475
    %v1884 = vmax.f32 %v1883, %v1481
    %v1885 = vmax.f32 %v1884, %v1487
    %v1886 = vmax.f32 %v1885, %v1493
    %v1887 = vmax.f32 %v1886, %v1499
    %v1888 = vmax.f32 %v1887, %v1505
    %v1889 = vmax.f32 %v1888, %v1511
    %v1890 = vrot.slane %v1889, 4
    %v1891 = vmax.f32 %v1889, %v1890
    %v1892 = vrot.slane %v1891, 2
    %v1893 = vmax.f32 %v1891, %v1892
    %v1894 = vrot.slane %v1893, 1
    %v1895 = vmax.f32 %v1893, %v1894
    %v1896 = vmax.f32 %v1676, %v1682
    %v1897 = vmax.f32 %v1896, %v1688
    %v1898 = vmax.f32 %v1897, %v1694
    %v1899 = vmax.f32 %v1898, %v1700
    %v1900 = vmax.f32 %v1899, %v1706
    %v1901 = vmax.f32 %v1900, %v1712
    %v1902 = vmax.f32 %v1901, %v1718
    %v1903 = vmax.f32 %v1902, %v1724
    %v1904 = vmax.f32 %v1903, %v1730
    %v1905 = vmax.f32 %v1904, %v1736
    %v1906 = vmax.f32 %v1905, %v1742
    %v1907 = vmax.f32 %v1906, %v1748
    %v1908 = vmax.f32 %v1907, %v1754
    %v1909 = vmax.f32 %v1908, %v1760
    %v1910 = vmax.f32 %v1909, %v1766
    %v1911 = vrot.slane %v1910, 4
    %v1912 = vmax.f32 %v1910, %v1911
    %v1913 = vrot.slane %v1912, 2
    %v1914 = vmax.f32 %v1912, %v1913
    %v1915 = vrot.slane %v1914, 1
    %v1916 = vmax.f32 %v1914, %v1915
    %v1917 = vmax.f32 %v1678, %v1684
    %v1918 = vmax.f32 %v1917, %v1690
    %v1919 = vmax.f32 %v1918, %v1696
    %v1920 = vmax.f32 %v1919, %v1702
    %v1921 = vmax.f32 %v1920, %v1708
    %v1922 = vmax.f32 %v1921, %v1714
    %v1923 = vmax.f32 %v1922, %v1720
    %v1924 = vmax.f32 %v1923, %v1726
    %v1925 = vmax.f32 %v1924, %v1732
    %v1926 = vmax.f32 %v1925, %v1738
    %v1927 = vmax.f32 %v1926, %v1744
    %v1928 = vmax.f32 %v1927, %v1750
    %v1929 = vmax.f32 %v1928, %v1756
    %v1930 = vmax.f32 %v1929, %v1762
    %v1931 = vmax.f32 %v1930, %v1768
    %v1932 = vrot.slane %v1931, 4
    %v1933 = vmax.f32 %v1931, %v1932
    %v1934 = vrot.slane %v1933, 2
    %v1935 = vmax.f32 %v1933, %v1934
    %v1936 = vrot.slane %v1935, 1
    %v1937 = vmax.f32 %v1935, %v1936
    %vm1938 = vcmask 1040384
    %v1939 = vsel %vm1938, %v1790, %v1874
    %v1940 = vsel %vm1938, %v1811, %v1895
    %v1941 = vsel %vm1938, %v1832, %v1916
    %v1942 = vsel %vm1938, %v1853, %v1937
    %v1947 = vcombine.low %v1939, %v1940
    %v1948 = vcombine.low %v1941, %v1942
    %v1950 = vunpack.c.l.s4 1983009808
    %v1951 = vunpack.c.0.s8 %v1950
    %v1952 = vlaneseq
    %v1953 = vshrl.u32 %v1952, 7
    %v1954 = vsub.s32 %v1951, %v1953
    %v1955 = vrot.slane %v1947, %v1954
    %v1957 = vunpack.c.l.s4 1983009808
    %v1958 = vunpack.c.0.s8 %v1957
    %v1959 = vlaneseq
    %v1960 = vshrl.u32 %v1959, 7
    %v1961 = vsub.s32 %v1958, %v1960
    %v1962 = vrot.slane %v1948, %v1961
    %v1963 = vcombine.low %v1955, %v1962
    %1965 = vst [vmem:[#allocation26] sm:$0xff] %v1963
    %v1966 = vld [vmem:[#allocation2] sm:$0x3]
    %v1967 = vld [vmem:[#allocation14] sm:$0x7]
    %v1968 = vld [vmem:[#allocation16] sm:$0x1]
    %v1970 = vlaneseq
    %v1971 = vshrl.u32 %v1970, 7
    %v1972 = vsub.s32 0, %v1971
    %v1973 = vrot.slane %v1968, %v1972
    %v1976 = vsel %vm404, %v1966, 0
    %v1979 = vsel %vm501, %v1967, 0
    %1981 = vmatprep.subr.mxu0 0.0
    %1982 = vmatpush1.msra.mxu0 %v1979
    %1983 = vmatprep.subr.mxu0 0.0
    %1984 = vmatpush1.msra.mxu0 0.0
    %1985 = vmatprep.subr.mxu0 0.0
    %1986 = vmatpush1.msra.mxu0 0.0
    %1987 = vmatprep.subr.mxu0 0.0
    %1988 = vmatpush1.msra.mxu0 0.0
    %1989 = vmatprep.subr.mxu0 0.0
    %1990 = vmatpush1.msra.mxu0 0.0
    %1991 = vmatprep.subr.mxu0 0.0
    %1992 = vmatpush1.msra.mxu0 0.0
    %1993 = vmatprep.subr.mxu0 0.0
    %1994 = vmatpush1.msra.mxu0 0.0
    %1995 = vmatprep.subr.mxu0 0.0
    %1996 = vmatpush1.msra.mxu0 0.0
    %1997 = vmatprep.subr.mxu0 0.0
    %1998 = vmatpush1.msra.mxu0 0.0
    %1999 = vmatprep.subr.mxu0 0.0
    %2000 = vmatpush1.msra.mxu0 0.0
    %2001 = vmatprep.subr.mxu0 0.0
    %2002 = vmatpush1.msra.mxu0 0.0
    %2003 = vmatprep.subr.mxu0 0.0
    %2004 = vmatpush1.msra.mxu0 0.0
    %2005 = vmatprep.subr.mxu0 0.0
    %2006 = vmatpush1.msra.mxu0 0.0
    %2007 = vmatprep.subr.mxu0 0.0
    %2008 = vmatpush1.msra.mxu0 0.0
    %2009 = vmatprep.subr.mxu0 0.0
    %2010 = vmatpush1.msra.mxu0 0.0
    %2011 = vmatprep.subr.mxu0 0.0
    %2012 = vmatpush1.msra.mxu0 0.0
    %2013 = vmatprep.subr.mxu0 0.0
    %2014 = vmatpush1.msra.mxu0 0.0
    %2015 = vmatprep.subr.mxu0 0.0
    %2016 = vmatpush1.msra.mxu0 0.0
    %2017 = vmatprep.subr.mxu0 0.0
    %2018 = vmatpush1.msra.mxu0 0.0
    %2019 = vmatprep.subr.mxu0 0.0
    %2020 = vmatpush1.msra.mxu0 0.0
    %2021 = vmatprep.subr.mxu0 0.0
    %2022 = vmatpush1.msra.mxu0 0.0
    %2023 = vmatprep.subr.mxu0 0.0
    %2024 = vmatpush1.msra.mxu0 0.0
    %2025 = vmatprep.subr.mxu0 0.0
    %2026 = vmatpush1.msra.mxu0 0.0
    %2027 = vmatprep.subr.mxu0 0.0
    %2028 = vmatpush1.msra.mxu0 0.0
    %2029 = vmatprep.subr.mxu0 0.0
    %2030 = vmatpush1.msra.mxu0 0.0
    %2031 = vmatprep.subr.mxu0 0.0
    %2032 = vmatpush1.msra.mxu0 0.0
    %2033 = vmatprep.subr.mxu0 0.0
    %2034 = vmatpush1.msra.mxu0 0.0
    %2035 = vmatprep.subr.mxu0 0.0
    %2036 = vmatpush1.msra.mxu0 0.0
    %2037 = vmatprep.subr.mxu0 0.0
    %2038 = vmatpush1.msra.mxu0 0.0
    %2039 = vmatprep.subr.mxu0 0.0
    %2040 = vmatpush1.msra.mxu0 0.0
    %2041 = vmatprep.subr.mxu0 0.0
    %2042 = vmatpush1.msra.mxu0 0.0
    %2043 = vmatprep.subr.mxu0 0.0
    %2044 = vmatpush1.msra.mxu0 0.0
    %2045 = vmatprep.mubr.f32.mxu0 0.0
    %2046 = vmatmul.mubr.f32.gmra.mrb[0].mxu0 %v1976
    %v2047 = vpop.f32.mrb[0].mxu0
    %v2048 = vadd.f32 %v1973, %v2047
    %v2049 = vpop.f32.mrb[0].mxu0
    %2050 = vdwg.mxu0
    %v2051 = vld [vmem:[#allocation17] sm:$0xff]
    %v2052 = vld [vmem:[#allocation17 + $0x8] sm:$0xff]
    %v2053 = vld [vmem:[#allocation17 + $0x10] sm:$0xff]
    %v2054 = vld [vmem:[#allocation17 + $0x18] sm:$0xff]
    %v2055 = vld [vmem:[#allocation17 + $0x20] sm:$0xff]
    %v2056 = vld [vmem:[#allocation17 + $0x28] sm:$0xff]
    %v2057 = vld [vmem:[#allocation17 + $0x30] sm:$0xff]
    %v2058 = vld [vmem:[#allocation17 + $0x38] sm:$0xff]
    %v2059 = vld [vmem:[#allocation17 + $0x40] sm:$0xff]
    %v2060 = vld [vmem:[#allocation17 + $0x48] sm:$0xff]
    %v2061 = vld [vmem:[#allocation17 + $0x50] sm:$0xff]
    %v2062 = vld [vmem:[#allocation17 + $0x58] sm:$0xff]
    %v2063 = vld [vmem:[#allocation17 + $0x60] sm:$0xff]
    %v2064 = vld [vmem:[#allocation17 + $0x68] sm:$0xff]
    %v2065 = vld [vmem:[#allocation17 + $0x70] sm:$0xff]
    %v2066 = vld [vmem:[#allocation17 + $0x78] sm:$0xff]
    %v2067 = vld [vmem:[#allocation17 + $0x80] sm:$0xff]
    %v2068 = vld [vmem:[#allocation17 + $0x88] sm:$0xff]
    %v2069 = vld [vmem:[#allocation17 + $0x90] sm:$0xff]
    %v2070 = vld [vmem:[#allocation17 + $0x98] sm:$0xff]
    %v2071 = vld [vmem:[#allocation17 + $0xa0] sm:$0xff]
    %v2072 = vld [vmem:[#allocation17 + $0xa8] sm:$0xff]
    %v2073 = vld [vmem:[#allocation17 + $0xb0] sm:$0xff]
    %v2074 = vld [vmem:[#allocation17 + $0xb8] sm:$0xff]
    %v2075 = vld [vmem:[#allocation17 + $0xc0] sm:$0xff]
    %v2076 = vld [vmem:[#allocation17 + $0xc8] sm:$0xff]
    %v2077 = vld [vmem:[#allocation17 + $0xd0] sm:$0xff]
    %v2078 = vld [vmem:[#allocation17 + $0xd8] sm:$0xff]
    %v2079 = vld [vmem:[#allocation17 + $0xe0] sm:$0xff]
    %v2080 = vld [vmem:[#allocation17 + $0xe8] sm:$0xff]
    %v2081 = vld [vmem:[#allocation17 + $0xf0] sm:$0xff]
    %v2082 = vld [vmem:[#allocation17 + $0xf8] sm:$0xff]
    %v2083 = vld [vmem:[#allocation17 + $0x100] sm:$0xff]
    %v2084 = vld [vmem:[#allocation17 + $0x108] sm:$0xff]
    %v2085 = vld [vmem:[#allocation17 + $0x110] sm:$0xff]
    %v2086 = vld [vmem:[#allocation17 + $0x118] sm:$0xff]
    %v2087 = vld [vmem:[#allocation17 + $0x120] sm:$0xff]
    %v2088 = vld [vmem:[#allocation17 + $0x128] sm:$0xff]
    %v2089 = vld [vmem:[#allocation17 + $0x130] sm:$0xff]
    %v2090 = vld [vmem:[#allocation17 + $0x138] sm:$0xff]
    %v2091 = vld [vmem:[#allocation17 + $0x140] sm:$0xff]
    %v2092 = vld [vmem:[#allocation17 + $0x148] sm:$0xff]
    %v2093 = vld [vmem:[#allocation17 + $0x150] sm:$0xff]
    %v2094 = vld [vmem:[#allocation17 + $0x158] sm:$0xff]
    %v2095 = vld [vmem:[#allocation17 + $0x160] sm:$0xff]
    %v2096 = vld [vmem:[#allocation17 + $0x168] sm:$0xff]
    %v2097 = vld [vmem:[#allocation17 + $0x170] sm:$0xff]
    %v2098 = vld [vmem:[#allocation17 + $0x178] sm:$0xff]
    %v2099 = vld [vmem:[#allocation17 + $0x180] sm:$0xff]
    %v2100 = vld [vmem:[#allocation17 + $0x188] sm:$0xff]
    %v2101 = vld [vmem:[#allocation17 + $0x190] sm:$0xff]
    %v2102 = vld [vmem:[#allocation17 + $0x198] sm:$0xff]
    %v2103 = vld [vmem:[#allocation17 + $0x1a0] sm:$0xff]
    %v2104 = vld [vmem:[#allocation17 + $0x1a8] sm:$0xff]
    %v2105 = vld [vmem:[#allocation17 + $0x1b0] sm:$0xff]
    %v2106 = vld [vmem:[#allocation17 + $0x1b8] sm:$0xff]
    %v2107 = vld [vmem:[#allocation17 + $0x1c0] sm:$0xff]
    %v2108 = vld [vmem:[#allocation17 + $0x1c8] sm:$0xff]
    %v2109 = vld [vmem:[#allocation17 + $0x1d0] sm:$0xff]
    %v2110 = vld [vmem:[#allocation17 + $0x1d8] sm:$0xff]
    %v2111 = vld [vmem:[#allocation17 + $0x1e0] sm:$0xff]
    %v2112 = vld [vmem:[#allocation17 + $0x1e8] sm:$0xff]
    %v2113 = vld [vmem:[#allocation17 + $0x1f0] sm:$0xff]
    %v2114 = vld [vmem:[#allocation17 + $0x1f8] sm:$0xff]
    %v2115 = vld [vmem:[#allocation17 + $0x200] sm:$0xff]
    %v2116 = vld [vmem:[#allocation17 + $0x208] sm:$0xff]
    %v2117 = vld [vmem:[#allocation17 + $0x210] sm:$0xff]
    %v2118 = vld [vmem:[#allocation17 + $0x218] sm:$0xff]
    %v2119 = vld [vmem:[#allocation17 + $0x220] sm:$0xff]
    %v2120 = vld [vmem:[#allocation17 + $0x228] sm:$0xff]
    %v2121 = vld [vmem:[#allocation17 + $0x230] sm:$0xff]
    %v2122 = vld [vmem:[#allocation17 + $0x238] sm:$0xff]
    %v2123 = vld [vmem:[#allocation17 + $0x240] sm:$0xff]
    %v2124 = vld [vmem:[#allocation17 + $0x248] sm:$0xff]
    %v2125 = vld [vmem:[#allocation17 + $0x250] sm:$0xff]
    %v2126 = vld [vmem:[#allocation17 + $0x258] sm:$0xff]
    %v2127 = vld [vmem:[#allocation17 + $0x260] sm:$0xff]
    %v2128 = vld [vmem:[#allocation17 + $0x268] sm:$0xff]
    %v2129 = vld [vmem:[#allocation17 + $0x270] sm:$0xff]
    %v2130 = vld [vmem:[#allocation17 + $0x278] sm:$0xff]
    %v2131 = vld [vmem:[#allocation17 + $0x280] sm:$0xff]
    %v2132 = vld [vmem:[#allocation17 + $0x288] sm:$0xff]
    %v2133 = vld [vmem:[#allocation17 + $0x290] sm:$0xff]
    %v2134 = vld [vmem:[#allocation17 + $0x298] sm:$0xff]
    %v2135 = vld [vmem:[#allocation17 + $0x2a0] sm:$0xff]
    %v2136 = vld [vmem:[#allocation17 + $0x2a8] sm:$0xff]
    %v2137 = vld [vmem:[#allocation17 + $0x2b0] sm:$0xff]
    %v2138 = vld [vmem:[#allocation17 + $0x2b8] sm:$0xff]
    %v2139 = vld [vmem:[#allocation17 + $0x2c0] sm:$0xff]
    %v2140 = vld [vmem:[#allocation17 + $0x2c8] sm:$0xff]
    %v2141 = vld [vmem:[#allocation17 + $0x2d0] sm:$0xff]
    %v2142 = vld [vmem:[#allocation17 + $0x2d8] sm:$0xff]
    %v2143 = vld [vmem:[#allocation17 + $0x2e0] sm:$0xff]
    %v2144 = vld [vmem:[#allocation17 + $0x2e8] sm:$0xff]
    %v2145 = vld [vmem:[#allocation17 + $0x2f0] sm:$0xff]
    %v2146 = vld [vmem:[#allocation17 + $0x2f8] sm:$0xff]
    %v2147 = vld [vmem:[#allocation17 + $0x300] sm:$0xff]
    %v2148 = vld [vmem:[#allocation17 + $0x308] sm:$0xff]
    %v2149 = vld [vmem:[#allocation17 + $0x310] sm:$0xff]
    %v2150 = vld [vmem:[#allocation17 + $0x318] sm:$0xff]
    %v2151 = vld [vmem:[#allocation17 + $0x320] sm:$0xff]
    %v2152 = vld [vmem:[#allocation17 + $0x328] sm:$0xff]
    %v2153 = vld [vmem:[#allocation17 + $0x330] sm:$0xff]
    %v2154 = vld [vmem:[#allocation17 + $0x338] sm:$0xff]
    %v2155 = vld [vmem:[#allocation17 + $0x340] sm:$0xff]
    %v2156 = vld [vmem:[#allocation17 + $0x348] sm:$0xff]
    %v2157 = vld [vmem:[#allocation17 + $0x350] sm:$0xff]
    %v2158 = vld [vmem:[#allocation17 + $0x358] sm:$0xff]
    %v2159 = vld [vmem:[#allocation17 + $0x360] sm:$0xff]
    %v2160 = vld [vmem:[#allocation17 + $0x368] sm:$0xff]
    %v2161 = vld [vmem:[#allocation17 + $0x370] sm:$0xff]
    %v2162 = vld [vmem:[#allocation17 + $0x378] sm:$0xff]
    %v2163 = vld [vmem:[#allocation17 + $0x380] sm:$0xff]
    %v2164 = vld [vmem:[#allocation17 + $0x388] sm:$0xff]
    %v2165 = vld [vmem:[#allocation17 + $0x390] sm:$0xff]
    %v2166 = vld [vmem:[#allocation17 + $0x398] sm:$0xff]
    %v2167 = vld [vmem:[#allocation17 + $0x3a0] sm:$0xff]
    %v2168 = vld [vmem:[#allocation17 + $0x3a8] sm:$0xff]
    %v2169 = vld [vmem:[#allocation17 + $0x3b0] sm:$0xff]
    %v2170 = vld [vmem:[#allocation17 + $0x3b8] sm:$0xff]
    %v2171 = vld [vmem:[#allocation17 + $0x3c0] sm:$0xff]
    %v2172 = vld [vmem:[#allocation17 + $0x3c8] sm:$0xff]
    %v2173 = vld [vmem:[#allocation17 + $0x3d0] sm:$0xff]
    %v2174 = vld [vmem:[#allocation17 + $0x3d8] sm:$0xff]
    %v2175 = vld [vmem:[#allocation17 + $0x3e0] sm:$0xff]
    %v2176 = vld [vmem:[#allocation17 + $0x3e8] sm:$0xff]
    %v2177 = vld [vmem:[#allocation17 + $0x3f0] sm:$0xff]
    %v2178 = vld [vmem:[#allocation17 + $0x3f8] sm:$0xff]
    %v2179 = vld [vmem:[#allocation17 + $0x400] sm:$0xff]
    %v2180 = vld [vmem:[#allocation17 + $0x408] sm:$0xff]
    %v2181 = vld [vmem:[#allocation17 + $0x410] sm:$0xff]
    %v2182 = vld [vmem:[#allocation17 + $0x418] sm:$0xff]
    %v2183 = vld [vmem:[#allocation17 + $0x420] sm:$0xff]
    %v2184 = vld [vmem:[#allocation17 + $0x428] sm:$0xff]
    %v2185 = vld [vmem:[#allocation17 + $0x430] sm:$0xff]
    %v2186 = vld [vmem:[#allocation17 + $0x438] sm:$0xff]
    %v2187 = vld [vmem:[#allocation17 + $0x440] sm:$0xff]
    %v2188 = vld [vmem:[#allocation17 + $0x448] sm:$0xff]
    %v2189 = vld [vmem:[#allocation17 + $0x450] sm:$0xff]
    %v2190 = vld [vmem:[#allocation17 + $0x458] sm:$0xff]
    %v2191 = vld [vmem:[#allocation17 + $0x460] sm:$0xff]
    %v2192 = vld [vmem:[#allocation17 + $0x468] sm:$0xff]
    %v2193 = vld [vmem:[#allocation17 + $0x470] sm:$0xff]
    %v2194 = vld [vmem:[#allocation17 + $0x478] sm:$0xff]
    %v2195 = vld [vmem:[#allocation17 + $0x480] sm:$0xff]
    %v2196 = vld [vmem:[#allocation17 + $0x488] sm:$0xff]
    %v2197 = vld [vmem:[#allocation17 + $0x490] sm:$0xff]
    %v2198 = vld [vmem:[#allocation17 + $0x498] sm:$0xff]
    %v2199 = vld [vmem:[#allocation17 + $0x4a0] sm:$0xff]
    %v2200 = vld [vmem:[#allocation17 + $0x4a8] sm:$0xff]
    %v2201 = vld [vmem:[#allocation17 + $0x4b0] sm:$0xff]
    %v2202 = vld [vmem:[#allocation17 + $0x4b8] sm:$0xff]
    %v2203 = vld [vmem:[#allocation17 + $0x4c0] sm:$0xff]
    %v2204 = vld [vmem:[#allocation17 + $0x4c8] sm:$0xff]
    %v2205 = vld [vmem:[#allocation17 + $0x4d0] sm:$0xff]
    %v2206 = vld [vmem:[#allocation17 + $0x4d8] sm:$0xff]
    %v2207 = vld [vmem:[#allocation17 + $0x4e0] sm:$0xff]
    %v2208 = vld [vmem:[#allocation17 + $0x4e8] sm:$0xff]
    %v2209 = vld [vmem:[#allocation17 + $0x4f0] sm:$0xff]
    %v2210 = vld [vmem:[#allocation17 + $0x4f8] sm:$0xff]
    %v2211 = vld [vmem:[#allocation17 + $0x500] sm:$0xff]
    %v2212 = vld [vmem:[#allocation17 + $0x508] sm:$0xff]
    %v2213 = vld [vmem:[#allocation17 + $0x510] sm:$0xff]
    %v2214 = vld [vmem:[#allocation17 + $0x518] sm:$0xff]
    %v2215 = vld [vmem:[#allocation17 + $0x520] sm:$0xff]
    %v2216 = vld [vmem:[#allocation17 + $0x528] sm:$0xff]
    %v2217 = vld [vmem:[#allocation17 + $0x530] sm:$0xff]
    %v2218 = vld [vmem:[#allocation17 + $0x538] sm:$0xff]
    %v2219 = vld [vmem:[#allocation17 + $0x540] sm:$0xff]
    %v2220 = vld [vmem:[#allocation17 + $0x548] sm:$0xff]
    %v2221 = vld [vmem:[#allocation17 + $0x550] sm:$0xff]
    %v2222 = vld [vmem:[#allocation17 + $0x558] sm:$0xff]
    %v2223 = vld [vmem:[#allocation17 + $0x560] sm:$0xff]
    %v2224 = vld [vmem:[#allocation17 + $0x568] sm:$0xff]
    %v2225 = vld [vmem:[#allocation17 + $0x570] sm:$0xff]
    %v2226 = vld [vmem:[#allocation17 + $0x578] sm:$0xff]
    %v2227 = vld [vmem:[#allocation17 + $0x580] sm:$0xff]
    %v2228 = vld [vmem:[#allocation17 + $0x588] sm:$0xff]
    %v2229 = vld [vmem:[#allocation17 + $0x590] sm:$0xff]
    %v2230 = vld [vmem:[#allocation17 + $0x598] sm:$0xff]
    %v2231 = vld [vmem:[#allocation17 + $0x5a0] sm:$0xff]
    %v2232 = vld [vmem:[#allocation17 + $0x5a8] sm:$0xff]
    %v2233 = vld [vmem:[#allocation17 + $0x5b0] sm:$0xff]
    %v2234 = vld [vmem:[#allocation17 + $0x5b8] sm:$0xff]
    %v2235 = vld [vmem:[#allocation17 + $0x5c0] sm:$0xff]
    %v2236 = vld [vmem:[#allocation17 + $0x5c8] sm:$0xff]
    %v2237 = vld [vmem:[#allocation17 + $0x5d0] sm:$0xff]
    %v2238 = vld [vmem:[#allocation17 + $0x5d8] sm:$0xff]
    %v2239 = vld [vmem:[#allocation17 + $0x5e0] sm:$0xff]
    %v2240 = vld [vmem:[#allocation17 + $0x5e8] sm:$0xff]
    %v2241 = vld [vmem:[#allocation17 + $0x5f0] sm:$0xff]
    %v2242 = vld [vmem:[#allocation17 + $0x5f8] sm:$0xff]
    %v2243 = vld [vmem:[#allocation17 + $0x600] sm:$0xff]
    %v2244 = vld [vmem:[#allocation17 + $0x608] sm:$0xff]
    %v2245 = vld [vmem:[#allocation17 + $0x610] sm:$0xff]
    %v2246 = vld [vmem:[#allocation17 + $0x618] sm:$0xff]
    %v2247 = vld [vmem:[#allocation17 + $0x620] sm:$0xff]
    %v2248 = vld [vmem:[#allocation17 + $0x628] sm:$0xff]
    %v2249 = vld [vmem:[#allocation17 + $0x630] sm:$0xff]
    %v2250 = vld [vmem:[#allocation17 + $0x638] sm:$0xff]
    %v2251 = vld [vmem:[#allocation17 + $0x640] sm:$0xff]
    %v2252 = vld [vmem:[#allocation17 + $0x648] sm:$0xff]
    %v2253 = vld [vmem:[#allocation17 + $0x650] sm:$0xff]
    %v2254 = vld [vmem:[#allocation17 + $0x658] sm:$0xff]
    %v2255 = vld [vmem:[#allocation17 + $0x660] sm:$0xff]
    %v2256 = vld [vmem:[#allocation17 + $0x668] sm:$0xff]
    %v2257 = vld [vmem:[#allocation17 + $0x670] sm:$0xff]
    %v2258 = vld [vmem:[#allocation17 + $0x678] sm:$0xff]
    %v2259 = vld [vmem:[#allocation17 + $0x680] sm:$0xff]
    %v2260 = vld [vmem:[#allocation17 + $0x688] sm:$0xff]
    %v2261 = vld [vmem:[#allocation17 + $0x690] sm:$0xff]
    %v2262 = vld [vmem:[#allocation17 + $0x698] sm:$0xff]
    %v2263 = vld [vmem:[#allocation17 + $0x6a0] sm:$0xff]
    %v2264 = vld [vmem:[#allocation17 + $0x6a8] sm:$0xff]
    %v2265 = vld [vmem:[#allocation17 + $0x6b0] sm:$0xff]
    %v2266 = vld [vmem:[#allocation17 + $0x6b8] sm:$0xff]
    %v2267 = vld [vmem:[#allocation17 + $0x6c0] sm:$0xff]
    %v2268 = vld [vmem:[#allocation17 + $0x6c8] sm:$0xff]
    %v2269 = vld [vmem:[#allocation17 + $0x6d0] sm:$0xff]
    %v2270 = vld [vmem:[#allocation17 + $0x6d8] sm:$0xff]
    %v2271 = vld [vmem:[#allocation17 + $0x6e0] sm:$0xff]
    %v2272 = vld [vmem:[#allocation17 + $0x6e8] sm:$0xff]
    %v2273 = vld [vmem:[#allocation17 + $0x6f0] sm:$0xff]
    %v2274 = vld [vmem:[#allocation17 + $0x6f8] sm:$0xff]
    %v2275 = vld [vmem:[#allocation17 + $0x700] sm:$0xff]
    %v2276 = vld [vmem:[#allocation17 + $0x708] sm:$0xff]
    %v2277 = vld [vmem:[#allocation17 + $0x710] sm:$0xff]
    %v2278 = vld [vmem:[#allocation17 + $0x718] sm:$0xff]
    %v2279 = vld [vmem:[#allocation17 + $0x720] sm:$0xff]
    %v2280 = vld [vmem:[#allocation17 + $0x728] sm:$0xff]
    %v2281 = vld [vmem:[#allocation17 + $0x730] sm:$0xff]
    %v2282 = vld [vmem:[#allocation17 + $0x738] sm:$0xff]
    %v2283 = vld [vmem:[#allocation17 + $0x740] sm:$0xff]
    %v2284 = vld [vmem:[#allocation17 + $0x748] sm:$0xff]
    %v2285 = vld [vmem:[#allocation17 + $0x750] sm:$0xff]
    %v2286 = vld [vmem:[#allocation17 + $0x758] sm:$0xff]
    %v2287 = vld [vmem:[#allocation17 + $0x760] sm:$0xff]
    %v2288 = vld [vmem:[#allocation17 + $0x768] sm:$0xff]
    %v2289 = vld [vmem:[#allocation17 + $0x770] sm:$0xff]
    %v2290 = vld [vmem:[#allocation17 + $0x778] sm:$0xff]
    %v2291 = vld [vmem:[#allocation17 + $0x780] sm:$0xff]
    %v2292 = vld [vmem:[#allocation17 + $0x788] sm:$0xff]
    %v2293 = vld [vmem:[#allocation17 + $0x790] sm:$0xff]
    %v2294 = vld [vmem:[#allocation17 + $0x798] sm:$0xff]
    %v2295 = vld [vmem:[#allocation17 + $0x7a0] sm:$0xff]
    %v2296 = vld [vmem:[#allocation17 + $0x7a8] sm:$0xff]
    %v2297 = vld [vmem:[#allocation17 + $0x7b0] sm:$0xff]
    %v2298 = vld [vmem:[#allocation17 + $0x7b8] sm:$0xff]
    %v2299 = vld [vmem:[#allocation17 + $0x7c0] sm:$0xff]
    %v2300 = vld [vmem:[#allocation17 + $0x7c8] sm:$0xff]
    %v2301 = vld [vmem:[#allocation17 + $0x7d0] sm:$0xff]
    %v2302 = vld [vmem:[#allocation17 + $0x7d8] sm:$0xff]
    %v2303 = vld [vmem:[#allocation17 + $0x7e0] sm:$0xff]
    %v2304 = vld [vmem:[#allocation17 + $0x7e8] sm:$0xff]
    %v2305 = vld [vmem:[#allocation17 + $0x7f0] sm:$0xff]
    %v2306 = vld [vmem:[#allocation17 + $0x7f8] sm:$0xff]
    %v2307 = vld [vmem:[#allocation17 + $0x800] sm:$0xff]
    %v2308 = vld [vmem:[#allocation17 + $0x808] sm:$0xff]
    %v2309 = vld [vmem:[#allocation17 + $0x810] sm:$0xff]
    %v2310 = vld [vmem:[#allocation17 + $0x818] sm:$0xff]
    %v2311 = vld [vmem:[#allocation17 + $0x820] sm:$0xff]
    %v2312 = vld [vmem:[#allocation17 + $0x828] sm:$0xff]
    %v2313 = vld [vmem:[#allocation17 + $0x830] sm:$0xff]
    %v2314 = vld [vmem:[#allocation17 + $0x838] sm:$0xff]
    %v2315 = vld [vmem:[#allocation17 + $0x840] sm:$0xff]
    %v2316 = vld [vmem:[#allocation17 + $0x848] sm:$0xff]
    %v2317 = vld [vmem:[#allocation17 + $0x850] sm:$0xff]
    %v2318 = vld [vmem:[#allocation17 + $0x858] sm:$0xff]
    %v2319 = vld [vmem:[#allocation17 + $0x860] sm:$0xff]
    %v2320 = vld [vmem:[#allocation17 + $0x868] sm:$0xff]
    %v2321 = vld [vmem:[#allocation17 + $0x870] sm:$0xff]
    %v2322 = vld [vmem:[#allocation17 + $0x878] sm:$0xff]
    %v2323 = vld [vmem:[#allocation19] sm:$0xf]
    %v2325 = vlaneseq
    %v2326 = vshrl.u32 %v2325, 7
    %v2327 = vsub.s32 0, %v2326
    %v2328 = vrot.slane %v2323, %v2327
    %v2329 = vlaneseq
    %v2330 = vshrl.u32 %v2329, 7
    %v2331 = vsub.s32 1, %v2330
    %v2332 = vrot.slane %v2323, %v2331
    %v2333 = vlaneseq
    %v2334 = vshrl.u32 %v2333, 7
    %v2335 = vsub.s32 2, %v2334
    %v2336 = vrot.slane %v2323, %v2335
    %v2337 = vlaneseq
    %v2338 = vshrl.u32 %v2337, 7
    %v2339 = vsub.s32 3, %v2338
    %v2340 = vrot.slane %v2323, %v2339
    %vm2345 = vcmask 261120
    %v2347 = vsel %vm2345, %v2048, 0
    %2349 = vmatprep.subr.mxu0 %v2052
    %2350 = vmatpush1.msra.mxu0 %v2051
    %2351 = vmatprep.subr.mxu0 %v2056
    %2352 = vmatpush1.msra.mxu0 %v2055
    %2353 = vmatprep.subr.mxu0 %v2060
    %2354 = vmatpush1.msra.mxu0 %v2059
    %2355 = vmatprep.subr.mxu0 %v2064
    %2356 = vmatpush1.msra.mxu0 %v2063
    %2357 = vmatprep.subr.mxu0 %v2068
    %2358 = vmatpush1.msra.mxu0 %v2067
    %2359 = vmatprep.subr.mxu0 %v2072
    %2360 = vmatpush1.msra.mxu0 %v2071
    %2361 = vmatprep.subr.mxu0 %v2076
    %2362 = vmatpush1.msra.mxu0 %v2075
    %2363 = vmatprep.subr.mxu0 %v2080
    %2364 = vmatpush1.msra.mxu0 %v2079
    %2365 = vmatprep.subr.mxu0 %v2084
    %2366 = vmatpush1.msra.mxu0 %v2083
    %2367 = vmatprep.subr.mxu0 %v2088
    %2368 = vmatpush1.msra.mxu0 %v2087
    %2369 = vmatprep.subr.mxu0 %v2092
    %2370 = vmatpush1.msra.mxu0 %v2091
    %2371 = vmatprep.subr.mxu0 %v2096
    %2372 = vmatpush1.msra.mxu0 %v2095
    %2373 = vmatprep.subr.mxu0 %v2100
    %2374 = vmatpush1.msra.mxu0 %v2099
    %2375 = vmatprep.subr.mxu0 %v2104
    %2376 = vmatpush1.msra.mxu0 %v2103
    %2377 = vmatprep.subr.mxu0 %v2108
    %2378 = vmatpush1.msra.mxu0 %v2107
    %2379 = vmatprep.subr.mxu0 %v2112
    %2380 = vmatpush1.msra.mxu0 %v2111
    %2381 = vmatprep.subr.mxu0 %v2116
    %2382 = vmatpush1.msra.mxu0 %v2115
    %2383 = vmatprep.subr.mxu0 %v2120
    %2384 = vmatpush1.msra.mxu0 %v2119
    %2385 = vmatprep.subr.mxu0 %v2124
    %2386 = vmatpush1.msra.mxu0 %v2123
    %2387 = vmatprep.subr.mxu0 %v2128
    %2388 = vmatpush1.msra.mxu0 %v2127
    %2389 = vmatprep.subr.mxu0 %v2132
    %2390 = vmatpush1.msra.mxu0 %v2131
    %2391 = vmatprep.subr.mxu0 %v2136
    %2392 = vmatpush1.msra.mxu0 %v2135
    %2393 = vmatprep.subr.mxu0 %v2140
    %2394 = vmatpush1.msra.mxu0 %v2139
    %2395 = vmatprep.subr.mxu0 %v2144
    %2396 = vmatpush1.msra.mxu0 %v2143
    %2397 = vmatprep.subr.mxu0 %v2148
    %2398 = vmatpush1.msra.mxu0 %v2147
    %2399 = vmatprep.subr.mxu0 %v2152
    %2400 = vmatpush1.msra.mxu0 %v2151
    %2401 = vmatprep.subr.mxu0 %v2156
    %2402 = vmatpush1.msra.mxu0 %v2155
    %2403 = vmatprep.subr.mxu0 %v2160
    %2404 = vmatpush1.msra.mxu0 %v2159
    %2405 = vmatprep.subr.mxu0 %v2164
    %2406 = vmatpush1.msra.mxu0 %v2163
    %2407 = vmatprep.subr.mxu0 %v2168
    %2408 = vmatpush1.msra.mxu0 %v2167
    %2409 = vmatprep.subr.mxu0 %v2172
    %2410 = vmatpush1.msra.mxu0 %v2171
    %2411 = vmatprep.subr.mxu0 %v2176
    %2412 = vmatpush1.msra.mxu0 %v2175
    %2413 = vmatprep.mubr.f32.mxu0 %v1940
    %2414 = vmatmul.mubr.f32.gmra.mrb[0].mxu0 %v1939
    %v2415 = vpop.f32.mrb[0].mxu0
    %v2416 = vadd.f32 %v2328, %v2415
    %v2417 = vpop.f32.mrb[0].mxu0
    %v2418 = vadd.f32 %v2332, %v2417
    %2419 = vdwg.mxu0
    %2420 = vmatprep.subr.mxu0 %v2180
    %2421 = vmatpush1.msra.mxu0 %v2179
    %2422 = vmatprep.subr.mxu0 %v2184
    %2423 = vmatpush1.msra.mxu0 %v2183
    %2424 = vmatprep.subr.mxu0 %v2188
    %2425 = vmatpush1.msra.mxu0 %v2187
    %2426 = vmatprep.subr.mxu0 %v2192
    %2427 = vmatpush1.msra.mxu0 %v2191
    %2428 = vmatprep.subr.mxu0 %v2196
    %2429 = vmatpush1.msra.mxu0 %v2195
    %2430 = vmatprep.subr.mxu0 %v2200
    %2431 = vmatpush1.msra.mxu0 %v2199
    %2432 = vmatprep.subr.mxu0 %v2204
    %2433 = vmatpush1.msra.mxu0 %v2203
    %2434 = vmatprep.subr.mxu0 %v2208
    %2435 = vmatpush1.msra.mxu0 %v2207
    %2436 = vmatprep.subr.mxu0 %v2212
    %2437 = vmatpush1.msra.mxu0 %v2211
    %2438 = vmatprep.subr.mxu0 %v2216
    %2439 = vmatpush1.msra.mxu0 %v2215
    %2440 = vmatprep.subr.mxu0 %v2220
    %2441 = vmatpush1.msra.mxu0 %v2219
    %2442 = vmatprep.subr.mxu0 %v2224
    %2443 = vmatpush1.msra.mxu0 %v2223
    %2444 = vmatprep.subr.mxu0 %v2228
    %2445 = vmatpush1.msra.mxu0 %v2227
    %2446 = vmatprep.subr.mxu0 %v2232
    %2447 = vmatpush1.msra.mxu0 %v2231
    %2448 = vmatprep.subr.mxu0 %v2236
    %2449 = vmatpush1.msra.mxu0 %v2235
    %2450 = vmatprep.subr.mxu0 %v2240
    %2451 = vmatpush1.msra.mxu0 %v2239
    %2452 = vmatprep.subr.mxu0 %v2244
    %2453 = vmatpush1.msra.mxu0 %v2243
    %2454 = vmatprep.subr.mxu0 %v2248
    %2455 = vmatpush1.msra.mxu0 %v2247
    %2456 = vmatprep.subr.mxu0 %v2252
    %2457 = vmatpush1.msra.mxu0 %v2251
    %2458 = vmatprep.subr.mxu0 %v2256
    %2459 = vmatpush1.msra.mxu0 %v2255
    %2460 = vmatprep.subr.mxu0 %v2260
    %2461 = vmatpush1.msra.mxu0 %v2259
    %2462 = vmatprep.subr.mxu0 %v2264
    %2463 = vmatpush1.msra.mxu0 %v2263
    %2464 = vmatprep.subr.mxu0 %v2268
    %2465 = vmatpush1.msra.mxu0 %v2267
    %2466 = vmatprep.subr.mxu0 %v2272
    %2467 = vmatpush1.msra.mxu0 %v2271
    %2468 = vmatprep.subr.mxu0 %v2276
    %2469 = vmatpush1.msra.mxu0 %v2275
    %2470 = vmatprep.subr.mxu0 %v2280
    %2471 = vmatpush1.msra.mxu0 %v2279
    %2472 = vmatprep.subr.mxu0 %v2284
    %2473 = vmatpush1.msra.mxu0 %v2283
    %2474 = vmatprep.subr.mxu0 %v2288
    %2475 = vmatpush1.msra.mxu0 %v2287
    %2476 = vmatprep.subr.mxu0 %v2292
    %2477 = vmatpush1.msra.mxu0 %v2291
    %2478 = vmatprep.subr.mxu0 %v2296
    %2479 = vmatpush1.msra.mxu0 %v2295
    %2480 = vmatprep.subr.mxu0 %v2300
    %2481 = vmatpush1.msra.mxu0 %v2299
    %2482 = vmatprep.subr.mxu0 %v2304
    %2483 = vmatpush1.msra.mxu0 %v2303
    %2484 = vmatprep.mubr.f32.mxu0 %v1942
    %2485 = vmatmul.mubr.f32.gmra.mrb[0].mxu0 %v1941
    %v2486 = vpop.f32.mrb[0].mxu0
    %v2487 = vadd.f32 %v2416, %v2486
    %v2488 = vpop.f32.mrb[0].mxu0
    %v2489 = vadd.f32 %v2418, %v2488
    %2490 = vdwg.mxu0
    %2491 = vmatprep.subr.mxu0 %v2308
    %2492 = vmatpush1.msra.mxu0 %v2307
    %2493 = vmatprep.subr.mxu0 %v2312
    %2494 = vmatpush1.msra.mxu0 %v2311
    %2495 = vmatprep.subr.mxu0 %v2316
    %2496 = vmatpush1.msra.mxu0 %v2315
    %2497 = vmatprep.subr.mxu0 %v2320
    %2498 = vmatpush1.msra.mxu0 %v2319
    %2499 = vmatprep.subr.mxu0 0.0
    %2500 = vmatpush1.msra.mxu0 0.0
    %2501 = vmatprep.subr.mxu0 0.0
    %2502 = vmatpush1.msra.mxu0 0.0
    %2503 = vmatprep.subr.mxu0 0.0
    %2504 = vmatpush1.msra.mxu0 0.0
    %2505 = vmatprep.subr.mxu0 0.0
    %2506 = vmatpush1.msra.mxu0 0.0
    %2507 = vmatprep.subr.mxu0 0.0
    %2508 = vmatpush1.msra.mxu0 0.0
    %2509 = vmatprep.subr.mxu0 0.0
    %2510 = vmatpush1.msra.mxu0 0.0
    %2511 = vmatprep.subr.mxu0 0.0
    %2512 = vmatpush1.msra.mxu0 0.0
    %2513 = vmatprep.subr.mxu0 0.0
    %2514 = vmatpush1.msra.mxu0 0.0
    %2515 = vmatprep.subr.mxu0 0.0
    %2516 = vmatpush1.msra.mxu0 0.0
    %2517 = vmatprep.subr.mxu0 0.0
    %2518 = vmatpush1.msra.mxu0 0.0
    %2519 = vmatprep.subr.mxu0 0.0
    %2520 = vmatpush1.msra.mxu0 0.0
    %2521 = vmatprep.subr.mxu0 0.0
    %2522 = vmatpush1.msra.mxu0 0.0
    %2523 = vmatprep.subr.mxu0 0.0
    %2524 = vmatpush1.msra.mxu0 0.0
    %2525 = vmatprep.subr.mxu0 0.0
    %2526 = vmatpush1.msra.mxu0 0.0
    %2527 = vmatprep.subr.mxu0 0.0
    %2528 = vmatpush1.msra.mxu0 0.0
    %2529 = vmatprep.subr.mxu0 0.0
    %2530 = vmatpush1.msra.mxu0 0.0
    %2531 = vmatprep.subr.mxu0 0.0
    %2532 = vmatpush1.msra.mxu0 0.0
    %2533 = vmatprep.subr.mxu0 0.0
    %2534 = vmatpush1.msra.mxu0 0.0
    %2535 = vmatprep.subr.mxu0 0.0
    %2536 = vmatpush1.msra.mxu0 0.0
    %2537 = vmatprep.subr.mxu0 0.0
    %2538 = vmatpush1.msra.mxu0 0.0
    %2539 = vmatprep.subr.mxu0 0.0
    %2540 = vmatpush1.msra.mxu0 0.0
    %2541 = vmatprep.subr.mxu0 0.0
    %2542 = vmatpush1.msra.mxu0 0.0
    %2543 = vmatprep.subr.mxu0 0.0
    %2544 = vmatpush1.msra.mxu0 0.0
    %2545 = vmatprep.subr.mxu0 0.0
    %2546 = vmatpush1.msra.mxu0 0.0
    %2547 = vmatprep.subr.mxu0 0.0
    %2548 = vmatpush1.msra.mxu0 0.0
    %2549 = vmatprep.subr.mxu0 0.0
    %2550 = vmatpush1.msra.mxu0 0.0
    %2551 = vmatprep.subr.mxu0 0.0
    %2552 = vmatpush1.msra.mxu0 0.0
    %2553 = vmatprep.subr.mxu0 0.0
    %2554 = vmatpush1.msra.mxu0 0.0
    %2555 = vmatprep.mubr.f32.mxu0 0.0
    %2556 = vmatmul.mubr.f32.gmra.mrb[0].mxu0 %v2347
    %v2557 = vpop.f32.mrb[0].mxu0
    %v2558 = vadd.f32 %v2487, %v2557
    %v2559 = vpop.f32.mrb[0].mxu0
    %v2560 = vadd.f32 %v2489, %v2559
    %2561 = vdwg.mxu0
    %2562 = vmatprep.subr.mxu0 %v2054
    %2563 = vmatpush1.msra.mxu0 %v2053
    %2564 = vmatprep.subr.mxu0 %v2058
    %2565 = vmatpush1.msra.mxu0 %v2057
    %2566 = vmatprep.subr.mxu0 %v2062
    %2567 = vmatpush1.msra.mxu0 %v2061
    %2568 = vmatprep.subr.mxu0 %v2066
    %2569 = vmatpush1.msra.mxu0 %v2065
    %2570 = vmatprep.subr.mxu0 %v2070
    %2571 = vmatpush1.msra.mxu0 %v2069
    %2572 = vmatprep.subr.mxu0 %v2074
    %2573 = vmatpush1.msra.mxu0 %v2073
    %2574 = vmatprep.subr.mxu0 %v2078
    %2575 = vmatpush1.msra.mxu0 %v2077
    %2576 = vmatprep.subr.mxu0 %v2082
    %2577 = vmatpush1.msra.mxu0 %v2081
    %2578 = vmatprep.subr.mxu0 %v2086
    %2579 = vmatpush1.msra.mxu0 %v2085
    %2580 = vmatprep.subr.mxu0 %v2090
    %2581 = vmatpush1.msra.mxu0 %v2089
    %2582 = vmatprep.subr.mxu0 %v2094
    %2583 = vmatpush1.msra.mxu0 %v2093
    %2584 = vmatprep.subr.mxu0 %v2098
    %2585 = vmatpush1.msra.mxu0 %v2097
    %2586 = vmatprep.subr.mxu0 %v2102
    %2587 = vmatpush1.msra.mxu0 %v2101
    %2588 = vmatprep.subr.mxu0 %v2106
    %2589 = vmatpush1.msra.mxu0 %v2105
    %2590 = vmatprep.subr.mxu0 %v2110
    %2591 = vmatpush1.msra.mxu0 %v2109
    %2592 = vmatprep.subr.mxu0 %v2114
    %2593 = vmatpush1.msra.mxu0 %v2113
    %2594 = vmatprep.subr.mxu0 %v2118
    %2595 = vmatpush1.msra.mxu0 %v2117
    %2596 = vmatprep.subr.mxu0 %v2122
    %2597 = vmatpush1.msra.mxu0 %v2121
    %2598 = vmatprep.subr.mxu0 %v2126
    %2599 = vmatpush1.msra.mxu0 %v2125
    %2600 = vmatprep.subr.mxu0 %v2130
    %2601 = vmatpush1.msra.mxu0 %v2129
    %2602 = vmatprep.subr.mxu0 %v2134
    %2603 = vmatpush1.msra.mxu0 %v2133
    %2604 = vmatprep.subr.mxu0 %v2138
    %2605 = vmatpush1.msra.mxu0 %v2137
    %2606 = vmatprep.subr.mxu0 %v2142
    %2607 = vmatpush1.msra.mxu0 %v2141
    %2608 = vmatprep.subr.mxu0 %v2146
    %2609 = vmatpush1.msra.mxu0 %v2145
    %2610 = vmatprep.subr.mxu0 %v2150
    %2611 = vmatpush1.msra.mxu0 %v2149
    %2612 = vmatprep.subr.mxu0 %v2154
    %2613 = vmatpush1.msra.mxu0 %v2153
    %2614 = vmatprep.subr.mxu0 %v2158
    %2615 = vmatpush1.msra.mxu0 %v2157
    %2616 = vmatprep.subr.mxu0 %v2162
    %2617 = vmatpush1.msra.mxu0 %v2161
    %2618 = vmatprep.subr.mxu0 %v2166
    %2619 = vmatpush1.msra.mxu0 %v2165
    %2620 = vmatprep.subr.mxu0 %v2170
    %2621 = vmatpush1.msra.mxu0 %v2169
    %2622 = vmatprep.subr.mxu0 %v2174
    %2623 = vmatpush1.msra.mxu0 %v2173
    %2624 = vmatprep.subr.mxu0 %v2178
    %2625 = vmatpush1.msra.mxu0 %v2177
    %2626 = vmatprep.mubr.f32.mxu0 %v1940
    %2627 = vmatmul.mubr.f32.gmra.mrb[0].mxu0 %v1939
    %v2628 = vpop.f32.mrb[0].mxu0
    %v2629 = vadd.f32 %v2336, %v2628
    %v2630 = vpop.f32.mrb[0].mxu0
    %v2631 = vadd.f32 %v2340, %v2630
    %2632 = vdwg.mxu0
    %2633 = vmatprep.subr.mxu0 %v2182
    %2634 = vmatpush1.msra.mxu0 %v2181
    %2635 = vmatprep.subr.mxu0 %v2186
    %2636 = vmatpush1.msra.mxu0 %v2185
    %2637 = vmatprep.subr.mxu0 %v2190
    %2638 = vmatpush1.msra.mxu0 %v2189
    %2639 = vmatprep.subr.mxu0 %v2194
    %2640 = vmatpush1.msra.mxu0 %v2193
    %2641 = vmatprep.subr.mxu0 %v2198
    %2642 = vmatpush1.msra.mxu0 %v2197
    %2643 = vmatprep.subr.mxu0 %v2202
    %2644 = vmatpush1.msra.mxu0 %v2201
    %2645 = vmatprep.subr.mxu0 %v2206
    %2646 = vmatpush1.msra.mxu0 %v2205
    %2647 = vmatprep.subr.mxu0 %v2210
    %2648 = vmatpush1.msra.mxu0 %v2209
    %2649 = vmatprep.subr.mxu0 %v2214
    %2650 = vmatpush1.msra.mxu0 %v2213
    %2651 = vmatprep.subr.mxu0 %v2218
    %2652 = vmatpush1.msra.mxu0 %v2217
    %2653 = vmatprep.subr.mxu0 %v2222
    %2654 = vmatpush1.msra.mxu0 %v2221
    %2655 = vmatprep.subr.mxu0 %v2226
    %2656 = vmatpush1.msra.mxu0 %v2225
    %2657 = vmatprep.subr.mxu0 %v2230
    %2658 = vmatpush1.msra.mxu0 %v2229
    %2659 = vmatprep.subr.mxu0 %v2234
    %2660 = vmatpush1.msra.mxu0 %v2233
    %2661 = vmatprep.subr.mxu0 %v2238
    %2662 = vmatpush1.msra.mxu0 %v2237
    %2663 = vmatprep.subr.mxu0 %v2242
    %2664 = vmatpush1.msra.mxu0 %v2241
    %2665 = vmatprep.subr.mxu0 %v2246
    %2666 = vmatpush1.msra.mxu0 %v2245
    %2667 = vmatprep.subr.mxu0 %v2250
    %2668 = vmatpush1.msra.mxu0 %v2249
    %2669 = vmatprep.subr.mxu0 %v2254
    %2670 = vmatpush1.msra.mxu0 %v2253
    %2671 = vmatprep.subr.mxu0 %v2258
    %2672 = vmatpush1.msra.mxu0 %v2257
    %2673 = vmatprep.subr.mxu0 %v2262
    %2674 = vmatpush1.msra.mxu0 %v2261
    %2675 = vmatprep.subr.mxu0 %v2266
    %2676 = vmatpush1.msra.mxu0 %v2265
    %2677 = vmatprep.subr.mxu0 %v2270
    %2678 = vmatpush1.msra.mxu0 %v2269
    %2679 = vmatprep.subr.mxu0 %v2274
    %2680 = vmatpush1.msra.mxu0 %v2273
    %2681 = vmatprep.subr.mxu0 %v2278
    %2682 = vmatpush1.msra.mxu0 %v2277
    %2683 = vmatprep.subr.mxu0 %v2282
    %2684 = vmatpush1.msra.mxu0 %v2281
    %2685 = vmatprep.subr.mxu0 %v2286
    %2686 = vmatpush1.msra.mxu0 %v2285
    %2687 = vmatprep.subr.mxu0 %v2290
    %2688 = vmatpush1.msra.mxu0 %v2289
    %2689 = vmatprep.subr.mxu0 %v2294
    %2690 = vmatpush1.msra.mxu0 %v2293
    %2691 = vmatprep.subr.mxu0 %v2298
    %2692 = vmatpush1.msra.mxu0 %v2297
    %2693 = vmatprep.subr.mxu0 %v2302
    %2694 = vmatpush1.msra.mxu0 %v2301
    %2695 = vmatprep.subr.mxu0 %v2306
    %2696 = vmatpush1.msra.mxu0 %v2305
    %2697 = vmatprep.mubr.f32.mxu0 %v1942
    %2698 = vmatmul.mubr.f32.gmra.mrb[0].mxu0 %v1941
    %v2699 = vpop.f32.mrb[0].mxu0
    %v2700 = vadd.f32 %v2629, %v2699
    %v2701 = vpop.f32.mrb[0].mxu0
    %v2702 = vadd.f32 %v2631, %v2701
    %2703 = vdwg.mxu0
    %2704 = vmatprep.subr.mxu0 %v2310
    %2705 = vmatpush1.msra.mxu0 %v2309
    %2706 = vmatprep.subr.mxu0 %v2314
    %2707 = vmatpush1.msra.mxu0 %v2313
    %2708 = vmatprep.subr.mxu0 %v2318
    %2709 = vmatpush1.msra.mxu0 %v2317
    %2710 = vmatprep.subr.mxu0 %v2322
    %2711 = vmatpush1.msra.mxu0 %v2321
    %2712 = vmatprep.subr.mxu0 0.0
    %2713 = vmatpush1.msra.mxu0 0.0
    %2714 = vmatprep.subr.mxu0 0.0
    %2715 = vmatpush1.msra.mxu0 0.0
    %2716 = vmatprep.subr.mxu0 0.0
    %2717 = vmatpush1.msra.mxu0 0.0
    %2718 = vmatprep.subr.mxu0 0.0
    %2719 = vmatpush1.msra.mxu0 0.0
    %2720 = vmatprep.subr.mxu0 0.0
    %2721 = vmatpush1.msra.mxu0 0.0
    %2722 = vmatprep.subr.mxu0 0.0
    %2723 = vmatpush1.msra.mxu0 0.0
    %2724 = vmatprep.subr.mxu0 0.0
    %2725 = vmatpush1.msra.mxu0 0.0
    %2726 = vmatprep.subr.mxu0 0.0
    %2727 = vmatpush1.msra.mxu0 0.0
    %2728 = vmatprep.subr.mxu0 0.0
    %2729 = vmatpush1.msra.mxu0 0.0
    %2730 = vmatprep.subr.mxu0 0.0
    %2731 = vmatpush1.msra.mxu0 0.0
    %2732 = vmatprep.subr.mxu0 0.0
    %2733 = vmatpush1.msra.mxu0 0.0
    %2734 = vmatprep.subr.mxu0 0.0
    %2735 = vmatpush1.msra.mxu0 0.0
    %2736 = vmatprep.subr.mxu0 0.0
    %2737 = vmatpush1.msra.mxu0 0.0
    %2738 = vmatprep.subr.mxu0 0.0
    %2739 = vmatpush1.msra.mxu0 0.0
    %2740 = vmatprep.subr.mxu0 0.0
    %2741 = vmatpush1.msra.mxu0 0.0
    %2742 = vmatprep.subr.mxu0 0.0
    %2743 = vmatpush1.msra.mxu0 0.0
    %2744 = vmatprep.subr.mxu0 0.0
    %2745 = vmatpush1.msra.mxu0 0.0
    %2746 = vmatprep.subr.mxu0 0.0
    %2747 = vmatpush1.msra.mxu0 0.0
    %2748 = vmatprep.subr.mxu0 0.0
    %2749 = vmatpush1.msra.mxu0 0.0
    %2750 = vmatprep.subr.mxu0 0.0
    %2751 = vmatpush1.msra.mxu0 0.0
    %2752 = vmatprep.subr.mxu0 0.0
    %2753 = vmatpush1.msra.mxu0 0.0
    %2754 = vmatprep.subr.mxu0 0.0
    %2755 = vmatpush1.msra.mxu0 0.0
    %2756 = vmatprep.subr.mxu0 0.0
    %2757 = vmatpush1.msra.mxu0 0.0
    %2758 = vmatprep.subr.mxu0 0.0
    %2759 = vmatpush1.msra.mxu0 0.0
    %2760 = vmatprep.subr.mxu0 0.0
    %2761 = vmatpush1.msra.mxu0 0.0
    %2762 = vmatprep.subr.mxu0 0.0
    %2763 = vmatpush1.msra.mxu0 0.0
    %2764 = vmatprep.subr.mxu0 0.0
    %2765 = vmatpush1.msra.mxu0 0.0
    %2766 = vmatprep.subr.mxu0 0.0
    %2767 = vmatpush1.msra.mxu0 0.0
    %2768 = vmatprep.mubr.f32.mxu0 0.0
    %2769 = vmatmul.mubr.f32.gmra.mrb[0].mxu0 %v2347
    %v2770 = vpop.f32.mrb[0].mxu0
    %v2771 = vadd.f32 %v2700, %v2770
    %v2772 = vpop.f32.mrb[0].mxu0
    %v2773 = vadd.f32 %v2702, %v2772
    %2774 = vdwg.mxu0
    %vm2775 = vcmask 1041408
    %v2776 = vsel %vm2775, %v2558, 0.0
    %v2777 = vsel %vm2775, %v2560, 0.0
    %v2778 = vadd.f32 %v2776, %v2777
    %2779 = vadd.xlane.f32.xlu0 %v2778
    %v2780 = vpop.xlane.xlu0 %2779
    %v2781 = vrcp.pop 256.0
    %v2782 = vmul.f32 %v2780, %v2781
    %v2783 = vsub.f32 %v2558, %v2782
    %v2784 = vsub.f32 %v2560, %v2782
    %v2785 = vmul.f32 %v2783, %v2783
    %v2786 = vmul.f32 %v2784, %v2784
    %v2787 = vsel %vm2775, %v2785, 0.0
    %v2788 = vsel %vm2775, %v2786, 0.0
    %v2789 = vadd.f32 %v2787, %v2788
    %2790 = vadd.xlane.f32.xlu0 %v2789
    %v2791 = vpop.xlane.xlu0 %2790
    %v2792 = vmul.f32 %v2791, %v2781
    %v2793 = vadd.f32 %v2792, 1e-05
    %v2794 = vrsqrt.pop %v2793
    %v2795 = vmul.f32 %v2783, %v2794
    %v2796 = vmul.f32 %v2784, %v2794
    %v2797 = vsel %vm2775, %v2771, 0.0
    %v2798 = vsel %vm2775, %v2773, 0.0
    %v2799 = vadd.f32 %v2797, %v2798
    %2800 = vadd.xlane.f32.xlu0 %v2799
    %v2801 = vpop.xlane.xlu0 %2800
    %v2802 = vmul.f32 %v2801, %v2781
    %v2803 = vsub.f32 %v2771, %v2802
    %v2804 = vsub.f32 %v2773, %v2802
    %v2805 = vmul.f32 %v2803, %v2803
    %v2806 = vmul.f32 %v2804, %v2804
    %v2807 = vsel %vm2775, %v2805, 0.0
    %v2808 = vsel %vm2775, %v2806, 0.0
    %v2809 = vadd.f32 %v2807, %v2808
    %2810 = vadd.xlane.f32.xlu0 %v2809
    %v2811 = vpop.xlane.xlu0 %2810
    %v2812 = vmul.f32 %v2811, %v2781
    %v2813 = vadd.f32 %v2812, 1e-05
    %v2814 = vrsqrt.pop %v2813
    %v2815 = vmul.f32 %v2803, %v2814
    %v2816 = vmul.f32 %v2804, %v2814
    %v2817 = vld [vmem:[#allocation20] sm:$0xf]
    %v2819 = vlaneseq
    %v2820 = vshrl.u32 %v2819, 7
    %v2821 = vsub.s32 0, %v2820
    %v2822 = vrot.slane %v2817, %v2821
    %v2823 = vlaneseq
    %v2824 = vshrl.u32 %v2823, 7
    %v2825 = vsub.s32 1, %v2824
    %v2826 = vrot.slane %v2817, %v2825
    %v2827 = vlaneseq
    %v2828 = vshrl.u32 %v2827, 7
    %v2829 = vsub.s32 2, %v2828
    %v2830 = vrot.slane %v2817, %v2829
    %v2831 = vlaneseq
    %v2832 = vshrl.u32 %v2831, 7
    %v2833 = vsub.s32 3, %v2832
    %v2834 = vrot.slane %v2817, %v2833
    %v2839 = vmul.f32 %v2795, %v2822
    %v2840 = vmul.f32 %v2796, %v2826
    %v2841 = vmul.f32 %v2815, %v2830
    %v2842 = vmul.f32 %v2816, %v2834
    %v2843 = vld [vmem:[#allocation22] sm:$0xf]
    %v2845 = vlaneseq
    %v2846 = vshrl.u32 %v2845, 7
    %v2847 = vsub.s32 0, %v2846
    %v2848 = vrot.slane %v2843, %v2847
    %v2849 = vlaneseq
    %v2850 = vshrl.u32 %v2849, 7
    %v2851 = vsub.s32 1, %v2850
    %v2852 = vrot.slane %v2843, %v2851
    %v2853 = vlaneseq
    %v2854 = vshrl.u32 %v2853, 7
    %v2855 = vsub.s32 2, %v2854
    %v2856 = vrot.slane %v2843, %v2855
    %v2857 = vlaneseq
    %v2858 = vshrl.u32 %v2857, 7
    %v2859 = vsub.s32 3, %v2858
    %v2860 = vrot.slane %v2843, %v2859
    %v2865 = vadd.f32 %v2839, %v2848
    %v2866 = vadd.f32 %v2840, %v2852
    %v2867 = vadd.f32 %v2841, %v2856
    %v2868 = vadd.f32 %v2842, %v2860
    %v2869 = vmax.f32 %v2865, 0.0
    %v2870 = vmax.f32 %v2866, 0.0
    %v2871 = vmax.f32 %v2867, 0.0
    %v2872 = vmax.f32 %v2868, 0.0
    %v2873 = vld [vmem:[#allocation23] sm:$0xff]
    %v2874 = vld [vmem:[#allocation23 + $0x8] sm:$0xff]
    %v2875 = vld [vmem:[#allocation23 + $0x10] sm:$0xff]
    %v2876 = vld [vmem:[#allocation23 + $0x18] sm:$0xff]
    %v2877 = vld [vmem:[#allocation23 + $0x20] sm:$0xff]
    %v2878 = vld [vmem:[#allocation23 + $0x28] sm:$0xff]
    %v2879 = vld [vmem:[#allocation23 + $0x30] sm:$0xff]
    %v2880 = vld [vmem:[#allocation23 + $0x38] sm:$0xff]
    %v2881 = vld [vmem:[#allocation23 + $0x40] sm:$0xff]
    %v2882 = vld [vmem:[#allocation23 + $0x48] sm:$0xff]
    %v2883 = vld [vmem:[#allocation23 + $0x50] sm:$0xff]
    %v2884 = vld [vmem:[#allocation23 + $0x58] sm:$0xff]
    %v2885 = vld [vmem:[#allocation23 + $0x60] sm:$0xff]
    %v2886 = vld [vmem:[#allocation23 + $0x68] sm:$0xff]
    %v2887 = vld [vmem:[#allocation23 + $0x70] sm:$0xff]
    %v2888 = vld [vmem:[#allocation23 + $0x78] sm:$0xff]
    %v2889 = vld [vmem:[#allocation23 + $0x80] sm:$0xff]
    %v2890 = vld [vmem:[#allocation23 + $0x88] sm:$0xff]
    %v2891 = vld [vmem:[#allocation23 + $0x90] sm:$0xff]
    %v2892 = vld [vmem:[#allocation23 + $0x98] sm:$0xff]
    %v2893 = vld [vmem:[#allocation23 + $0xa0] sm:$0xff]
    %v2894 = vld [vmem:[#allocation23 + $0xa8] sm:$0xff]
    %v2895 = vld [vmem:[#allocation23 + $0xb0] sm:$0xff]
    %v2896 = vld [vmem:[#allocation23 + $0xb8] sm:$0xff]
    %v2897 = vld [vmem:[#allocation23 + $0xc0] sm:$0xff]
    %v2898 = vld [vmem:[#allocation23 + $0xc8] sm:$0xff]
    %v2899 = vld [vmem:[#allocation23 + $0xd0] sm:$0xff]
    %v2900 = vld [vmem:[#allocation23 + $0xd8] sm:$0xff]
    %v2901 = vld [vmem:[#allocation23 + $0xe0] sm:$0xff]
    %v2902 = vld [vmem:[#allocation23 + $0xe8] sm:$0xff]
    %v2903 = vld [vmem:[#allocation23 + $0xf0] sm:$0xff]
    %v2904 = vld [vmem:[#allocation23 + $0xf8] sm:$0xff]
    %v2905 = vld [vmem:[#allocation23 + $0x100] sm:$0xff]
    %v2906 = vld [vmem:[#allocation23 + $0x108] sm:$0xff]
    %v2907 = vld [vmem:[#allocation23 + $0x110] sm:$0xff]
    %v2908 = vld [vmem:[#allocation23 + $0x118] sm:$0xff]
    %v2909 = vld [vmem:[#allocation23 + $0x120] sm:$0xff]
    %v2910 = vld [vmem:[#allocation23 + $0x128] sm:$0xff]
    %v2911 = vld [vmem:[#allocation23 + $0x130] sm:$0xff]
    %v2912 = vld [vmem:[#allocation23 + $0x138] sm:$0xff]
    %v2913 = vld [vmem:[#allocation23 + $0x140] sm:$0xff]
    %v2914 = vld [vmem:[#allocation23 + $0x148] sm:$0xff]
    %v2915 = vld [vmem:[#allocation23 + $0x150] sm:$0xff]
    %v2916 = vld [vmem:[#allocation23 + $0x158] sm:$0xff]
    %v2917 = vld [vmem:[#allocation23 + $0x160] sm:$0xff]
    %v2918 = vld [vmem:[#allocation23 + $0x168] sm:$0xff]
    %v2919 = vld [vmem:[#allocation23 + $0x170] sm:$0xff]
    %v2920 = vld [vmem:[#allocation23 + $0x178] sm:$0xff]
    %v2921 = vld [vmem:[#allocation23 + $0x180] sm:$0xff]
    %v2922 = vld [vmem:[#allocation23 + $0x188] sm:$0xff]
    %v2923 = vld [vmem:[#allocation23 + $0x190] sm:$0xff]
    %v2924 = vld [vmem:[#allocation23 + $0x198] sm:$0xff]
    %v2925 = vld [vmem:[#allocation23 + $0x1a0] sm:$0xff]
    %v2926 = vld [vmem:[#allocation23 + $0x1a8] sm:$0xff]
    %v2927 = vld [vmem:[#allocation23 + $0x1b0] sm:$0xff]
    %v2928 = vld [vmem:[#allocation23 + $0x1b8] sm:$0xff]
    %v2929 = vld [vmem:[#allocation23 + $0x1c0] sm:$0xff]
    %v2930 = vld [vmem:[#allocation23 + $0x1c8] sm:$0xff]
    %v2931 = vld [vmem:[#allocation23 + $0x1d0] sm:$0xff]
    %v2932 = vld [vmem:[#allocation23 + $0x1d8] sm:$0xff]
    %v2933 = vld [vmem:[#allocation23 + $0x1e0] sm:$0xff]
    %v2934 = vld [vmem:[#allocation23 + $0x1e8] sm:$0xff]
    %v2935 = vld [vmem:[#allocation23 + $0x1f0] sm:$0xff]
    %v2936 = vld [vmem:[#allocation23 + $0x1f8] sm:$0xff]
    %v2937 = vld [vmem:[#allocation25] sm:$0x1]
    %v2939 = vlaneseq
    %v2940 = vshrl.u32 %v2939, 7
    %v2941 = vsub.s32 0, %v2940
    %v2942 = vrot.slane %v2937, %v2941
    %2944 = vmatprep.subr.mxu0 0.0
    %2945 = vmatpush1.msra.mxu0 %v2873
    %2946 = vmatprep.subr.mxu0 0.0
    %2947 = vmatpush1.msra.mxu0 %v2874
    %2948 = vmatprep.subr.mxu0 0.0
    %2949 = vmatpush1.msra.mxu0 %v2875
    %2950 = vmatprep.subr.mxu0 0.0
    %2951 = vmatpush1.msra.mxu0 %v2876
    %2952 = vmatprep.subr.mxu0 0.0
    %2953 = vmatpush1.msra.mxu0 %v2877
    %2954 = vmatprep.subr.mxu0 0.0
    %2955 = vmatpush1.msra.mxu0 %v2878
    %2956 = vmatprep.subr.mxu0 0.0
    %2957 = vmatpush1.msra.mxu0 %v2879
    %2958 = vmatprep.subr.mxu0 0.0
    %2959 = vmatpush1.msra.mxu0 %v2880
    %2960 = vmatprep.subr.mxu0 0.0
    %2961 = vmatpush1.msra.mxu0 %v2881
    %2962 = vmatprep.subr.mxu0 0.0
    %2963 = vmatpush1.msra.mxu0 %v2882
    %2964 = vmatprep.subr.mxu0 0.0
    %2965 = vmatpush1.msra.mxu0 %v2883
    %2966 = vmatprep.subr.mxu0 0.0
    %2967 = vmatpush1.msra.mxu0 %v2884
    %2968 = vmatprep.subr.mxu0 0.0
    %2969 = vmatpush1.msra.mxu0 %v2885
    %2970 = vmatprep.subr.mxu0 0.0
    %2971 = vmatpush1.msra.mxu0 %v2886
    %2972 = vmatprep.subr.mxu0 0.0
    %2973 = vmatpush1.msra.mxu0 %v2887
    %2974 = vmatprep.subr.mxu0 0.0
    %2975 = vmatpush1.msra.mxu0 %v2888
    %2976 = vmatprep.subr.mxu0 0.0
    %2977 = vmatpush1.msra.mxu0 %v2889
    %2978 = vmatprep.subr.mxu0 0.0
    %2979 = vmatpush1.msra.mxu0 %v2890
    %2980 = vmatprep.subr.mxu0 0.0
    %2981 = vmatpush1.msra.mxu0 %v2891
    %2982 = vmatprep.subr.mxu0 0.0
    %2983 = vmatpush1.msra.mxu0 %v2892
    %2984 = vmatprep.subr.mxu0 0.0
    %2985 = vmatpush1.msra.mxu0 %v2893
    %2986 = vmatprep.subr.mxu0 0.0
    %2987 = vmatpush1.msra.mxu0 %v2894
    %2988 = vmatprep.subr.mxu0 0.0
    %2989 = vmatpush1.msra.mxu0 %v2895
    %2990 = vmatprep.subr.mxu0 0.0
    %2991 = vmatpush1.msra.mxu0 %v2896
    %2992 = vmatprep.subr.mxu0 0.0
    %2993 = vmatpush1.msra.mxu0 %v2897
    %2994 = vmatprep.subr.mxu0 0.0
    %2995 = vmatpush1.msra.mxu0 %v2898
    %2996 = vmatprep.subr.mxu0 0.0
    %2997 = vmatpush1.msra.mxu0 %v2899
    %2998 = vmatprep.subr.mxu0 0.0
    %2999 = vmatpush1.msra.mxu0 %v2900
    %3000 = vmatprep.subr.mxu0 0.0
    %3001 = vmatpush1.msra.mxu0 %v2901
    %3002 = vmatprep.subr.mxu0 0.0
    %3003 = vmatpush1.msra.mxu0 %v2902
    %3004 = vmatprep.subr.mxu0 0.0
    %3005 = vmatpush1.msra.mxu0 %v2903
    %3006 = vmatprep.subr.mxu0 0.0
    %3007 = vmatpush1.msra.mxu0 %v2904
    %3008 = vmatprep.mubr.f32.mxu0 %v2870
    %3009 = vmatmul.mubr.f32.gmra.mrb[0].mxu0 %v2869
    %v3010 = vpop.f32.mrb[0].mxu0
    %v3011 = vadd.f32 %v2942, %v3010
    %v3012 = vpop.f32.mrb[0].mxu0
    %3013 = vdwg.mxu0
    %3014 = vmatprep.subr.mxu0 0.0
    %3015 = vmatpush1.msra.mxu0 %v2905
    %3016 = vmatprep.subr.mxu0 0.0
    %3017 = vmatpush1.msra.mxu0 %v2906
    %3018 = vmatprep.subr.mxu0 0.0
    %3019 = vmatpush1.msra.mxu0 %v2907
    %3020 = vmatprep.subr.mxu0 0.0
    %3021 = vmatpush1.msra.mxu0 %v2908
    %3022 = vmatprep.subr.mxu0 0.0
    %3023 = vmatpush1.msra.mxu0 %v2909
    %3024 = vmatprep.subr.mxu0 0.0
    %3025 = vmatpush1.msra.mxu0 %v2910
    %3026 = vmatprep.subr.mxu0 0.0
    %3027 = vmatpush1.msra.mxu0 %v2911
    %3028 = vmatprep.subr.mxu0 0.0
    %3029 = vmatpush1.msra.mxu0 %v2912
    %3030 = vmatprep.subr.mxu0 0.0
    %3031 = vmatpush1.msra.mxu0 %v2913
    %3032 = vmatprep.subr.mxu0 0.0
    %3033 = vmatpush1.msra.mxu0 %v2914
    %3034 = vmatprep.subr.mxu0 0.0
    %3035 = vmatpush1.msra.mxu0 %v2915
    %3036 = vmatprep.subr.mxu0 0.0
    %3037 = vmatpush1.msra.mxu0 %v2916
    %3038 = vmatprep.subr.mxu0 0.0
    %3039 = vmatpush1.msra.mxu0 %v2917
    %3040 = vmatprep.subr.mxu0 0.0
    %3041 = vmatpush1.msra.mxu0 %v2918
    %3042 = vmatprep.subr.mxu0 0.0
    %3043 = vmatpush1.msra.mxu0 %v2919
    %3044 = vmatprep.subr.mxu0 0.0
    %3045 = vmatpush1.msra.mxu0 %v2920
    %3046 = vmatprep.subr.mxu0 0.0
    %3047 = vmatpush1.msra.mxu0 %v2921
    %3048 = vmatprep.subr.mxu0 0.0
    %3049 = vmatpush1.msra.mxu0 %v2922
    %3050 = vmatprep.subr.mxu0 0.0
    %3051 = vmatpush1.msra.mxu0 %v2923
    %3052 = vmatprep.subr.mxu0 0.0
    %3053 = vmatpush1.msra.mxu0 %v2924
    %3054 = vmatprep.subr.mxu0 0.0
    %3055 = vmatpush1.msra.mxu0 %v2925
    %3056 = vmatprep.subr.mxu0 0.0
    %3057 = vmatpush1.msra.mxu0 %v2926
    %3058 = vmatprep.subr.mxu0 0.0
    %3059 = vmatpush1.msra.mxu0 %v2927
    %3060 = vmatprep.subr.mxu0 0.0
    %3061 = vmatpush1.msra.mxu0 %v2928
    %3062 = vmatprep.subr.mxu0 0.0
    %3063 = vmatpush1.msra.mxu0 %v2929
    %3064 = vmatprep.subr.mxu0 0.0
    %3065 = vmatpush1.msra.mxu0 %v2930
    %3066 = vmatprep.subr.mxu0 0.0
    %3067 = vmatpush1.msra.mxu0 %v2931
    %3068 = vmatprep.subr.mxu0 0.0
    %3069 = vmatpush1.msra.mxu0 %v2932
    %3070 = vmatprep.subr.mxu0 0.0
    %3071 = vmatpush1.msra.mxu0 %v2933
    %3072 = vmatprep.subr.mxu0 0.0
    %3073 = vmatpush1.msra.mxu0 %v2934
    %3074 = vmatprep.subr.mxu0 0.0
    %3075 = vmatpush1.msra.mxu0 %v2935
    %3076 = vmatprep.subr.mxu0 0.0
    %3077 = vmatpush1.msra.mxu0 %v2936
    %3078 = vmatprep.mubr.f32.mxu0 %v2872
    %3079 = vmatmul.mubr.f32.gmra.mrb[0].mxu0 %v2871
    %v3080 = vpop.f32.mrb[0].mxu0
    %v3081 = vadd.f32 %v3011, %v3080
    %v3082 = vpop.f32.mrb[0].mxu0
    %3083 = vdwg.mxu0
    %3084 = vst [vmem:[%s17] sm:$0x3] %v3081
    // Predicated region
    $region126: #{point_multi_grasp_net_forward.1} parent=1 // pred_check
      _
    $region127: #{point_multi_grasp_net_forward.1} parent=1 // pred_check_branch
      %3086 = sbr.rel (0) target = $region129
    $region128: #{point_multi_grasp_net_forward.1} parent=1 // pred_region
      %s3088 = ssub.s32 128, 128
      %3089 = vsyncadd [#allocation4], %s3088
      %s3091 = sshll.u32 [#allocation26], 4
      %s3092 = int_to_ptr.vmem [resolvable:$true] %s3091
      %3094 = dma.vmem_to_hbm [thread:$0]  %s3092, 128, %s16, [#allocation4]
    $region129: #{point_multi_grasp_net_forward.1} parent=1 // pred_fallthru
      _
    // Predicated region
    $region130: #{point_multi_grasp_net_forward.1} parent=1 // pred_check
      _
    $region131: #{point_multi_grasp_net_forward.1} parent=1 // pred_check_branch
      %3096 = sbr.rel (0) target = $region133
    $region132: #{point_multi_grasp_net_forward.1} parent=1 // pred_region
      _
    $region133: #{point_multi_grasp_net_forward.1} parent=1 // pred_fallthru
      _
    // Predicated region
    $region134: #{point_multi_grasp_net_forward.1} parent=1 // pred_check
      _
    $region135: #{point_multi_grasp_net_forward.1} parent=1 // pred_check_branch
      %3098 = sbr.rel (0) target = $region137
    $region136: #{point_multi_grasp_net_forward.1} parent=1 // pred_region
      %3099 = dma.done [#allocation4], 128
    $region137: #{point_multi_grasp_net_forward.1} parent=1 // pred_fallthru
      _
    // Predicated region
    $region138: #{point_multi_grasp_net_forward.1} parent=1 // pred_check
      _
    $region139: #{point_multi_grasp_net_forward.1} parent=1 // pred_check_branch
      %3101 = sbr.rel (0) target = $region141
    $region140: #{point_multi_grasp_net_forward.1} parent=1 // pred_region
      _
    $region141: #{point_multi_grasp_net_forward.1} parent=1 // pred_fallthru
      _
    %3102 = vsyncpa [#allocation3], 1
    %3103 = vsyncpa [#allocation6], 1
    %3104 = vsyncpa [#allocation9], 1
    %3105 = vsyncpa [#allocation12], 1
    %3106 = vsyncpa [#allocation15], 1
    %3107 = vsyncpa [#allocation18], 1
    %3108 = vsyncpa [#allocation21], 1
    %3109 = vsyncpa [#allocation24], 1
    %3110 = vsyncpa [#allocation4], 1

</llo_original>
